<compile_context>
chip_gen: v7x
topology: tpu7x:2x2x1
jax: 0.10.0
libtpu: 0.0.40
codegen_flags: <defaults>
</compile_context>

<pallas_src>
import jax
import jax.numpy as jnp
from jax.experimental import pallas as pl
from jax.experimental.pallas import tpu as pltpu

CFG = [16, "M", 32, "M", 64, "M", 512, "M"]
NUM_CLASSES = 10
IN_CHANNELS = 1
IN_HW = 16                  # 16x16 input -> features end at 1x1x512
BN_EPS = 1e-5
PAD_CLASSES = 128           # lane-dense logits; sliced back to NUM_CLASSES outside


# ----------------------------- geometry ------------------------------------

def _stages(cfg, in_channels, hw):
    """[(H, W, Cin, Cout)] per conv(+pool) stage for an alternating cfg."""
    stages, h, w, cin = [], hw, hw, in_channels
    it = iter(cfg)
    for v in it:
        assert v != "M", "cfg must alternate conv and 'M'"
        assert next(it, None) == "M", "cfg must alternate conv and 'M'"
        stages.append((h, w, cin, v))
        h, w, cin = h // 2, w // 2, v
    return stages


# ----------------------------- in-kernel ops --------------------------------

def _im2col_from_slab(slab_ref, col_ref, *, wp, rows, cin):
    """9 contiguous row-shifted copies slab -> (rows, 9*cin) bf16 im2col.

    slab_ref: (rows + 2*(wp+1), cin) f32, zero-padded spatial grid with wp+1
              zero guard rows at each end so every tap offset stays in range.
    """
    g = wp + 1
    for kh in range(3):
        for kw in range(3):
            t = kh * 3 + kw
            off = (kh - 1) * wp + (kw - 1)
            col_ref[:, t * cin:(t + 1) * cin] = (
                slab_ref[pl.ds(g + off, rows), :].astype(jnp.bfloat16))


def _conv_bn_relu(col_ref, wt_ref, sc_ref, bi_ref, y_ref):
    """One bf16 MXU matmul (f32 accumulation) + folded-BN + ReLU epilogue."""
    acc = jnp.dot(col_ref[...], wt_ref[...], preferred_element_type=jnp.float32)
    y_ref[...] = jnp.maximum(acc * sc_ref[...] + bi_ref[...], 0.0)


def _pool_interior(y_ref, dst_ref, *, h, w, dst_wp):
    """2x2/stride-2 pool of a y laid out as interior rows (y, x) only."""
    dst_g = dst_wp + 1
    for hh in range(h // 2):
        r0 = (2 * hh) * w
        r1 = r0 + w
        p = jnp.maximum(
            jnp.maximum(y_ref[pl.ds(r0, w // 2, 2), :],
                        y_ref[pl.ds(r0 + 1, w // 2, 2), :]),
            jnp.maximum(y_ref[pl.ds(r1, w // 2, 2), :],
                        y_ref[pl.ds(r1 + 1, w // 2, 2), :]))
        dst_ref[pl.ds(dst_g + (hh + 1) * dst_wp + 1, w // 2), :] = p


def _pool_padded(y_ref, dst_ref, *, h, w, dst_wp):
    """2x2/stride-2 pool of the interior rows of a padded-grid y."""
    wp = w + 2
    dst_g = dst_wp + 1
    for hh in range(h // 2):
        b0 = (2 * hh + 1) * wp
        b1 = b0 + wp
        p = jnp.maximum(
            jnp.maximum(y_ref[pl.ds(b0 + 1, w // 2, 2), :],
                        y_ref[pl.ds(b0 + 2, w // 2, 2), :]),
            jnp.maximum(y_ref[pl.ds(b1 + 1, w // 2, 2), :],
                        y_ref[pl.ds(b1 + 2, w // 2, 2), :]))
        dst_ref[pl.ds(dst_g + (hh + 1) * dst_wp + 1, w // 2), :] = p


def _make_vgg_kernel(stages):
    n_stage = len(stages)

    def kernel(*refs):
        assert len(refs) == 1 + 3 * n_stage + 2 + 1 + 1 + 3 * (n_stage - 1)
        x_ref = refs[0]                                    # (H0*W0, 9) bf16 im2col
        conv = [refs[1 + 3 * s: 4 + 3 * s] for s in range(n_stage)]
        fcw_ref = refs[1 + 3 * n_stage]
        fcb_ref = refs[2 + 3 * n_stage]
        out_ref = refs[3 + 3 * n_stage]
        scr = list(refs[4 + 3 * n_stage:])

        y = [None] * n_stage
        slab = [None] * n_stage
        col = [None] * n_stage
        y[0] = scr[0]
        k = 1
        for s in range(1, n_stage):
            slab[s], col[s], y[s] = scr[k], scr[k + 1], scr[k + 2]
            k += 3

        # Padding ring + guard rows of every slab must be zero (re-done every
        # grid step so megacore sharding never sees an uninitialized slab).
        for s in range(1, n_stage):
            slab[s][...] = jnp.zeros_like(slab[s])

        # Stage 0: interior-only conv from the wrapper-built im2col input.
        h0, w0, _, _ = stages[0]
        wt0, sc0, bi0 = conv[0]
        _conv_bn_relu(x_ref, wt0, sc0, bi0, y[0])
        _pool_interior(y[0], slab[1], h=h0, w=w0, dst_wp=stages[1][1] + 2)

        # Stages 1..N-1: im2col (K-concat) -> one matmul -> BN/ReLU -> pool.
        for s in range(1, n_stage):
            h, w, cin, _ = stages[s]
            wt, sc, bi = conv[s]
            _im2col_from_slab(slab[s], col[s], wp=w + 2, rows=(h + 2) * (w + 2),
                              cin=cin)
            _conv_bn_relu(col[s], wt, sc, bi, y[s])
            if s + 1 < n_stage:
                _pool_padded(y[s], slab[s + 1], h=h, w=w,
                             dst_wp=stages[s + 1][1] + 2)

        # Last pool leaves 1x1 spatial: 4 interior rows -> one feature vector.
        hL, wL, _, _ = stages[-1]
        assert hL == 2 and wL == 2
        wpL = wL + 2
        yL = y[n_stage - 1]
        feat = jnp.maximum(
            jnp.maximum(yL[1 * wpL + 1: 1 * wpL + 2, :],
                        yL[1 * wpL + 2: 1 * wpL + 3, :]),
            jnp.maximum(yL[2 * wpL + 1: 2 * wpL + 2, :],
                        yL[2 * wpL + 2: 2 * wpL + 3, :]))      # (1, 512) f32

        # Classifier: Linear(512 -> num_classes), lane-padded to PAD_CLASSES.
        logits = (jnp.dot(feat.astype(jnp.bfloat16), fcw_ref[...],
                          preferred_element_type=jnp.float32) + fcb_ref[...])
        out_ref[0] = logits

    return kernel


def _scratch_shapes(stages):
    shapes = []
    h0, w0, _, cout0 = stages[0]
    shapes.append(pltpu.VMEM((h0 * w0, cout0), jnp.float32))         # y0 (interior)
    for s in range(1, len(stages)):
        h, w, cin, cout = stages[s]
        wp = w + 2
        rows = (h + 2) * wp
        g = wp + 1
        shapes.append(pltpu.VMEM((rows + 2 * g, cin), jnp.float32))  # padded slab
        shapes.append(pltpu.VMEM((rows, 9 * cin), jnp.bfloat16))     # K-concat im2col
        shapes.append(pltpu.VMEM((rows, cout), jnp.float32))         # conv output
    return shapes


# ----------------------------- wrapper --------------------------------------

def vgg_forward(x_nchw, conv_params, fc):
    """x_nchw: (N, IN_CHANNELS, H, W) like the PyTorch module. Returns (N, 10)."""
    n = x_nchw.shape[0]
    stages = _stages(CFG, IN_CHANNELS, IN_HW)
    h0, w0, cin0, _ = stages[0]
    assert x_nchw.shape[1:] == (cin0, h0, w0) and cin0 == 1

    # Stage-0 im2col built outside the kernel (input-side layout plumbing):
    # rows ordered (img, y, x), columns are the 9 (kh, kw) taps, bf16 for MXU.
    x = jnp.transpose(x_nchw, (0, 2, 3, 1)).astype(jnp.float32)      # NHWC
    xp = jnp.pad(x, ((0, 0), (1, 1), (1, 1), (0, 0)))
    taps = [xp[:, kh:kh + h0, kw:kw + w0, 0] for kh in range(3) for kw in range(3)]
    x_col = jnp.stack(taps, axis=-1).reshape(n * h0 * w0, 9).astype(jnp.bfloat16)

    args = [x_col]
    in_specs = [pl.BlockSpec((h0 * w0, 9), lambda i: (i, 0))]
    for p in conv_params:
        cin, cout = p["w"].shape[2], p["w"].shape[3]
        scale = p["gamma"] / jnp.sqrt(p["var"] + BN_EPS)    # folded inference BN
        bias = p["beta"] - p["mean"] * scale
        args += [p["w"].reshape(9 * cin, cout).astype(jnp.bfloat16),
                 scale.reshape(1, cout).astype(jnp.float32),
                 bias.reshape(1, cout).astype(jnp.float32)]
        in_specs += [pl.BlockSpec((9 * cin, cout), lambda i: (0, 0)),
                     pl.BlockSpec((1, cout), lambda i: (0, 0)),
                     pl.BlockSpec((1, cout), lambda i: (0, 0))]

    fc_w, fc_b = fc
    d, c = fc_w.shape
    fcw_pad = (jnp.zeros((d, PAD_CLASSES), jnp.float32)
               .at[:, :c].set(fc_w).astype(jnp.bfloat16))
    fcb_pad = jnp.zeros((1, PAD_CLASSES), jnp.float32).at[:, :c].set(fc_b[None, :])
    args += [fcw_pad, fcb_pad]
    in_specs += [pl.BlockSpec((d, PAD_CLASSES), lambda i: (0, 0)),
                 pl.BlockSpec((1, PAD_CLASSES), lambda i: (0, 0))]

    out = pl.pallas_call(
        _make_vgg_kernel(stages),
        out_shape=jax.ShapeDtypeStruct((n, 1, PAD_CLASSES), jnp.float32),
        grid=(n,),
        in_specs=in_specs,
        out_specs=pl.BlockSpec((1, 1, PAD_CLASSES), lambda i: (i, 0, 0)),
        scratch_shapes=_scratch_shapes(stages),
        compiler_params=pltpu.CompilerParams(
            dimension_semantics=("parallel",),
            vmem_limit_bytes=32 * 1024 * 1024),
    )(*args)
    return out.reshape(n, PAD_CLASSES)[:, :c]


# ----------------------------- parameters -----------------------------------

def init_params(key, cfg, in_channels=IN_CHANNELS, num_classes=NUM_CLASSES):
    conv_params = []
    cin = in_channels
    for v in cfg:
        if v == "M":
            continue
        key, k1, k2, k3, k4, k5 = jax.random.split(key, 6)
        w = jax.random.normal(k1, (3, 3, cin, v), jnp.float32) / jnp.sqrt(9.0 * cin)
        gamma = 1.0 + 0.1 * jax.random.normal(k2, (v,), jnp.float32)
        beta = 0.1 * jax.random.normal(k3, (v,), jnp.float32)
        mean = 0.05 * jax.random.normal(k4, (v,), jnp.float32)
        var = 1.0 + 0.1 * jax.random.uniform(k5, (v,), jnp.float32)
        conv_params.append(dict(w=w, gamma=gamma, beta=beta, mean=mean, var=var))
        cin = v
    key, kw, kb = jax.random.split(key, 3)
    fc_w = jax.random.normal(kw, (512, num_classes), jnp.float32) / jnp.sqrt(512.0)
    fc_b = 0.01 * jax.random.normal(kb, (num_classes,), jnp.float32)
    return conv_params, (fc_w, fc_b)


# ----------------------------- pure-JAX reference ---------------------------

def _vgg_reference(x_nchw, conv_params, fc):
    """Plain-XLA reference with identical bf16-operand / f32-accum semantics."""
    x = jnp.transpose(x_nchw, (0, 2, 3, 1)).astype(jnp.float32)
    for p in conv_params:
        scale = p["gamma"] / jnp.sqrt(p["var"] + BN_EPS)
        bias = p["beta"] - p["mean"] * scale
        y = jax.lax.conv_general_dilated(
            x.astype(jnp.bfloat16), p["w"].astype(jnp.bfloat16),
            window_strides=(1, 1), padding="SAME",
            dimension_numbers=("NHWC", "HWIO", "NHWC"),
            preferred_element_type=jnp.float32)
        x = jnp.maximum(y * scale + bias, 0.0)
        x = jax.lax.reduce_window(x, -jnp.inf, jax.lax.max,
                                  (1, 2, 2, 1), (1, 2, 2, 1), "VALID")
    feat = x.reshape(x.shape[0], -1)
    fc_w, fc_b = fc
    return (jnp.dot(feat.astype(jnp.bfloat16), fc_w.astype(jnp.bfloat16),
                    preferred_element_type=jnp.float32) + fc_b)


if __name__ == "__main__":
    key = jax.random.PRNGKey(0)
    kp, kx = jax.random.split(key)
    conv_params, fc = init_params(kp, CFG)

    # NCHW input, matching the PyTorch module signature (grayscale 16x16).
    x = jax.random.normal(kx, (2, IN_CHANNELS, IN_HW, IN_HW), jnp.float32)

    out = jax.jit(vgg_forward)(x, conv_params, fc)
    out = jax.block_until_ready(out)
    assert out.shape == (2, NUM_CLASSES), out.shape

    ref = _vgg_reference(x, conv_params, fc)
    max_err = float(jnp.max(jnp.abs(out - ref)))
    assert jnp.allclose(out, ref, atol=2e-2, rtol=2e-2), max_err

    print("KERNEL_OK")
</pallas_src>

<mosaic_0001>
module attributes {stable_mosaic.version = 11 : i64} {
  func.func @kernel(%arg0: i32, %arg1: memref<256x9xbf16, #tpu.memory_space<vmem>>, %arg2: memref<9x16xbf16, #tpu.memory_space<vmem>>, %arg3: memref<1x16xf32, #tpu.memory_space<vmem>>, %arg4: memref<1x16xf32, #tpu.memory_space<vmem>>, %arg5: memref<144x32xbf16, #tpu.memory_space<vmem>>, %arg6: memref<1x32xf32, #tpu.memory_space<vmem>>, %arg7: memref<1x32xf32, #tpu.memory_space<vmem>>, %arg8: memref<288x64xbf16, #tpu.memory_space<vmem>>, %arg9: memref<1x64xf32, #tpu.memory_space<vmem>>, %arg10: memref<1x64xf32, #tpu.memory_space<vmem>>, %arg11: memref<576x512xbf16, #tpu.memory_space<vmem>>, %arg12: memref<1x512xf32, #tpu.memory_space<vmem>>, %arg13: memref<1x512xf32, #tpu.memory_space<vmem>>, %arg14: memref<512x128xbf16, #tpu.memory_space<vmem>>, %arg15: memref<1x128xf32, #tpu.memory_space<vmem>>, %arg16: memref<1x1x128xf32, #tpu.memory_space<vmem>>, %arg17: memref<256x16xf32, #tpu.memory_space<vmem>>, %arg18: memref<122x16xf32, #tpu.memory_space<vmem>>, %arg19: memref<100x144xbf16, #tpu.memory_space<vmem>>, %arg20: memref<100x32xf32, #tpu.memory_space<vmem>>, %arg21: memref<50x32xf32, #tpu.memory_space<vmem>>, %arg22: memref<36x288xbf16, #tpu.memory_space<vmem>>, %arg23: memref<36x64xf32, #tpu.memory_space<vmem>>, %arg24: memref<26x64xf32, #tpu.memory_space<vmem>>, %arg25: memref<16x576xbf16, #tpu.memory_space<vmem>>, %arg26: memref<16x512xf32, #tpu.memory_space<vmem>>) attributes {dimension_semantics = [#tpu.dimension_semantics<parallel>], iteration_bounds = array<i64: 2>, scalar_prefetch = 0 : i64, scratch_operands = 10 : i64, tpu.core_type = #tpu.core_type<tc>, window_params = [{transform_indices = @transform_0, window_bounds = array<i64: 256, 9>}, {pipeline_mode = #tpu.pipeline_mode<synchronous>, transform_indices = @transform_1, window_bounds = array<i64: 9, 16>}, {pipeline_mode = #tpu.pipeline_mode<synchronous>, transform_indices = @transform_2, window_bounds = array<i64: 1, 16>}, {pipeline_mode = #tpu.pipeline_mode<synchronous>, transform_indices = @transform_3, window_bounds = array<i64: 1, 16>}, {pipeline_mode = #tpu.pipeline_mode<synchronous>, transform_indices = @transform_4, window_bounds = array<i64: 144, 32>}, {pipeline_mode = #tpu.pipeline_mode<synchronous>, transform_indices = @transform_5, window_bounds = array<i64: 1, 32>}, {pipeline_mode = #tpu.pipeline_mode<synchronous>, transform_indices = @transform_6, window_bounds = array<i64: 1, 32>}, {pipeline_mode = #tpu.pipeline_mode<synchronous>, transform_indices = @transform_7, window_bounds = array<i64: 288, 64>}, {pipeline_mode = #tpu.pipeline_mode<synchronous>, transform_indices = @transform_8, window_bounds = array<i64: 1, 64>}, {pipeline_mode = #tpu.pipeline_mode<synchronous>, transform_indices = @transform_9, window_bounds = array<i64: 1, 64>}, {pipeline_mode = #tpu.pipeline_mode<synchronous>, transform_indices = @transform_10, window_bounds = array<i64: 576, 512>}, {pipeline_mode = #tpu.pipeline_mode<synchronous>, transform_indices = @transform_11, window_bounds = array<i64: 1, 512>}, {pipeline_mode = #tpu.pipeline_mode<synchronous>, transform_indices = @transform_12, window_bounds = array<i64: 1, 512>}, {pipeline_mode = #tpu.pipeline_mode<synchronous>, transform_indices = @transform_13, window_bounds = array<i64: 512, 128>}, {pipeline_mode = #tpu.pipeline_mode<synchronous>, transform_indices = @transform_14, window_bounds = array<i64: 1, 128>}, {transform_indices = @transform_15, window_bounds = array<i64: 1, 1, 128>}]} {
    %cst = arith.constant 0.000000e+00 : f32
    %0 = vector.broadcast %cst : f32 to vector<122x16xf32>
    %c0 = arith.constant 0 : index
    %c0_0 = arith.constant 0 : index
    %1 = vector.load %arg18[%c0, %c0_0] : memref<122x16xf32, #tpu.memory_space<vmem>>, vector<122x16xf32>
    tpu.vector_store %arg18[%c0, %c0_0], %0 {strides = array<i32>} : memref<122x16xf32, #tpu.memory_space<vmem>>, vector<122x16xf32>,
    %cst_1 = arith.constant 0.000000e+00 : f32
    %2 = vector.broadcast %cst_1 : f32 to vector<50x32xf32>
    %c0_2 = arith.constant 0 : index
    %c0_3 = arith.constant 0 : index
    %3 = vector.load %arg21[%c0_2, %c0_3] : memref<50x32xf32, #tpu.memory_space<vmem>>, vector<50x32xf32>
    tpu.vector_store %arg21[%c0_2, %c0_3], %2 {strides = array<i32>} : memref<50x32xf32, #tpu.memory_space<vmem>>, vector<50x32xf32>,
    %cst_4 = arith.constant 0.000000e+00 : f32
    %4 = vector.broadcast %cst_4 : f32 to vector<26x64xf32>
    %c0_5 = arith.constant 0 : index
    %c0_6 = arith.constant 0 : index
    %5 = vector.load %arg24[%c0_5, %c0_6] : memref<26x64xf32, #tpu.memory_space<vmem>>, vector<26x64xf32>
    tpu.vector_store %arg24[%c0_5, %c0_6], %4 {strides = array<i32>} : memref<26x64xf32, #tpu.memory_space<vmem>>, vector<26x64xf32>,
    %c0_7 = arith.constant 0 : index
    %c0_8 = arith.constant 0 : index
    %6 = vector.load %arg1[%c0_7, %c0_8] : memref<256x9xbf16, #tpu.memory_space<vmem>>, vector<256x9xbf16>
    %c0_9 = arith.constant 0 : index
    %c0_10 = arith.constant 0 : index
    %7 = vector.load %arg2[%c0_9, %c0_10] : memref<9x16xbf16, #tpu.memory_space<vmem>>, vector<9x16xbf16>
    %cst_11 = arith.constant dense<0.000000e+00> : vector<256x16xf32>
    %8 = tpu.matmul %6, %7, %cst_11 {dimension_numbers = #tpu.dot_dimension_numbers<[1], [0], [0], [1], [0, 0, 1, 1], [], []>} : vector<256x9xbf16>, vector<9x16xbf16>, vector<256x16xf32> -> vector<256x16xf32>
    %c0_12 = arith.constant 0 : index
    %c0_13 = arith.constant 0 : index
    %9 = vector.load %arg3[%c0_12, %c0_13] : memref<1x16xf32, #tpu.memory_space<vmem>>, vector<1x16xf32>
    %10 = vector.broadcast %9 : vector<1x16xf32> to vector<256x16xf32>
    %11 = arith.mulf %8, %10 : vector<256x16xf32>
    %c0_14 = arith.constant 0 : index
    %c0_15 = arith.constant 0 : index
    %12 = vector.load %arg4[%c0_14, %c0_15] : memref<1x16xf32, #tpu.memory_space<vmem>>, vector<1x16xf32>
    %13 = vector.broadcast %12 : vector<1x16xf32> to vector<256x16xf32>
    %14 = arith.addf %11, %13 : vector<256x16xf32>
    %cst_16 = arith.constant 0.000000e+00 : f32
    %15 = vector.broadcast %cst_16 : f32 to vector<256x16xf32>
    %16 = arith.maximumf %14, %15 : vector<256x16xf32>
    %c0_17 = arith.constant 0 : index
    %c0_18 = arith.constant 0 : index
    %17 = vector.load %arg17[%c0_17, %c0_18] : memref<256x16xf32, #tpu.memory_space<vmem>>, vector<256x16xf32>
    tpu.vector_store %arg17[%c0_17, %c0_18], %16 {strides = array<i32>} : memref<256x16xf32, #tpu.memory_space<vmem>>, vector<256x16xf32>,
    %c0_19 = arith.constant 0 : index
    %c0_20 = arith.constant 0 : index
    %18 = tpu.strided_load %arg17[%c0_19, %c0_20] {strides = array<i32: 2, 1>} : memref<256x16xf32, #tpu.memory_space<vmem>>, vector<8x16xf32>
    %c1 = arith.constant 1 : index
    %c0_21 = arith.constant 0 : index
    %19 = tpu.strided_load %arg17[%c1, %c0_21] {strides = array<i32: 2, 1>} : memref<256x16xf32, #tpu.memory_space<vmem>>, vector<8x16xf32>
    %20 = arith.maximumf %18, %19 : vector<8x16xf32>
    %c16 = arith.constant 16 : index
    %c0_22 = arith.constant 0 : index
    %21 = tpu.strided_load %arg17[%c16, %c0_22] {strides = array<i32: 2, 1>} : memref<256x16xf32, #tpu.memory_space<vmem>>, vector<8x16xf32>
    %c17 = arith.constant 17 : index
    %c0_23 = arith.constant 0 : index
    %22 = tpu.strided_load %arg17[%c17, %c0_23] {strides = array<i32: 2, 1>} : memref<256x16xf32, #tpu.memory_space<vmem>>, vector<8x16xf32>
    %23 = arith.maximumf %21, %22 : vector<8x16xf32>
    %24 = arith.maximumf %20, %23 : vector<8x16xf32>
    %c22 = arith.constant 22 : index
    %c0_24 = arith.constant 0 : index
    %25 = vector.load %arg18[%c22, %c0_24] : memref<122x16xf32, #tpu.memory_space<vmem>>, vector<8x16xf32>
    tpu.vector_store %arg18[%c22, %c0_24], %24 {strides = array<i32>} : memref<122x16xf32, #tpu.memory_space<vmem>>, vector<8x16xf32>,
    %c32 = arith.constant 32 : index
    %c0_25 = arith.constant 0 : index
    %26 = tpu.strided_load %arg17[%c32, %c0_25] {strides = array<i32: 2, 1>} : memref<256x16xf32, #tpu.memory_space<vmem>>, vector<8x16xf32>
    %c33 = arith.constant 33 : index
    %c0_26 = arith.constant 0 : index
    %27 = tpu.strided_load %arg17[%c33, %c0_26] {strides = array<i32: 2, 1>} : memref<256x16xf32, #tpu.memory_space<vmem>>, vector<8x16xf32>
    %28 = arith.maximumf %26, %27 : vector<8x16xf32>
    %c48 = arith.constant 48 : index
    %c0_27 = arith.constant 0 : index
    %29 = tpu.strided_load %arg17[%c48, %c0_27] {strides = array<i32: 2, 1>} : memref<256x16xf32, #tpu.memory_space<vmem>>, vector<8x16xf32>
    %c49 = arith.constant 49 : index
    %c0_28 = arith.constant 0 : index
    %30 = tpu.strided_load %arg17[%c49, %c0_28] {strides = array<i32: 2, 1>} : memref<256x16xf32, #tpu.memory_space<vmem>>, vector<8x16xf32>
    %31 = arith.maximumf %29, %30 : vector<8x16xf32>
    %32 = arith.maximumf %28, %31 : vector<8x16xf32>
    %c32_29 = arith.constant 32 : index
    %c0_30 = arith.constant 0 : index
    %33 = vector.load %arg18[%c32_29, %c0_30] : memref<122x16xf32, #tpu.memory_space<vmem>>, vector<8x16xf32>
    tpu.vector_store %arg18[%c32_29, %c0_30], %32 {strides = array<i32>} : memref<122x16xf32, #tpu.memory_space<vmem>>, vector<8x16xf32>,
    %c64 = arith.constant 64 : index
    %c0_31 = arith.constant 0 : index
    %34 = tpu.strided_load %arg17[%c64, %c0_31] {strides = array<i32: 2, 1>} : memref<256x16xf32, #tpu.memory_space<vmem>>, vector<8x16xf32>
    %c65 = arith.constant 65 : index
    %c0_32 = arith.constant 0 : index
    %35 = tpu.strided_load %arg17[%c65, %c0_32] {strides = array<i32: 2, 1>} : memref<256x16xf32, #tpu.memory_space<vmem>>, vector<8x16xf32>
    %36 = arith.maximumf %34, %35 : vector<8x16xf32>
    %c80 = arith.constant 80 : index
    %c0_33 = arith.constant 0 : index
    %37 = tpu.strided_load %arg17[%c80, %c0_33] {strides = array<i32: 2, 1>} : memref<256x16xf32, #tpu.memory_space<vmem>>, vector<8x16xf32>
    %c81 = arith.constant 81 : index
    %c0_34 = arith.constant 0 : index
    %38 = tpu.strided_load %arg17[%c81, %c0_34] {strides = array<i32: 2, 1>} : memref<256x16xf32, #tpu.memory_space<vmem>>, vector<8x16xf32>
    %39 = arith.maximumf %37, %38 : vector<8x16xf32>
    %40 = arith.maximumf %36, %39 : vector<8x16xf32>
    %c42 = arith.constant 42 : index
    %c0_35 = arith.constant 0 : index
    %41 = vector.load %arg18[%c42, %c0_35] : memref<122x16xf32, #tpu.memory_space<vmem>>, vector<8x16xf32>
    tpu.vector_store %arg18[%c42, %c0_35], %40 {strides = array<i32>} : memref<122x16xf32, #tpu.memory_space<vmem>>, vector<8x16xf32>,
    %c96 = arith.constant 96 : index
    %c0_36 = arith.constant 0 : index
    %42 = tpu.strided_load %arg17[%c96, %c0_36] {strides = array<i32: 2, 1>} : memref<256x16xf32, #tpu.memory_space<vmem>>, vector<8x16xf32>
    %c97 = arith.constant 97 : index
    %c0_37 = arith.constant 0 : index
    %43 = tpu.strided_load %arg17[%c97, %c0_37] {strides = array<i32: 2, 1>} : memref<256x16xf32, #tpu.memory_space<vmem>>, vector<8x16xf32>
    %44 = arith.maximumf %42, %43 : vector<8x16xf32>
    %c112 = arith.constant 112 : index
    %c0_38 = arith.constant 0 : index
    %45 = tpu.strided_load %arg17[%c112, %c0_38] {strides = array<i32: 2, 1>} : memref<256x16xf32, #tpu.memory_space<vmem>>, vector<8x16xf32>
    %c113 = arith.constant 113 : index
    %c0_39 = arith.constant 0 : index
    %46 = tpu.strided_load %arg17[%c113, %c0_39] {strides = array<i32: 2, 1>} : memref<256x16xf32, #tpu.memory_space<vmem>>, vector<8x16xf32>
    %47 = arith.maximumf %45, %46 : vector<8x16xf32>
    %48 = arith.maximumf %44, %47 : vector<8x16xf32>
    %c52 = arith.constant 52 : index
    %c0_40 = arith.constant 0 : index
    %49 = vector.load %arg18[%c52, %c0_40] : memref<122x16xf32, #tpu.memory_space<vmem>>, vector<8x16xf32>
    tpu.vector_store %arg18[%c52, %c0_40], %48 {strides = array<i32>} : memref<122x16xf32, #tpu.memory_space<vmem>>, vector<8x16xf32>,
    %c128 = arith.constant 128 : index
    %c0_41 = arith.constant 0 : index
    %50 = tpu.strided_load %arg17[%c128, %c0_41] {strides = array<i32: 2, 1>} : memref<256x16xf32, #tpu.memory_space<vmem>>, vector<8x16xf32>
    %c129 = arith.constant 129 : index
    %c0_42 = arith.constant 0 : index
    %51 = tpu.strided_load %arg17[%c129, %c0_42] {strides = array<i32: 2, 1>} : memref<256x16xf32, #tpu.memory_space<vmem>>, vector<8x16xf32>
    %52 = arith.maximumf %50, %51 : vector<8x16xf32>
    %c144 = arith.constant 144 : index
    %c0_43 = arith.constant 0 : index
    %53 = tpu.strided_load %arg17[%c144, %c0_43] {strides = array<i32: 2, 1>} : memref<256x16xf32, #tpu.memory_space<vmem>>, vector<8x16xf32>
    %c145 = arith.constant 145 : index
    %c0_44 = arith.constant 0 : index
    %54 = tpu.strided_load %arg17[%c145, %c0_44] {strides = array<i32: 2, 1>} : memref<256x16xf32, #tpu.memory_space<vmem>>, vector<8x16xf32>
    %55 = arith.maximumf %53, %54 : vector<8x16xf32>
    %56 = arith.maximumf %52, %55 : vector<8x16xf32>
    %c62 = arith.constant 62 : index
    %c0_45 = arith.constant 0 : index
    %57 = vector.load %arg18[%c62, %c0_45] : memref<122x16xf32, #tpu.memory_space<vmem>>, vector<8x16xf32>
    tpu.vector_store %arg18[%c62, %c0_45], %56 {strides = array<i32>} : memref<122x16xf32, #tpu.memory_space<vmem>>, vector<8x16xf32>,
    %c160 = arith.constant 160 : index
    %c0_46 = arith.constant 0 : index
    %58 = tpu.strided_load %arg17[%c160, %c0_46] {strides = array<i32: 2, 1>} : memref<256x16xf32, #tpu.memory_space<vmem>>, vector<8x16xf32>
    %c161 = arith.constant 161 : index
    %c0_47 = arith.constant 0 : index
    %59 = tpu.strided_load %arg17[%c161, %c0_47] {strides = array<i32: 2, 1>} : memref<256x16xf32, #tpu.memory_space<vmem>>, vector<8x16xf32>
    %60 = arith.maximumf %58, %59 : vector<8x16xf32>
    %c176 = arith.constant 176 : index
    %c0_48 = arith.constant 0 : index
    %61 = tpu.strided_load %arg17[%c176, %c0_48] {strides = array<i32: 2, 1>} : memref<256x16xf32, #tpu.memory_space<vmem>>, vector<8x16xf32>
    %c177 = arith.constant 177 : index
    %c0_49 = arith.constant 0 : index
    %62 = tpu.strided_load %arg17[%c177, %c0_49] {strides = array<i32: 2, 1>} : memref<256x16xf32, #tpu.memory_space<vmem>>, vector<8x16xf32>
    %63 = arith.maximumf %61, %62 : vector<8x16xf32>
    %64 = arith.maximumf %60, %63 : vector<8x16xf32>
    %c72 = arith.constant 72 : index
    %c0_50 = arith.constant 0 : index
    %65 = vector.load %arg18[%c72, %c0_50] : memref<122x16xf32, #tpu.memory_space<vmem>>, vector<8x16xf32>
    tpu.vector_store %arg18[%c72, %c0_50], %64 {strides = array<i32>} : memref<122x16xf32, #tpu.memory_space<vmem>>, vector<8x16xf32>,
    %c192 = arith.constant 192 : index
    %c0_51 = arith.constant 0 : index
    %66 = tpu.strided_load %arg17[%c192, %c0_51] {strides = array<i32: 2, 1>} : memref<256x16xf32, #tpu.memory_space<vmem>>, vector<8x16xf32>
    %c193 = arith.constant 193 : index
    %c0_52 = arith.constant 0 : index
    %67 = tpu.strided_load %arg17[%c193, %c0_52] {strides = array<i32: 2, 1>} : memref<256x16xf32, #tpu.memory_space<vmem>>, vector<8x16xf32>
    %68 = arith.maximumf %66, %67 : vector<8x16xf32>
    %c208 = arith.constant 208 : index
    %c0_53 = arith.constant 0 : index
    %69 = tpu.strided_load %arg17[%c208, %c0_53] {strides = array<i32: 2, 1>} : memref<256x16xf32, #tpu.memory_space<vmem>>, vector<8x16xf32>
    %c209 = arith.constant 209 : index
    %c0_54 = arith.constant 0 : index
    %70 = tpu.strided_load %arg17[%c209, %c0_54] {strides = array<i32: 2, 1>} : memref<256x16xf32, #tpu.memory_space<vmem>>, vector<8x16xf32>
    %71 = arith.maximumf %69, %70 : vector<8x16xf32>
    %72 = arith.maximumf %68, %71 : vector<8x16xf32>
    %c82 = arith.constant 82 : index
    %c0_55 = arith.constant 0 : index
    %73 = vector.load %arg18[%c82, %c0_55] : memref<122x16xf32, #tpu.memory_space<vmem>>, vector<8x16xf32>
    tpu.vector_store %arg18[%c82, %c0_55], %72 {strides = array<i32>} : memref<122x16xf32, #tpu.memory_space<vmem>>, vector<8x16xf32>,
    %c224 = arith.constant 224 : index
    %c0_56 = arith.constant 0 : index
    %74 = tpu.strided_load %arg17[%c224, %c0_56] {strides = array<i32: 2, 1>} : memref<256x16xf32, #tpu.memory_space<vmem>>, vector<8x16xf32>
    %c225 = arith.constant 225 : index
    %c0_57 = arith.constant 0 : index
    %75 = tpu.strided_load %arg17[%c225, %c0_57] {strides = array<i32: 2, 1>} : memref<256x16xf32, #tpu.memory_space<vmem>>, vector<8x16xf32>
    %76 = arith.maximumf %74, %75 : vector<8x16xf32>
    %c240 = arith.constant 240 : index
    %c0_58 = arith.constant 0 : index
    %77 = tpu.strided_load %arg17[%c240, %c0_58] {strides = array<i32: 2, 1>} : memref<256x16xf32, #tpu.memory_space<vmem>>, vector<8x16xf32>
    %c241 = arith.constant 241 : index
    %c0_59 = arith.constant 0 : index
    %78 = tpu.strided_load %arg17[%c241, %c0_59] {strides = array<i32: 2, 1>} : memref<256x16xf32, #tpu.memory_space<vmem>>, vector<8x16xf32>
    %79 = arith.maximumf %77, %78 : vector<8x16xf32>
    %80 = arith.maximumf %76, %79 : vector<8x16xf32>
    %c92 = arith.constant 92 : index
    %c0_60 = arith.constant 0 : index
    %81 = vector.load %arg18[%c92, %c0_60] : memref<122x16xf32, #tpu.memory_space<vmem>>, vector<8x16xf32>
    tpu.vector_store %arg18[%c92, %c0_60], %80 {strides = array<i32>} : memref<122x16xf32, #tpu.memory_space<vmem>>, vector<8x16xf32>,
    %c0_61 = arith.constant 0 : index
    %c0_62 = arith.constant 0 : index
    %82 = vector.load %arg18[%c0_61, %c0_62] : memref<122x16xf32, #tpu.memory_space<vmem>>, vector<100x16xf32>
    %83 = arith.truncf %82 : vector<100x16xf32> to vector<100x16xbf16>
    %c0_63 = arith.constant 0 : index
    %c0_64 = arith.constant 0 : index
    %84 = vector.load %arg19[%c0_63, %c0_64] : memref<100x144xbf16, #tpu.memory_space<vmem>>, vector<100x16xbf16>
    tpu.vector_store %arg19[%c0_63, %c0_64], %83 {strides = array<i32>} : memref<100x144xbf16, #tpu.memory_space<vmem>>, vector<100x16xbf16>,
    %c1_65 = arith.constant 1 : index
    %c0_66 = arith.constant 0 : index
    %85 = vector.load %arg18[%c1_65, %c0_66] : memref<122x16xf32, #tpu.memory_space<vmem>>, vector<100x16xf32>
    %86 = arith.truncf %85 : vector<100x16xf32> to vector<100x16xbf16>
    %c0_67 = arith.constant 0 : index
    %c16_68 = arith.constant 16 : index
    %87 = vector.load %arg19[%c0_67, %c16_68] : memref<100x144xbf16, #tpu.memory_space<vmem>>, vector<100x16xbf16>
    tpu.vector_store %arg19[%c0_67, %c16_68], %86 {strides = array<i32>} : memref<100x144xbf16, #tpu.memory_space<vmem>>, vector<100x16xbf16>,
    %c2 = arith.constant 2 : index
    %c0_69 = arith.constant 0 : index
    %88 = vector.load %arg18[%c2, %c0_69] : memref<122x16xf32, #tpu.memory_space<vmem>>, vector<100x16xf32>
    %89 = arith.truncf %88 : vector<100x16xf32> to vector<100x16xbf16>
    %c0_70 = arith.constant 0 : index
    %c32_71 = arith.constant 32 : index
    %90 = vector.load %arg19[%c0_70, %c32_71] : memref<100x144xbf16, #tpu.memory_space<vmem>>, vector<100x16xbf16>
    tpu.vector_store %arg19[%c0_70, %c32_71], %89 {strides = array<i32>} : memref<100x144xbf16, #tpu.memory_space<vmem>>, vector<100x16xbf16>,
    %c10 = arith.constant 10 : index
    %c0_72 = arith.constant 0 : index
    %91 = vector.load %arg18[%c10, %c0_72] : memref<122x16xf32, #tpu.memory_space<vmem>>, vector<100x16xf32>
    %92 = arith.truncf %91 : vector<100x16xf32> to vector<100x16xbf16>
    %c0_73 = arith.constant 0 : index
    %c48_74 = arith.constant 48 : index
    %93 = vector.load %arg19[%c0_73, %c48_74] : memref<100x144xbf16, #tpu.memory_space<vmem>>, vector<100x16xbf16>
    tpu.vector_store %arg19[%c0_73, %c48_74], %92 {strides = array<i32>} : memref<100x144xbf16, #tpu.memory_space<vmem>>, vector<100x16xbf16>,
    %c11 = arith.constant 11 : index
    %c0_75 = arith.constant 0 : index
    %94 = vector.load %arg18[%c11, %c0_75] : memref<122x16xf32, #tpu.memory_space<vmem>>, vector<100x16xf32>
    %95 = arith.truncf %94 : vector<100x16xf32> to vector<100x16xbf16>
    %c0_76 = arith.constant 0 : index
    %c64_77 = arith.constant 64 : index
    %96 = vector.load %arg19[%c0_76, %c64_77] : memref<100x144xbf16, #tpu.memory_space<vmem>>, vector<100x16xbf16>
    tpu.vector_store %arg19[%c0_76, %c64_77], %95 {strides = array<i32>} : memref<100x144xbf16, #tpu.memory_space<vmem>>, vector<100x16xbf16>,
    %c12 = arith.constant 12 : index
    %c0_78 = arith.constant 0 : index
    %97 = vector.load %arg18[%c12, %c0_78] : memref<122x16xf32, #tpu.memory_space<vmem>>, vector<100x16xf32>
    %98 = arith.truncf %97 : vector<100x16xf32> to vector<100x16xbf16>
    %c0_79 = arith.constant 0 : index
    %c80_80 = arith.constant 80 : index
    %99 = vector.load %arg19[%c0_79, %c80_80] : memref<100x144xbf16, #tpu.memory_space<vmem>>, vector<100x16xbf16>
    tpu.vector_store %arg19[%c0_79, %c80_80], %98 {strides = array<i32>} : memref<100x144xbf16, #tpu.memory_space<vmem>>, vector<100x16xbf16>,
    %c20 = arith.constant 20 : index
    %c0_81 = arith.constant 0 : index
    %100 = vector.load %arg18[%c20, %c0_81] : memref<122x16xf32, #tpu.memory_space<vmem>>, vector<100x16xf32>
    %101 = arith.truncf %100 : vector<100x16xf32> to vector<100x16xbf16>
    %c0_82 = arith.constant 0 : index
    %c96_83 = arith.constant 96 : index
    %102 = vector.load %arg19[%c0_82, %c96_83] : memref<100x144xbf16, #tpu.memory_space<vmem>>, vector<100x16xbf16>
    tpu.vector_store %arg19[%c0_82, %c96_83], %101 {strides = array<i32>} : memref<100x144xbf16, #tpu.memory_space<vmem>>, vector<100x16xbf16>,
    %c21 = arith.constant 21 : index
    %c0_84 = arith.constant 0 : index
    %103 = vector.load %arg18[%c21, %c0_84] : memref<122x16xf32, #tpu.memory_space<vmem>>, vector<100x16xf32>
    %104 = arith.truncf %103 : vector<100x16xf32> to vector<100x16xbf16>
    %c0_85 = arith.constant 0 : index
    %c112_86 = arith.constant 112 : index
    %105 = vector.load %arg19[%c0_85, %c112_86] : memref<100x144xbf16, #tpu.memory_space<vmem>>, vector<100x16xbf16>
    tpu.vector_store %arg19[%c0_85, %c112_86], %104 {strides = array<i32>} : memref<100x144xbf16, #tpu.memory_space<vmem>>, vector<100x16xbf16>,
    %c22_87 = arith.constant 22 : index
    %c0_88 = arith.constant 0 : index
    %106 = vector.load %arg18[%c22_87, %c0_88] : memref<122x16xf32, #tpu.memory_space<vmem>>, vector<100x16xf32>
    %107 = arith.truncf %106 : vector<100x16xf32> to vector<100x16xbf16>
    %c0_89 = arith.constant 0 : index
    %c128_90 = arith.constant 128 : index
    %108 = vector.load %arg19[%c0_89, %c128_90] : memref<100x144xbf16, #tpu.memory_space<vmem>>, vector<100x16xbf16>
    tpu.vector_store %arg19[%c0_89, %c128_90], %107 {strides = array<i32>} : memref<100x144xbf16, #tpu.memory_space<vmem>>, vector<100x16xbf16>,
    %c0_91 = arith.constant 0 : index
    %c0_92 = arith.constant 0 : index
    %109 = vector.load %arg19[%c0_91, %c0_92] : memref<100x144xbf16, #tpu.memory_space<vmem>>, vector<100x144xbf16>
    %c0_93 = arith.constant 0 : index
    %c0_94 = arith.constant 0 : index
    %110 = vector.load %arg5[%c0_93, %c0_94] : memref<144x32xbf16, #tpu.memory_space<vmem>>, vector<144x32xbf16>
    %cst_95 = arith.constant dense<0.000000e+00> : vector<100x32xf32>
    %111 = tpu.matmul %109, %110, %cst_95 {dimension_numbers = #tpu.dot_dimension_numbers<[1], [0], [0], [1], [0, 0, 1, 1], [], []>} : vector<100x144xbf16>, vector<144x32xbf16>, vector<100x32xf32> -> vector<100x32xf32>
    %c0_96 = arith.constant 0 : index
    %c0_97 = arith.constant 0 : index
    %112 = vector.load %arg6[%c0_96, %c0_97] : memref<1x32xf32, #tpu.memory_space<vmem>>, vector<1x32xf32>
    %113 = vector.broadcast %112 : vector<1x32xf32> to vector<100x32xf32>
    %114 = arith.mulf %111, %113 : vector<100x32xf32>
    %c0_98 = arith.constant 0 : index
    %c0_99 = arith.constant 0 : index
    %115 = vector.load %arg7[%c0_98, %c0_99] : memref<1x32xf32, #tpu.memory_space<vmem>>, vector<1x32xf32>
    %116 = vector.broadcast %115 : vector<1x32xf32> to vector<100x32xf32>
    %117 = arith.addf %114, %116 : vector<100x32xf32>
    %cst_100 = arith.constant 0.000000e+00 : f32
    %118 = vector.broadcast %cst_100 : f32 to vector<100x32xf32>
    %119 = arith.maximumf %117, %118 : vector<100x32xf32>
    %c0_101 = arith.constant 0 : index
    %c0_102 = arith.constant 0 : index
    %120 = vector.load %arg20[%c0_101, %c0_102] : memref<100x32xf32, #tpu.memory_space<vmem>>, vector<100x32xf32>
    tpu.vector_store %arg20[%c0_101, %c0_102], %119 {strides = array<i32>} : memref<100x32xf32, #tpu.memory_space<vmem>>, vector<100x32xf32>,
    %c11_103 = arith.constant 11 : index
    %c0_104 = arith.constant 0 : index
    %121 = tpu.strided_load %arg20[%c11_103, %c0_104] {strides = array<i32: 2, 1>} : memref<100x32xf32, #tpu.memory_space<vmem>>, vector<4x32xf32>
    %c12_105 = arith.constant 12 : index
    %c0_106 = arith.constant 0 : index
    %122 = tpu.strided_load %arg20[%c12_105, %c0_106] {strides = array<i32: 2, 1>} : memref<100x32xf32, #tpu.memory_space<vmem>>, vector<4x32xf32>
    %123 = arith.maximumf %121, %122 : vector<4x32xf32>
    %c21_107 = arith.constant 21 : index
    %c0_108 = arith.constant 0 : index
    %124 = tpu.strided_load %arg20[%c21_107, %c0_108] {strides = array<i32: 2, 1>} : memref<100x32xf32, #tpu.memory_space<vmem>>, vector<4x32xf32>
    %c22_109 = arith.constant 22 : index
    %c0_110 = arith.constant 0 : index
    %125 = tpu.strided_load %arg20[%c22_109, %c0_110] {strides = array<i32: 2, 1>} : memref<100x32xf32, #tpu.memory_space<vmem>>, vector<4x32xf32>
    %126 = arith.maximumf %124, %125 : vector<4x32xf32>
    %127 = arith.maximumf %123, %126 : vector<4x32xf32>
    %c14 = arith.constant 14 : index
    %c0_111 = arith.constant 0 : index
    %128 = vector.load %arg21[%c14, %c0_111] : memref<50x32xf32, #tpu.memory_space<vmem>>, vector<4x32xf32>
    tpu.vector_store %arg21[%c14, %c0_111], %127 {strides = array<i32>} : memref<50x32xf32, #tpu.memory_space<vmem>>, vector<4x32xf32>,
    %c31 = arith.constant 31 : index
    %c0_112 = arith.constant 0 : index
    %129 = tpu.strided_load %arg20[%c31, %c0_112] {strides = array<i32: 2, 1>} : memref<100x32xf32, #tpu.memory_space<vmem>>, vector<4x32xf32>
    %c32_113 = arith.constant 32 : index
    %c0_114 = arith.constant 0 : index
    %130 = tpu.strided_load %arg20[%c32_113, %c0_114] {strides = array<i32: 2, 1>} : memref<100x32xf32, #tpu.memory_space<vmem>>, vector<4x32xf32>
    %131 = arith.maximumf %129, %130 : vector<4x32xf32>
    %c41 = arith.constant 41 : index
    %c0_115 = arith.constant 0 : index
    %132 = tpu.strided_load %arg20[%c41, %c0_115] {strides = array<i32: 2, 1>} : memref<100x32xf32, #tpu.memory_space<vmem>>, vector<4x32xf32>
    %c42_116 = arith.constant 42 : index
    %c0_117 = arith.constant 0 : index
    %133 = tpu.strided_load %arg20[%c42_116, %c0_117] {strides = array<i32: 2, 1>} : memref<100x32xf32, #tpu.memory_space<vmem>>, vector<4x32xf32>
    %134 = arith.maximumf %132, %133 : vector<4x32xf32>
    %135 = arith.maximumf %131, %134 : vector<4x32xf32>
    %c20_118 = arith.constant 20 : index
    %c0_119 = arith.constant 0 : index
    %136 = vector.load %arg21[%c20_118, %c0_119] : memref<50x32xf32, #tpu.memory_space<vmem>>, vector<4x32xf32>
    tpu.vector_store %arg21[%c20_118, %c0_119], %135 {strides = array<i32>} : memref<50x32xf32, #tpu.memory_space<vmem>>, vector<4x32xf32>,
    %c51 = arith.constant 51 : index
    %c0_120 = arith.constant 0 : index
    %137 = tpu.strided_load %arg20[%c51, %c0_120] {strides = array<i32: 2, 1>} : memref<100x32xf32, #tpu.memory_space<vmem>>, vector<4x32xf32>
    %c52_121 = arith.constant 52 : index
    %c0_122 = arith.constant 0 : index
    %138 = tpu.strided_load %arg20[%c52_121, %c0_122] {strides = array<i32: 2, 1>} : memref<100x32xf32, #tpu.memory_space<vmem>>, vector<4x32xf32>
    %139 = arith.maximumf %137, %138 : vector<4x32xf32>
    %c61 = arith.constant 61 : index
    %c0_123 = arith.constant 0 : index
    %140 = tpu.strided_load %arg20[%c61, %c0_123] {strides = array<i32: 2, 1>} : memref<100x32xf32, #tpu.memory_space<vmem>>, vector<4x32xf32>
    %c62_124 = arith.constant 62 : index
    %c0_125 = arith.constant 0 : index
    %141 = tpu.strided_load %arg20[%c62_124, %c0_125] {strides = array<i32: 2, 1>} : memref<100x32xf32, #tpu.memory_space<vmem>>, vector<4x32xf32>
    %142 = arith.maximumf %140, %141 : vector<4x32xf32>
    %143 = arith.maximumf %139, %142 : vector<4x32xf32>
    %c26 = arith.constant 26 : index
    %c0_126 = arith.constant 0 : index
    %144 = vector.load %arg21[%c26, %c0_126] : memref<50x32xf32, #tpu.memory_space<vmem>>, vector<4x32xf32>
    tpu.vector_store %arg21[%c26, %c0_126], %143 {strides = array<i32>} : memref<50x32xf32, #tpu.memory_space<vmem>>, vector<4x32xf32>,
    %c71 = arith.constant 71 : index
    %c0_127 = arith.constant 0 : index
    %145 = tpu.strided_load %arg20[%c71, %c0_127] {strides = array<i32: 2, 1>} : memref<100x32xf32, #tpu.memory_space<vmem>>, vector<4x32xf32>
    %c72_128 = arith.constant 72 : index
    %c0_129 = arith.constant 0 : index
    %146 = tpu.strided_load %arg20[%c72_128, %c0_129] {strides = array<i32: 2, 1>} : memref<100x32xf32, #tpu.memory_space<vmem>>, vector<4x32xf32>
    %147 = arith.maximumf %145, %146 : vector<4x32xf32>
    %c81_130 = arith.constant 81 : index
    %c0_131 = arith.constant 0 : index
    %148 = tpu.strided_load %arg20[%c81_130, %c0_131] {strides = array<i32: 2, 1>} : memref<100x32xf32, #tpu.memory_space<vmem>>, vector<4x32xf32>
    %c82_132 = arith.constant 82 : index
    %c0_133 = arith.constant 0 : index
    %149 = tpu.strided_load %arg20[%c82_132, %c0_133] {strides = array<i32: 2, 1>} : memref<100x32xf32, #tpu.memory_space<vmem>>, vector<4x32xf32>
    %150 = arith.maximumf %148, %149 : vector<4x32xf32>
    %151 = arith.maximumf %147, %150 : vector<4x32xf32>
    %c32_134 = arith.constant 32 : index
    %c0_135 = arith.constant 0 : index
    %152 = vector.load %arg21[%c32_134, %c0_135] : memref<50x32xf32, #tpu.memory_space<vmem>>, vector<4x32xf32>
    tpu.vector_store %arg21[%c32_134, %c0_135], %151 {strides = array<i32>} : memref<50x32xf32, #tpu.memory_space<vmem>>, vector<4x32xf32>,
    %c0_136 = arith.constant 0 : index
    %c0_137 = arith.constant 0 : index
    %153 = vector.load %arg21[%c0_136, %c0_137] : memref<50x32xf32, #tpu.memory_space<vmem>>, vector<36x32xf32>
    %154 = arith.truncf %153 : vector<36x32xf32> to vector<36x32xbf16>
    %c0_138 = arith.constant 0 : index
    %c0_139 = arith.constant 0 : index
    %155 = vector.load %arg22[%c0_138, %c0_139] : memref<36x288xbf16, #tpu.memory_space<vmem>>, vector<36x32xbf16>
    tpu.vector_store %arg22[%c0_138, %c0_139], %154 {strides = array<i32>} : memref<36x288xbf16, #tpu.memory_space<vmem>>, vector<36x32xbf16>,
    %c1_140 = arith.constant 1 : index
    %c0_141 = arith.constant 0 : index
    %156 = vector.load %arg21[%c1_140, %c0_141] : memref<50x32xf32, #tpu.memory_space<vmem>>, vector<36x32xf32>
    %157 = arith.truncf %156 : vector<36x32xf32> to vector<36x32xbf16>
    %c0_142 = arith.constant 0 : index
    %c32_143 = arith.constant 32 : index
    %158 = vector.load %arg22[%c0_142, %c32_143] : memref<36x288xbf16, #tpu.memory_space<vmem>>, vector<36x32xbf16>
    tpu.vector_store %arg22[%c0_142, %c32_143], %157 {strides = array<i32>} : memref<36x288xbf16, #tpu.memory_space<vmem>>, vector<36x32xbf16>,
    %c2_144 = arith.constant 2 : index
    %c0_145 = arith.constant 0 : index
    %159 = vector.load %arg21[%c2_144, %c0_145] : memref<50x32xf32, #tpu.memory_space<vmem>>, vector<36x32xf32>
    %160 = arith.truncf %159 : vector<36x32xf32> to vector<36x32xbf16>
    %c0_146 = arith.constant 0 : index
    %c64_147 = arith.constant 64 : index
    %161 = vector.load %arg22[%c0_146, %c64_147] : memref<36x288xbf16, #tpu.memory_space<vmem>>, vector<36x32xbf16>
    tpu.vector_store %arg22[%c0_146, %c64_147], %160 {strides = array<i32>} : memref<36x288xbf16, #tpu.memory_space<vmem>>, vector<36x32xbf16>,
    %c6 = arith.constant 6 : index
    %c0_148 = arith.constant 0 : index
    %162 = vector.load %arg21[%c6, %c0_148] : memref<50x32xf32, #tpu.memory_space<vmem>>, vector<36x32xf32>
    %163 = arith.truncf %162 : vector<36x32xf32> to vector<36x32xbf16>
    %c0_149 = arith.constant 0 : index
    %c96_150 = arith.constant 96 : index
    %164 = vector.load %arg22[%c0_149, %c96_150] : memref<36x288xbf16, #tpu.memory_space<vmem>>, vector<36x32xbf16>
    tpu.vector_store %arg22[%c0_149, %c96_150], %163 {strides = array<i32>} : memref<36x288xbf16, #tpu.memory_space<vmem>>, vector<36x32xbf16>,
    %c7 = arith.constant 7 : index
    %c0_151 = arith.constant 0 : index
    %165 = vector.load %arg21[%c7, %c0_151] : memref<50x32xf32, #tpu.memory_space<vmem>>, vector<36x32xf32>
    %166 = arith.truncf %165 : vector<36x32xf32> to vector<36x32xbf16>
    %c0_152 = arith.constant 0 : index
    %c128_153 = arith.constant 128 : index
    %167 = vector.load %arg22[%c0_152, %c128_153] : memref<36x288xbf16, #tpu.memory_space<vmem>>, vector<36x32xbf16>
    tpu.vector_store %arg22[%c0_152, %c128_153], %166 {strides = array<i32>} : memref<36x288xbf16, #tpu.memory_space<vmem>>, vector<36x32xbf16>,
    %c8 = arith.constant 8 : index
    %c0_154 = arith.constant 0 : index
    %168 = vector.load %arg21[%c8, %c0_154] : memref<50x32xf32, #tpu.memory_space<vmem>>, vector<36x32xf32>
    %169 = arith.truncf %168 : vector<36x32xf32> to vector<36x32xbf16>
    %c0_155 = arith.constant 0 : index
    %c160_156 = arith.constant 160 : index
    %170 = vector.load %arg22[%c0_155, %c160_156] : memref<36x288xbf16, #tpu.memory_space<vmem>>, vector<36x32xbf16>
    tpu.vector_store %arg22[%c0_155, %c160_156], %169 {strides = array<i32>} : memref<36x288xbf16, #tpu.memory_space<vmem>>, vector<36x32xbf16>,
    %c12_157 = arith.constant 12 : index
    %c0_158 = arith.constant 0 : index
    %171 = vector.load %arg21[%c12_157, %c0_158] : memref<50x32xf32, #tpu.memory_space<vmem>>, vector<36x32xf32>
    %172 = arith.truncf %171 : vector<36x32xf32> to vector<36x32xbf16>
    %c0_159 = arith.constant 0 : index
    %c192_160 = arith.constant 192 : index
    %173 = vector.load %arg22[%c0_159, %c192_160] : memref<36x288xbf16, #tpu.memory_space<vmem>>, vector<36x32xbf16>
    tpu.vector_store %arg22[%c0_159, %c192_160], %172 {strides = array<i32>} : memref<36x288xbf16, #tpu.memory_space<vmem>>, vector<36x32xbf16>,
    %c13 = arith.constant 13 : index
    %c0_161 = arith.constant 0 : index
    %174 = vector.load %arg21[%c13, %c0_161] : memref<50x32xf32, #tpu.memory_space<vmem>>, vector<36x32xf32>
    %175 = arith.truncf %174 : vector<36x32xf32> to vector<36x32xbf16>
    %c0_162 = arith.constant 0 : index
    %c224_163 = arith.constant 224 : index
    %176 = vector.load %arg22[%c0_162, %c224_163] : memref<36x288xbf16, #tpu.memory_space<vmem>>, vector<36x32xbf16>
    tpu.vector_store %arg22[%c0_162, %c224_163], %175 {strides = array<i32>} : memref<36x288xbf16, #tpu.memory_space<vmem>>, vector<36x32xbf16>,
    %c14_164 = arith.constant 14 : index
    %c0_165 = arith.constant 0 : index
    %177 = vector.load %arg21[%c14_164, %c0_165] : memref<50x32xf32, #tpu.memory_space<vmem>>, vector<36x32xf32>
    %178 = arith.truncf %177 : vector<36x32xf32> to vector<36x32xbf16>
    %c0_166 = arith.constant 0 : index
    %c256 = arith.constant 256 : index
    %179 = vector.load %arg22[%c0_166, %c256] : memref<36x288xbf16, #tpu.memory_space<vmem>>, vector<36x32xbf16>
    tpu.vector_store %arg22[%c0_166, %c256], %178 {strides = array<i32>} : memref<36x288xbf16, #tpu.memory_space<vmem>>, vector<36x32xbf16>,
    %c0_167 = arith.constant 0 : index
    %c0_168 = arith.constant 0 : index
    %180 = vector.load %arg22[%c0_167, %c0_168] : memref<36x288xbf16, #tpu.memory_space<vmem>>, vector<36x288xbf16>
    %c0_169 = arith.constant 0 : index
    %c0_170 = arith.constant 0 : index
    %181 = vector.load %arg8[%c0_169, %c0_170] : memref<288x64xbf16, #tpu.memory_space<vmem>>, vector<288x64xbf16>
    %cst_171 = arith.constant dense<0.000000e+00> : vector<36x64xf32>
    %182 = tpu.matmul %180, %181, %cst_171 {dimension_numbers = #tpu.dot_dimension_numbers<[1], [0], [0], [1], [0, 0, 1, 1], [], []>} : vector<36x288xbf16>, vector<288x64xbf16>, vector<36x64xf32> -> vector<36x64xf32>
    %c0_172 = arith.constant 0 : index
    %c0_173 = arith.constant 0 : index
    %183 = vector.load %arg9[%c0_172, %c0_173] : memref<1x64xf32, #tpu.memory_space<vmem>>, vector<1x64xf32>
    %184 = vector.broadcast %183 : vector<1x64xf32> to vector<36x64xf32>
    %185 = arith.mulf %182, %184 : vector<36x64xf32>
    %c0_174 = arith.constant 0 : index
    %c0_175 = arith.constant 0 : index
    %186 = vector.load %arg10[%c0_174, %c0_175] : memref<1x64xf32, #tpu.memory_space<vmem>>, vector<1x64xf32>
    %187 = vector.broadcast %186 : vector<1x64xf32> to vector<36x64xf32>
    %188 = arith.addf %185, %187 : vector<36x64xf32>
    %cst_176 = arith.constant 0.000000e+00 : f32
    %189 = vector.broadcast %cst_176 : f32 to vector<36x64xf32>
    %190 = arith.maximumf %188, %189 : vector<36x64xf32>
    %c0_177 = arith.constant 0 : index
    %c0_178 = arith.constant 0 : index
    %191 = vector.load %arg23[%c0_177, %c0_178] : memref<36x64xf32, #tpu.memory_space<vmem>>, vector<36x64xf32>
    tpu.vector_store %arg23[%c0_177, %c0_178], %190 {strides = array<i32>} : memref<36x64xf32, #tpu.memory_space<vmem>>, vector<36x64xf32>,
    %c7_179 = arith.constant 7 : index
    %c0_180 = arith.constant 0 : index
    %192 = tpu.strided_load %arg23[%c7_179, %c0_180] {strides = array<i32: 2, 1>} : memref<36x64xf32, #tpu.memory_space<vmem>>, vector<2x64xf32>
    %c8_181 = arith.constant 8 : index
    %c0_182 = arith.constant 0 : index
    %193 = tpu.strided_load %arg23[%c8_181, %c0_182] {strides = array<i32: 2, 1>} : memref<36x64xf32, #tpu.memory_space<vmem>>, vector<2x64xf32>
    %194 = arith.maximumf %192, %193 : vector<2x64xf32>
    %c13_183 = arith.constant 13 : index
    %c0_184 = arith.constant 0 : index
    %195 = tpu.strided_load %arg23[%c13_183, %c0_184] {strides = array<i32: 2, 1>} : memref<36x64xf32, #tpu.memory_space<vmem>>, vector<2x64xf32>
    %c14_185 = arith.constant 14 : index
    %c0_186 = arith.constant 0 : index
    %196 = tpu.strided_load %arg23[%c14_185, %c0_186] {strides = array<i32: 2, 1>} : memref<36x64xf32, #tpu.memory_space<vmem>>, vector<2x64xf32>
    %197 = arith.maximumf %195, %196 : vector<2x64xf32>
    %198 = arith.maximumf %194, %197 : vector<2x64xf32>
    %c10_187 = arith.constant 10 : index
    %c0_188 = arith.constant 0 : index
    %199 = vector.load %arg24[%c10_187, %c0_188] : memref<26x64xf32, #tpu.memory_space<vmem>>, vector<2x64xf32>
    tpu.vector_store %arg24[%c10_187, %c0_188], %198 {strides = array<i32>} : memref<26x64xf32, #tpu.memory_space<vmem>>, vector<2x64xf32>,
    %c19 = arith.constant 19 : index
    %c0_189 = arith.constant 0 : index
    %200 = tpu.strided_load %arg23[%c19, %c0_189] {strides = array<i32: 2, 1>} : memref<36x64xf32, #tpu.memory_space<vmem>>, vector<2x64xf32>
    %c20_190 = arith.constant 20 : index
    %c0_191 = arith.constant 0 : index
    %201 = tpu.strided_load %arg23[%c20_190, %c0_191] {strides = array<i32: 2, 1>} : memref<36x64xf32, #tpu.memory_space<vmem>>, vector<2x64xf32>
    %202 = arith.maximumf %200, %201 : vector<2x64xf32>
    %c25 = arith.constant 25 : index
    %c0_192 = arith.constant 0 : index
    %203 = tpu.strided_load %arg23[%c25, %c0_192] {strides = array<i32: 2, 1>} : memref<36x64xf32, #tpu.memory_space<vmem>>, vector<2x64xf32>
    %c26_193 = arith.constant 26 : index
    %c0_194 = arith.constant 0 : index
    %204 = tpu.strided_load %arg23[%c26_193, %c0_194] {strides = array<i32: 2, 1>} : memref<36x64xf32, #tpu.memory_space<vmem>>, vector<2x64xf32>
    %205 = arith.maximumf %203, %204 : vector<2x64xf32>
    %206 = arith.maximumf %202, %205 : vector<2x64xf32>
    %c14_195 = arith.constant 14 : index
    %c0_196 = arith.constant 0 : index
    %207 = vector.load %arg24[%c14_195, %c0_196] : memref<26x64xf32, #tpu.memory_space<vmem>>, vector<2x64xf32>
    tpu.vector_store %arg24[%c14_195, %c0_196], %206 {strides = array<i32>} : memref<26x64xf32, #tpu.memory_space<vmem>>, vector<2x64xf32>,
    %c0_197 = arith.constant 0 : index
    %c0_198 = arith.constant 0 : index
    %208 = vector.load %arg24[%c0_197, %c0_198] : memref<26x64xf32, #tpu.memory_space<vmem>>, vector<16x64xf32>
    %209 = arith.truncf %208 : vector<16x64xf32> to vector<16x64xbf16>
    %c0_199 = arith.constant 0 : index
    %c0_200 = arith.constant 0 : index
    %210 = vector.load %arg25[%c0_199, %c0_200] : memref<16x576xbf16, #tpu.memory_space<vmem>>, vector<16x64xbf16>
    tpu.vector_store %arg25[%c0_199, %c0_200], %209 {strides = array<i32>} : memref<16x576xbf16, #tpu.memory_space<vmem>>, vector<16x64xbf16>,
    %c1_201 = arith.constant 1 : index
    %c0_202 = arith.constant 0 : index
    %211 = vector.load %arg24[%c1_201, %c0_202] : memref<26x64xf32, #tpu.memory_space<vmem>>, vector<16x64xf32>
    %212 = arith.truncf %211 : vector<16x64xf32> to vector<16x64xbf16>
    %c0_203 = arith.constant 0 : index
    %c64_204 = arith.constant 64 : index
    %213 = vector.load %arg25[%c0_203, %c64_204] : memref<16x576xbf16, #tpu.memory_space<vmem>>, vector<16x64xbf16>
    tpu.vector_store %arg25[%c0_203, %c64_204], %212 {strides = array<i32>} : memref<16x576xbf16, #tpu.memory_space<vmem>>, vector<16x64xbf16>,
    %c2_205 = arith.constant 2 : index
    %c0_206 = arith.constant 0 : index
    %214 = vector.load %arg24[%c2_205, %c0_206] : memref<26x64xf32, #tpu.memory_space<vmem>>, vector<16x64xf32>
    %215 = arith.truncf %214 : vector<16x64xf32> to vector<16x64xbf16>
    %c0_207 = arith.constant 0 : index
    %c128_208 = arith.constant 128 : index
    %216 = vector.load %arg25[%c0_207, %c128_208] : memref<16x576xbf16, #tpu.memory_space<vmem>>, vector<16x64xbf16>
    tpu.vector_store %arg25[%c0_207, %c128_208], %215 {strides = array<i32>} : memref<16x576xbf16, #tpu.memory_space<vmem>>, vector<16x64xbf16>,
    %c4 = arith.constant 4 : index
    %c0_209 = arith.constant 0 : index
    %217 = vector.load %arg24[%c4, %c0_209] : memref<26x64xf32, #tpu.memory_space<vmem>>, vector<16x64xf32>
    %218 = arith.truncf %217 : vector<16x64xf32> to vector<16x64xbf16>
    %c0_210 = arith.constant 0 : index
    %c192_211 = arith.constant 192 : index
    %219 = vector.load %arg25[%c0_210, %c192_211] : memref<16x576xbf16, #tpu.memory_space<vmem>>, vector<16x64xbf16>
    tpu.vector_store %arg25[%c0_210, %c192_211], %218 {strides = array<i32>} : memref<16x576xbf16, #tpu.memory_space<vmem>>, vector<16x64xbf16>,
    %c5 = arith.constant 5 : index
    %c0_212 = arith.constant 0 : index
    %220 = vector.load %arg24[%c5, %c0_212] : memref<26x64xf32, #tpu.memory_space<vmem>>, vector<16x64xf32>
    %221 = arith.truncf %220 : vector<16x64xf32> to vector<16x64xbf16>
    %c0_213 = arith.constant 0 : index
    %c256_214 = arith.constant 256 : index
    %222 = vector.load %arg25[%c0_213, %c256_214] : memref<16x576xbf16, #tpu.memory_space<vmem>>, vector<16x64xbf16>
    tpu.vector_store %arg25[%c0_213, %c256_214], %221 {strides = array<i32>} : memref<16x576xbf16, #tpu.memory_space<vmem>>, vector<16x64xbf16>,
    %c6_215 = arith.constant 6 : index
    %c0_216 = arith.constant 0 : index
    %223 = vector.load %arg24[%c6_215, %c0_216] : memref<26x64xf32, #tpu.memory_space<vmem>>, vector<16x64xf32>
    %224 = arith.truncf %223 : vector<16x64xf32> to vector<16x64xbf16>
    %c0_217 = arith.constant 0 : index
    %c320 = arith.constant 320 : index
    %225 = vector.load %arg25[%c0_217, %c320] : memref<16x576xbf16, #tpu.memory_space<vmem>>, vector<16x64xbf16>
    tpu.vector_store %arg25[%c0_217, %c320], %224 {strides = array<i32>} : memref<16x576xbf16, #tpu.memory_space<vmem>>, vector<16x64xbf16>,
    %c8_218 = arith.constant 8 : index
    %c0_219 = arith.constant 0 : index
    %226 = vector.load %arg24[%c8_218, %c0_219] : memref<26x64xf32, #tpu.memory_space<vmem>>, vector<16x64xf32>
    %227 = arith.truncf %226 : vector<16x64xf32> to vector<16x64xbf16>
    %c0_220 = arith.constant 0 : index
    %c384 = arith.constant 384 : index
    %228 = vector.load %arg25[%c0_220, %c384] : memref<16x576xbf16, #tpu.memory_space<vmem>>, vector<16x64xbf16>
    tpu.vector_store %arg25[%c0_220, %c384], %227 {strides = array<i32>} : memref<16x576xbf16, #tpu.memory_space<vmem>>, vector<16x64xbf16>,
    %c9 = arith.constant 9 : index
    %c0_221 = arith.constant 0 : index
    %229 = vector.load %arg24[%c9, %c0_221] : memref<26x64xf32, #tpu.memory_space<vmem>>, vector<16x64xf32>
    %230 = arith.truncf %229 : vector<16x64xf32> to vector<16x64xbf16>
    %c0_222 = arith.constant 0 : index
    %c448 = arith.constant 448 : index
    %231 = vector.load %arg25[%c0_222, %c448] : memref<16x576xbf16, #tpu.memory_space<vmem>>, vector<16x64xbf16>
    tpu.vector_store %arg25[%c0_222, %c448], %230 {strides = array<i32>} : memref<16x576xbf16, #tpu.memory_space<vmem>>, vector<16x64xbf16>,
    %c10_223 = arith.constant 10 : index
    %c0_224 = arith.constant 0 : index
    %232 = vector.load %arg24[%c10_223, %c0_224] : memref<26x64xf32, #tpu.memory_space<vmem>>, vector<16x64xf32>
    %233 = arith.truncf %232 : vector<16x64xf32> to vector<16x64xbf16>
    %c0_225 = arith.constant 0 : index
    %c512 = arith.constant 512 : index
    %234 = vector.load %arg25[%c0_225, %c512] : memref<16x576xbf16, #tpu.memory_space<vmem>>, vector<16x64xbf16>
    tpu.vector_store %arg25[%c0_225, %c512], %233 {strides = array<i32>} : memref<16x576xbf16, #tpu.memory_space<vmem>>, vector<16x64xbf16>,
    %c0_226 = arith.constant 0 : index
    %c0_227 = arith.constant 0 : index
    %235 = vector.load %arg25[%c0_226, %c0_227] : memref<16x576xbf16, #tpu.memory_space<vmem>>, vector<16x576xbf16>
    %c0_228 = arith.constant 0 : index
    %c0_229 = arith.constant 0 : index
    %236 = vector.load %arg11[%c0_228, %c0_229] : memref<576x512xbf16, #tpu.memory_space<vmem>>, vector<576x512xbf16>
    %cst_230 = arith.constant dense<0.000000e+00> : vector<16x512xf32>
    %237 = tpu.matmul %235, %236, %cst_230 {dimension_numbers = #tpu.dot_dimension_numbers<[1], [0], [0], [1], [0, 0, 1, 1], [], []>} : vector<16x576xbf16>, vector<576x512xbf16>, vector<16x512xf32> -> vector<16x512xf32>
    %c0_231 = arith.constant 0 : index
    %c0_232 = arith.constant 0 : index
    %238 = vector.load %arg12[%c0_231, %c0_232] : memref<1x512xf32, #tpu.memory_space<vmem>>, vector<1x512xf32>
    %239 = vector.broadcast %238 : vector<1x512xf32> to vector<16x512xf32>
    %240 = arith.mulf %237, %239 : vector<16x512xf32>
    %c0_233 = arith.constant 0 : index
    %c0_234 = arith.constant 0 : index
    %241 = vector.load %arg13[%c0_233, %c0_234] : memref<1x512xf32, #tpu.memory_space<vmem>>, vector<1x512xf32>
    %242 = vector.broadcast %241 : vector<1x512xf32> to vector<16x512xf32>
    %243 = arith.addf %240, %242 : vector<16x512xf32>
    %cst_235 = arith.constant 0.000000e+00 : f32
    %244 = vector.broadcast %cst_235 : f32 to vector<16x512xf32>
    %245 = arith.maximumf %243, %244 : vector<16x512xf32>
    %c0_236 = arith.constant 0 : index
    %c0_237 = arith.constant 0 : index
    %246 = vector.load %arg26[%c0_236, %c0_237] : memref<16x512xf32, #tpu.memory_space<vmem>>, vector<16x512xf32>
    tpu.vector_store %arg26[%c0_236, %c0_237], %245 {strides = array<i32>} : memref<16x512xf32, #tpu.memory_space<vmem>>, vector<16x512xf32>,
    %c5_238 = arith.constant 5 : index
    %c0_239 = arith.constant 0 : index
    %247 = vector.load %arg26[%c5_238, %c0_239] : memref<16x512xf32, #tpu.memory_space<vmem>>, vector<1x512xf32>
    %c6_240 = arith.constant 6 : index
    %c0_241 = arith.constant 0 : index
    %248 = vector.load %arg26[%c6_240, %c0_241] : memref<16x512xf32, #tpu.memory_space<vmem>>, vector<1x512xf32>
    %249 = arith.maximumf %247, %248 : vector<1x512xf32>
    %c9_242 = arith.constant 9 : index
    %c0_243 = arith.constant 0 : index
    %250 = vector.load %arg26[%c9_242, %c0_243] : memref<16x512xf32, #tpu.memory_space<vmem>>, vector<1x512xf32>
    %c10_244 = arith.constant 10 : index
    %c0_245 = arith.constant 0 : index
    %251 = vector.load %arg26[%c10_244, %c0_245] : memref<16x512xf32, #tpu.memory_space<vmem>>, vector<1x512xf32>
    %252 = arith.maximumf %250, %251 : vector<1x512xf32>
    %253 = arith.maximumf %249, %252 : vector<1x512xf32>
    %254 = arith.truncf %253 : vector<1x512xf32> to vector<1x512xbf16>
    %c0_246 = arith.constant 0 : index
    %c0_247 = arith.constant 0 : index
    %255 = vector.load %arg14[%c0_246, %c0_247] : memref<512x128xbf16, #tpu.memory_space<vmem>>, vector<512x128xbf16>
    %cst_248 = arith.constant dense<0.000000e+00> : vector<1x128xf32>
    %256 = tpu.matmul %254, %255, %cst_248 {dimension_numbers = #tpu.dot_dimension_numbers<[1], [0], [0], [1], [0, 0, 1, 1], [], []>} : vector<1x512xbf16>, vector<512x128xbf16>, vector<1x128xf32> -> vector<1x128xf32>
    %c0_249 = arith.constant 0 : index
    %c0_250 = arith.constant 0 : index
    %257 = vector.load %arg15[%c0_249, %c0_250] : memref<1x128xf32, #tpu.memory_space<vmem>>, vector<1x128xf32>
    %258 = arith.addf %256, %257 : vector<1x128xf32>
    %c0_251 = arith.constant 0 : index
    %c0_252 = arith.constant 0 : index
    %c0_253 = arith.constant 0 : index
    %259 = vector.load %arg16[%c0_251, %c0_252, %c0_253] : memref<1x1x128xf32, #tpu.memory_space<vmem>>, vector<1x1x128xf32>
    %260 = vector.shape_cast %259 : vector<1x1x128xf32> to vector<1x128xf32>
    %261 = vector.shape_cast %258 : vector<1x128xf32> to vector<1x1x128xf32>
    tpu.vector_store %arg16[%c0_251, %c0_252, %c0_253], %261 {strides = array<i32>} : memref<1x1x128xf32, #tpu.memory_space<vmem>>, vector<1x1x128xf32>,
    return
  }
  func.func @transform_0(%arg0: i32) -> (i32, i32) {
    %c0_i32 = arith.constant 0 : i32
    %c0_i32_0 = arith.constant 0 : i32
    return %arg0, %c0_i32 : i32, i32
  }
  func.func @transform_1(%arg0: i32) -> (i32, i32) {
    %c0_i32 = arith.constant 0 : i32
    %c0_i32_0 = arith.constant 0 : i32
    %c0_i32_1 = arith.constant 0 : i32
    return %c0_i32, %c0_i32_0 : i32, i32
  }
  func.func @transform_2(%arg0: i32) -> (i32, i32) {
    %c0_i32 = arith.constant 0 : i32
    %c0_i32_0 = arith.constant 0 : i32
    %c0_i32_1 = arith.constant 0 : i32
    return %c0_i32, %c0_i32_0 : i32, i32
  }
  func.func @transform_3(%arg0: i32) -> (i32, i32) {
    %c0_i32 = arith.constant 0 : i32
    %c0_i32_0 = arith.constant 0 : i32
    %c0_i32_1 = arith.constant 0 : i32
    return %c0_i32, %c0_i32_0 : i32, i32
  }
  func.func @transform_4(%arg0: i32) -> (i32, i32) {
    %c0_i32 = arith.constant 0 : i32
    %c0_i32_0 = arith.constant 0 : i32
    %c0_i32_1 = arith.constant 0 : i32
    return %c0_i32, %c0_i32_0 : i32, i32
  }
  func.func @transform_5(%arg0: i32) -> (i32, i32) {
    %c0_i32 = arith.constant 0 : i32
    %c0_i32_0 = arith.constant 0 : i32
    %c0_i32_1 = arith.constant 0 : i32
    return %c0_i32, %c0_i32_0 : i32, i32
  }
  func.func @transform_6(%arg0: i32) -> (i32, i32) {
    %c0_i32 = arith.constant 0 : i32
    %c0_i32_0 = arith.constant 0 : i32
    %c0_i32_1 = arith.constant 0 : i32
    return %c0_i32, %c0_i32_0 : i32, i32
  }
  func.func @transform_7(%arg0: i32) -> (i32, i32) {
    %c0_i32 = arith.constant 0 : i32
    %c0_i32_0 = arith.constant 0 : i32
    %c0_i32_1 = arith.constant 0 : i32
    return %c0_i32, %c0_i32_0 : i32, i32
  }
  func.func @transform_8(%arg0: i32) -> (i32, i32) {
    %c0_i32 = arith.constant 0 : i32
    %c0_i32_0 = arith.constant 0 : i32
    %c0_i32_1 = arith.constant 0 : i32
    return %c0_i32, %c0_i32_0 : i32, i32
  }
  func.func @transform_9(%arg0: i32) -> (i32, i32) {
    %c0_i32 = arith.constant 0 : i32
    %c0_i32_0 = arith.constant 0 : i32
    %c0_i32_1 = arith.constant 0 : i32
    return %c0_i32, %c0_i32_0 : i32, i32
  }
  func.func @transform_10(%arg0: i32) -> (i32, i32) {
    %c0_i32 = arith.constant 0 : i32
    %c0_i32_0 = arith.constant 0 : i32
    %c0_i32_1 = arith.constant 0 : i32
    return %c0_i32, %c0_i32_0 : i32, i32
  }
  func.func @transform_11(%arg0: i32) -> (i32, i32) {
    %c0_i32 = arith.constant 0 : i32
    %c0_i32_0 = arith.constant 0 : i32
    %c0_i32_1 = arith.constant 0 : i32
    return %c0_i32, %c0_i32_0 : i32, i32
  }
  func.func @transform_12(%arg0: i32) -> (i32, i32) {
    %c0_i32 = arith.constant 0 : i32
    %c0_i32_0 = arith.constant 0 : i32
    %c0_i32_1 = arith.constant 0 : i32
    return %c0_i32, %c0_i32_0 : i32, i32
  }
  func.func @transform_13(%arg0: i32) -> (i32, i32) {
    %c0_i32 = arith.constant 0 : i32
    %c0_i32_0 = arith.constant 0 : i32
    %c0_i32_1 = arith.constant 0 : i32
    return %c0_i32, %c0_i32_0 : i32, i32
  }
  func.func @transform_14(%arg0: i32) -> (i32, i32) {
    %c0_i32 = arith.constant 0 : i32
    %c0_i32_0 = arith.constant 0 : i32
    %c0_i32_1 = arith.constant 0 : i32
    return %c0_i32, %c0_i32_0 : i32, i32
  }
  func.func @transform_15(%arg0: i32) -> (i32, i32, i32) {
    %c0_i32 = arith.constant 0 : i32
    %c0_i32_0 = arith.constant 0 : i32
    %c0_i32_1 = arith.constant 0 : i32
    return %arg0, %c0_i32, %c0_i32_0 : i32, i32, i32
  }
}

</mosaic_0001>

<llo_original>
// kernel: vgg_forward.1
$region0: #{vgg_forward.1}
  #allocation0 [shape = 'u32[]', space=smem, size = 0x4, offset = 0x4, fixed_abs, tag = 'smem constant byte address 0x4 - core index']
  #allocation1 [shape = 'u32[144,128]{1,0:T(1,128)}', space=vmem, size = 0x12000, scoped, tag = 'internal scratch']
  #allocation2 [shape = 'f32[256,16]{1,0:T(8,128)}', space=vmem, size = 0x20000, scoped, tag = 'scratch operand']
  #allocation3 [shape = 'f32[122,16]{1,0:T(8,128)}', space=vmem, size = 0x10000, scoped, tag = 'scratch operand']
  #allocation4 [shape = 'bf16[100,144]{1,0:T(8,128)(2,1)}', space=vmem, size = 0xd000, scoped, tag = 'scratch operand']
  #allocation5 [shape = 'f32[100,32]{1,0:T(8,128)}', space=vmem, size = 0xd000, scoped, tag = 'scratch operand']
  #allocation6 [shape = 'f32[50,32]{1,0:T(8,128)}', space=vmem, size = 0x7000, scoped, tag = 'scratch operand']
  #allocation7 [shape = 'bf16[36,288]{1,0:T(8,128)(2,1)}', space=vmem, size = 0x7800, scoped, tag = 'scratch operand']
  #allocation8 [shape = 'f32[36,64]{1,0:T(8,128)}', space=vmem, size = 0x5000, scoped, tag = 'scratch operand']
  #allocation9 [shape = 'f32[26,64]{1,0:T(8,128)}', space=vmem, size = 0x4000, scoped, tag = 'scratch operand']
  #allocation10 [shape = 'bf16[16,576]{1,0:T(16,128)(2,1)}', space=vmem, size = 0x5000, scoped, tag = 'scratch operand']
  #allocation11 [shape = 'f32[16,512]{1,0:T(8,128)}', space=vmem, size = 0x8000, scoped, tag = 'scratch operand']
  %s0 = inlined_call_operand.vmem [shape: bf16[512,9], index: 0, kind: input, shape index: {}]
  %s1 = inlined_call_operand.vmem [shape: bf16[9,16], index: 1, kind: input, shape index: {}]
  %s2 = inlined_call_operand.vmem [shape: f32[1,16], index: 2, kind: input, shape index: {}]
  %s3 = inlined_call_operand.vmem [shape: f32[1,16], index: 3, kind: input, shape index: {}]
  %s4 = inlined_call_operand.vmem [shape: bf16[144,32], index: 4, kind: input, shape index: {}]
  %s5 = inlined_call_operand.vmem [shape: f32[1,32], index: 5, kind: input, shape index: {}]
  %s6 = inlined_call_operand.vmem [shape: f32[1,32], index: 6, kind: input, shape index: {}]
  %s7 = inlined_call_operand.vmem [shape: bf16[288,64], index: 7, kind: input, shape index: {}]
  %s8 = inlined_call_operand.vmem [shape: f32[1,64], index: 8, kind: input, shape index: {}]
  %s9 = inlined_call_operand.vmem [shape: f32[1,64], index: 9, kind: input, shape index: {}]
  %s10 = inlined_call_operand.vmem [shape: bf16[576,512], index: 10, kind: input, shape index: {}]
  %s11 = inlined_call_operand.vmem [shape: f32[1,512], index: 11, kind: input, shape index: {}]
  %s12 = inlined_call_operand.vmem [shape: f32[1,512], index: 12, kind: input, shape index: {}]
  %s13 = inlined_call_operand.vmem [shape: bf16[512,128], index: 13, kind: input, shape index: {}]
  %s14 = inlined_call_operand.vmem [shape: f32[1,128], index: 14, kind: input, shape index: {}]
  %s15 = inlined_call_operand.hbm [shape: f32[2,1,128], index: 15, kind: output, shape index: {}]
  %s16 = sld [smem:[#allocation0]]
  $region93: #{vgg_forward.1} parent=0
    _
  %s18 = ssub.s32 1, %s16
  %s19 = scalar_select 0, %s18, %s16
  $region1: #{vgg_forward.1} parent=0
    #allocation12 [shape = 'u8[1024]{0}', space=vmem, size = 0x400, scoped, tag = 'output window, operand 0']
    #allocation13 [shape = 's32[2]{0}', space=sflag, size = 0x8, scoped, tag = 'scoped memory for vgg_forward.1']
    %20 = vsyncpa [#allocation13], 0
    %s21 = scalar_lea.sflag [#allocation13], 1
    %22 = vsyncpa %s21, 0
    loop: start=0, step=1, limit=4
    $region2: #{vgg_forward.1} parent=1 // loop_pre_header
      _
    $region3: #{vgg_forward.1} parent=1 // loop_header
      %s24 = sphi 0, %s28
      %p25 = scmp.ge.s32.totalorder %s24, 4
      %s34 = sphi 0, %s36
      %s37 = sphi 0, %s34
      %s38 = sphi 0, %s37
      %s54 = sphi 0, %s38
      %s58 = sphi 0, %s58
      %s60 = sphi 0, %s58
      %s61 = sphi 0, %s60
      %s75 = sphi 0, %s61
      %s79 = sphi 0, %s79
      %s81 = sphi 0, %s79
      %s82 = sphi 0, %s81
      %s96 = sphi 0, %s82
      %s100 = sphi 0, %s100
      %s102 = sphi 0, %s100
      %s103 = sphi 0, %s102
      %s117 = sphi 0, %s103
      %s121 = sphi 0, %s121
      %s123 = sphi 0, %s121
      %s124 = sphi 0, %s123
      %s138 = sphi 0, %s124
      %s142 = sphi 0, %s142
      %s144 = sphi 0, %s142
      %s145 = sphi 0, %s144
      %s159 = sphi 0, %s145
      %s163 = sphi 0, %s163
      %s165 = sphi 0, %s163
      %s166 = sphi 0, %s165
      %s180 = sphi 0, %s166
      %s184 = sphi 0, %s184
      %s186 = sphi 0, %s184
      %s187 = sphi 0, %s186
      %s201 = sphi 0, %s187
      %s205 = sphi 0, %s205
      %s207 = sphi 0, %s205
      %s208 = sphi 0, %s207
      %s222 = sphi 0, %s208
      %s226 = sphi 0, %s226
      %s228 = sphi 0, %s226
      %s229 = sphi 0, %s228
      %s243 = sphi 0, %s229
      %s247 = sphi 0, %s247
      %s249 = sphi 0, %s247
      %s250 = sphi 0, %s249
      %s264 = sphi 0, %s250
      %s268 = sphi 0, %s268
      %s270 = sphi 0, %s268
      %s271 = sphi 0, %s270
      %s285 = sphi 0, %s271
      %s289 = sphi 0, %s289
      %s291 = sphi 0, %s289
      %s292 = sphi 0, %s291
      %s306 = sphi 0, %s292
      %s310 = sphi 0, %s310
      %s312 = sphi 0, %s310
      %s313 = sphi 0, %s312
      %s327 = sphi 0, %s313
      %s331 = sphi 0, %s331
      %s333 = sphi 0, %s331
      %s334 = sphi 0, %s333
      %s348 = sphi 0, %s334
      %s354 = sphi 0, %s356
      %s357 = sphi 0, %s354
      %s358 = sphi 0, %s357
      %s374 = sphi 0, %s358
    $region4: #{vgg_forward.1} parent=1 // loop_header_branch
      %27 = sbr.rel (%p25) target = $region8
    $region5: #{vgg_forward.1} parent=1 // loop_body
      %s29 = ssub.s32 %s24, 1
      %s30 = ssub.s32 %s24, 2
      %s31 = sadd.s32 %s24, 1
      %s32 = ssub.s32 %s24, %s31
      %p33 = scmp.eq.s32.totalorder %s32, 0
      %s35 = sadd.s32 %s34, 1
      %s36 = scalar_select %p33, %s34, %s35
      %p39 = pneg %p33
      %p40 = scmp.eq.s32.totalorder %s24, 1
      %p41 = por %p39, %p40
      %p42 = scmp.ne.s32.totalorder %s34, %s37
      %p43 = scmp.eq.s32.totalorder %s24, 0
      %p44 = por %p42, %p43
      %p45 = scmp.ne.s32.totalorder %s34, %s37
      %p46 = scmp.eq.s32.totalorder %s29, 1
      %p47 = por %p45, %p46
      %p48 = scmp.ne.s32.totalorder %s37, %s38
      %p49 = scmp.eq.s32.totalorder %s29, 0
      %p50 = por %p48, %p49
      %p51 = scmp.ne.s32.totalorder %s37, %s38
      %p52 = scmp.eq.s32.totalorder %s30, 1
      %p53 = por %p51, %p52
      %p55 = scmp.ne.s32.totalorder %s38, %s54
      %p56 = scmp.eq.s32.totalorder %s30, 0
      %p57 = por %p55, %p56
      %s59 = sadd.s32 %s58, 1
      %p62 = scmp.eq.s32.totalorder %s24, 1
      %p63 = scmp.ne.s32.totalorder %s58, %s60
      %p64 = scmp.eq.s32.totalorder %s24, 0
      %p65 = por %p63, %p64
      %p66 = scmp.ne.s32.totalorder %s58, %s60
      %p67 = scmp.eq.s32.totalorder %s29, 1
      %p68 = por %p66, %p67
      %p69 = scmp.ne.s32.totalorder %s60, %s61
      %p70 = scmp.eq.s32.totalorder %s29, 0
      %p71 = por %p69, %p70
      %p72 = scmp.ne.s32.totalorder %s60, %s61
      %p73 = scmp.eq.s32.totalorder %s30, 1
      %p74 = por %p72, %p73
      %p76 = scmp.ne.s32.totalorder %s61, %s75
      %p77 = scmp.eq.s32.totalorder %s30, 0
      %p78 = por %p76, %p77
      %s80 = sadd.s32 %s79, 1
      %p83 = scmp.eq.s32.totalorder %s24, 1
      %p84 = scmp.ne.s32.totalorder %s79, %s81
      %p85 = scmp.eq.s32.totalorder %s24, 0
      %p86 = por %p84, %p85
      %p87 = scmp.ne.s32.totalorder %s79, %s81
      %p88 = scmp.eq.s32.totalorder %s29, 1
      %p89 = por %p87, %p88
      %p90 = scmp.ne.s32.totalorder %s81, %s82
      %p91 = scmp.eq.s32.totalorder %s29, 0
      %p92 = por %p90, %p91
      %p93 = scmp.ne.s32.totalorder %s81, %s82
      %p94 = scmp.eq.s32.totalorder %s30, 1
      %p95 = por %p93, %p94
      %p97 = scmp.ne.s32.totalorder %s82, %s96
      %p98 = scmp.eq.s32.totalorder %s30, 0
      %p99 = por %p97, %p98
      %s101 = sadd.s32 %s100, 1
      %p104 = scmp.eq.s32.totalorder %s24, 1
      %p105 = scmp.ne.s32.totalorder %s100, %s102
      %p106 = scmp.eq.s32.totalorder %s24, 0
      %p107 = por %p105, %p106
      %p108 = scmp.ne.s32.totalorder %s100, %s102
      %p109 = scmp.eq.s32.totalorder %s29, 1
      %p110 = por %p108, %p109
      %p111 = scmp.ne.s32.totalorder %s102, %s103
      %p112 = scmp.eq.s32.totalorder %s29, 0
      %p113 = por %p111, %p112
      %p114 = scmp.ne.s32.totalorder %s102, %s103
      %p115 = scmp.eq.s32.totalorder %s30, 1
      %p116 = por %p114, %p115
      %p118 = scmp.ne.s32.totalorder %s103, %s117
      %p119 = scmp.eq.s32.totalorder %s30, 0
      %p120 = por %p118, %p119
      %s122 = sadd.s32 %s121, 1
      %p125 = scmp.eq.s32.totalorder %s24, 1
      %p126 = scmp.ne.s32.totalorder %s121, %s123
      %p127 = scmp.eq.s32.totalorder %s24, 0
      %p128 = por %p126, %p127
      %p129 = scmp.ne.s32.totalorder %s121, %s123
      %p130 = scmp.eq.s32.totalorder %s29, 1
      %p131 = por %p129, %p130
      %p132 = scmp.ne.s32.totalorder %s123, %s124
      %p133 = scmp.eq.s32.totalorder %s29, 0
      %p134 = por %p132, %p133
      %p135 = scmp.ne.s32.totalorder %s123, %s124
      %p136 = scmp.eq.s32.totalorder %s30, 1
      %p137 = por %p135, %p136
      %p139 = scmp.ne.s32.totalorder %s124, %s138
      %p140 = scmp.eq.s32.totalorder %s30, 0
      %p141 = por %p139, %p140
      %s143 = sadd.s32 %s142, 1
      %p146 = scmp.eq.s32.totalorder %s24, 1
      %p147 = scmp.ne.s32.totalorder %s142, %s144
      %p148 = scmp.eq.s32.totalorder %s24, 0
      %p149 = por %p147, %p148
      %p150 = scmp.ne.s32.totalorder %s142, %s144
      %p151 = scmp.eq.s32.totalorder %s29, 1
      %p152 = por %p150, %p151
      %p153 = scmp.ne.s32.totalorder %s144, %s145
      %p154 = scmp.eq.s32.totalorder %s29, 0
      %p155 = por %p153, %p154
      %p156 = scmp.ne.s32.totalorder %s144, %s145
      %p157 = scmp.eq.s32.totalorder %s30, 1
      %p158 = por %p156, %p157
      %p160 = scmp.ne.s32.totalorder %s145, %s159
      %p161 = scmp.eq.s32.totalorder %s30, 0
      %p162 = por %p160, %p161
      %s164 = sadd.s32 %s163, 1
      %p167 = scmp.eq.s32.totalorder %s24, 1
      %p168 = scmp.ne.s32.totalorder %s163, %s165
      %p169 = scmp.eq.s32.totalorder %s24, 0
      %p170 = por %p168, %p169
      %p171 = scmp.ne.s32.totalorder %s163, %s165
      %p172 = scmp.eq.s32.totalorder %s29, 1
      %p173 = por %p171, %p172
      %p174 = scmp.ne.s32.totalorder %s165, %s166
      %p175 = scmp.eq.s32.totalorder %s29, 0
      %p176 = por %p174, %p175
      %p177 = scmp.ne.s32.totalorder %s165, %s166
      %p178 = scmp.eq.s32.totalorder %s30, 1
      %p179 = por %p177, %p178
      %p181 = scmp.ne.s32.totalorder %s166, %s180
      %p182 = scmp.eq.s32.totalorder %s30, 0
      %p183 = por %p181, %p182
      %s185 = sadd.s32 %s184, 1
      %p188 = scmp.eq.s32.totalorder %s24, 1
      %p189 = scmp.ne.s32.totalorder %s184, %s186
      %p190 = scmp.eq.s32.totalorder %s24, 0
      %p191 = por %p189, %p190
      %p192 = scmp.ne.s32.totalorder %s184, %s186
      %p193 = scmp.eq.s32.totalorder %s29, 1
      %p194 = por %p192, %p193
      %p195 = scmp.ne.s32.totalorder %s186, %s187
      %p196 = scmp.eq.s32.totalorder %s29, 0
      %p197 = por %p195, %p196
      %p198 = scmp.ne.s32.totalorder %s186, %s187
      %p199 = scmp.eq.s32.totalorder %s30, 1
      %p200 = por %p198, %p199
      %p202 = scmp.ne.s32.totalorder %s187, %s201
      %p203 = scmp.eq.s32.totalorder %s30, 0
      %p204 = por %p202, %p203
      %s206 = sadd.s32 %s205, 1
      %p209 = scmp.eq.s32.totalorder %s24, 1
      %p210 = scmp.ne.s32.totalorder %s205, %s207
      %p211 = scmp.eq.s32.totalorder %s24, 0
      %p212 = por %p210, %p211
      %p213 = scmp.ne.s32.totalorder %s205, %s207
      %p214 = scmp.eq.s32.totalorder %s29, 1
      %p215 = por %p213, %p214
      %p216 = scmp.ne.s32.totalorder %s207, %s208
      %p217 = scmp.eq.s32.totalorder %s29, 0
      %p218 = por %p216, %p217
      %p219 = scmp.ne.s32.totalorder %s207, %s208
      %p220 = scmp.eq.s32.totalorder %s30, 1
      %p221 = por %p219, %p220
      %p223 = scmp.ne.s32.totalorder %s208, %s222
      %p224 = scmp.eq.s32.totalorder %s30, 0
      %p225 = por %p223, %p224
      %s227 = sadd.s32 %s226, 1
      %p230 = scmp.eq.s32.totalorder %s24, 1
      %p231 = scmp.ne.s32.totalorder %s226, %s228
      %p232 = scmp.eq.s32.totalorder %s24, 0
      %p233 = por %p231, %p232
      %p234 = scmp.ne.s32.totalorder %s226, %s228
      %p235 = scmp.eq.s32.totalorder %s29, 1
      %p236 = por %p234, %p235
      %p237 = scmp.ne.s32.totalorder %s228, %s229
      %p238 = scmp.eq.s32.totalorder %s29, 0
      %p239 = por %p237, %p238
      %p240 = scmp.ne.s32.totalorder %s228, %s229
      %p241 = scmp.eq.s32.totalorder %s30, 1
      %p242 = por %p240, %p241
      %p244 = scmp.ne.s32.totalorder %s229, %s243
      %p245 = scmp.eq.s32.totalorder %s30, 0
      %p246 = por %p244, %p245
      %s248 = sadd.s32 %s247, 1
      %p251 = scmp.eq.s32.totalorder %s24, 1
      %p252 = scmp.ne.s32.totalorder %s247, %s249
      %p253 = scmp.eq.s32.totalorder %s24, 0
      %p254 = por %p252, %p253
      %p255 = scmp.ne.s32.totalorder %s247, %s249
      %p256 = scmp.eq.s32.totalorder %s29, 1
      %p257 = por %p255, %p256
      %p258 = scmp.ne.s32.totalorder %s249, %s250
      %p259 = scmp.eq.s32.totalorder %s29, 0
      %p260 = por %p258, %p259
      %p261 = scmp.ne.s32.totalorder %s249, %s250
      %p262 = scmp.eq.s32.totalorder %s30, 1
      %p263 = por %p261, %p262
      %p265 = scmp.ne.s32.totalorder %s250, %s264
      %p266 = scmp.eq.s32.totalorder %s30, 0
      %p267 = por %p265, %p266
      %s269 = sadd.s32 %s268, 1
      %p272 = scmp.eq.s32.totalorder %s24, 1
      %p273 = scmp.ne.s32.totalorder %s268, %s270
      %p274 = scmp.eq.s32.totalorder %s24, 0
      %p275 = por %p273, %p274
      %p276 = scmp.ne.s32.totalorder %s268, %s270
      %p277 = scmp.eq.s32.totalorder %s29, 1
      %p278 = por %p276, %p277
      %p279 = scmp.ne.s32.totalorder %s270, %s271
      %p280 = scmp.eq.s32.totalorder %s29, 0
      %p281 = por %p279, %p280
      %p282 = scmp.ne.s32.totalorder %s270, %s271
      %p283 = scmp.eq.s32.totalorder %s30, 1
      %p284 = por %p282, %p283
      %p286 = scmp.ne.s32.totalorder %s271, %s285
      %p287 = scmp.eq.s32.totalorder %s30, 0
      %p288 = por %p286, %p287
      %s290 = sadd.s32 %s289, 1
      %p293 = scmp.eq.s32.totalorder %s24, 1
      %p294 = scmp.ne.s32.totalorder %s289, %s291
      %p295 = scmp.eq.s32.totalorder %s24, 0
      %p296 = por %p294, %p295
      %p297 = scmp.ne.s32.totalorder %s289, %s291
      %p298 = scmp.eq.s32.totalorder %s29, 1
      %p299 = por %p297, %p298
      %p300 = scmp.ne.s32.totalorder %s291, %s292
      %p301 = scmp.eq.s32.totalorder %s29, 0
      %p302 = por %p300, %p301
      %p303 = scmp.ne.s32.totalorder %s291, %s292
      %p304 = scmp.eq.s32.totalorder %s30, 1
      %p305 = por %p303, %p304
      %p307 = scmp.ne.s32.totalorder %s292, %s306
      %p308 = scmp.eq.s32.totalorder %s30, 0
      %p309 = por %p307, %p308
      %s311 = sadd.s32 %s310, 1
      %p314 = scmp.eq.s32.totalorder %s24, 1
      %p315 = scmp.ne.s32.totalorder %s310, %s312
      %p316 = scmp.eq.s32.totalorder %s24, 0
      %p317 = por %p315, %p316
      %p318 = scmp.ne.s32.totalorder %s310, %s312
      %p319 = scmp.eq.s32.totalorder %s29, 1
      %p320 = por %p318, %p319
      %p321 = scmp.ne.s32.totalorder %s312, %s313
      %p322 = scmp.eq.s32.totalorder %s29, 0
      %p323 = por %p321, %p322
      %p324 = scmp.ne.s32.totalorder %s312, %s313
      %p325 = scmp.eq.s32.totalorder %s30, 1
      %p326 = por %p324, %p325
      %p328 = scmp.ne.s32.totalorder %s313, %s327
      %p329 = scmp.eq.s32.totalorder %s30, 0
      %p330 = por %p328, %p329
      %s332 = sadd.s32 %s331, 1
      %p335 = scmp.eq.s32.totalorder %s24, 1
      %p336 = scmp.ne.s32.totalorder %s331, %s333
      %p337 = scmp.eq.s32.totalorder %s24, 0
      %p338 = por %p336, %p337
      %p339 = scmp.ne.s32.totalorder %s331, %s333
      %p340 = scmp.eq.s32.totalorder %s29, 1
      %p341 = por %p339, %p340
      %p342 = scmp.ne.s32.totalorder %s333, %s334
      %p343 = scmp.eq.s32.totalorder %s29, 0
      %p344 = por %p342, %p343
      %p345 = scmp.ne.s32.totalorder %s333, %s334
      %p346 = scmp.eq.s32.totalorder %s30, 1
      %p347 = por %p345, %p346
      %p349 = scmp.ne.s32.totalorder %s334, %s348
      %p350 = scmp.eq.s32.totalorder %s30, 0
      %p351 = por %p349, %p350
      %s352 = ssub.s32 %s24, %s31
      %p353 = scmp.eq.s32.totalorder %s352, 0
      %s355 = sadd.s32 %s354, 1
      %s356 = scalar_select %p353, %s354, %s355
      %p359 = pneg %p353
      %p360 = scmp.eq.s32.totalorder %s24, 1
      %p361 = por %p359, %p360
      %p362 = scmp.ne.s32.totalorder %s354, %s357
      %p363 = scmp.eq.s32.totalorder %s24, 0
      %p364 = por %p362, %p363
      %p365 = scmp.ne.s32.totalorder %s354, %s357
      %p366 = scmp.eq.s32.totalorder %s29, 1
      %p367 = por %p365, %p366
      %p368 = scmp.ne.s32.totalorder %s357, %s358
      %p369 = scmp.eq.s32.totalorder %s29, 0
      %p370 = por %p368, %p369
      %p371 = scmp.ne.s32.totalorder %s357, %s358
      %p372 = scmp.eq.s32.totalorder %s30, 1
      %p373 = por %p371, %p372
      %p375 = scmp.ne.s32.totalorder %s358, %s374
      %p376 = scmp.eq.s32.totalorder %s30, 0
      %p377 = por %p375, %p376
      %p378 = scmp.le.s32.totalorder 1, %s24
      %p379 = scmp.lt.s32.totalorder %s24, 3
      %p380 = pnand %p378, %p379
      %p381 = pneg %p380
      // Predicated region
      $region9: #{vgg_forward.1} parent=5 // pred_check
        _
      $region10: #{vgg_forward.1} parent=5 // pred_check_branch
        %383 = sbr.rel (%p380) target = $region12
      $region11: #{vgg_forward.1} parent=5 // pred_region
        %s384 = ssub.s32 %s24, 1
        // Predicated region
        $region13: #{vgg_forward.1} parent=11 // pred_check
          %p385 = pneg %p71
        $region14: #{vgg_forward.1} parent=11 // pred_check_branch
          %387 = sbr.rel (%p385) target = $region16
        $region15: #{vgg_forward.1} parent=11 // pred_region
          _
        $region16: #{vgg_forward.1} parent=11 // pred_fallthru
          _
        // Predicated region
        $region17: #{vgg_forward.1} parent=11 // pred_check
          %p388 = pneg %p92
        $region18: #{vgg_forward.1} parent=11 // pred_check_branch
          %390 = sbr.rel (%p388) target = $region20
        $region19: #{vgg_forward.1} parent=11 // pred_region
          _
        $region20: #{vgg_forward.1} parent=11 // pred_fallthru
          _
        // Predicated region
        $region21: #{vgg_forward.1} parent=11 // pred_check
          %p391 = pneg %p113
        $region22: #{vgg_forward.1} parent=11 // pred_check_branch
          %393 = sbr.rel (%p391) target = $region24
        $region23: #{vgg_forward.1} parent=11 // pred_region
          _
        $region24: #{vgg_forward.1} parent=11 // pred_fallthru
          _
        // Predicated region
        $region25: #{vgg_forward.1} parent=11 // pred_check
          %p394 = pneg %p134
        $region26: #{vgg_forward.1} parent=11 // pred_check_branch
          %396 = sbr.rel (%p394) target = $region28
        $region27: #{vgg_forward.1} parent=11 // pred_region
          _
        $region28: #{vgg_forward.1} parent=11 // pred_fallthru
          _
        // Predicated region
        $region29: #{vgg_forward.1} parent=11 // pred_check
          %p397 = pneg %p155
        $region30: #{vgg_forward.1} parent=11 // pred_check_branch
          %399 = sbr.rel (%p397) target = $region32
        $region31: #{vgg_forward.1} parent=11 // pred_region
          _
        $region32: #{vgg_forward.1} parent=11 // pred_fallthru
          _
        // Predicated region
        $region33: #{vgg_forward.1} parent=11 // pred_check
          %p400 = pneg %p176
        $region34: #{vgg_forward.1} parent=11 // pred_check_branch
          %402 = sbr.rel (%p400) target = $region36
        $region35: #{vgg_forward.1} parent=11 // pred_region
          _
        $region36: #{vgg_forward.1} parent=11 // pred_fallthru
          _
        // Predicated region
        $region37: #{vgg_forward.1} parent=11 // pred_check
          %p403 = pneg %p197
        $region38: #{vgg_forward.1} parent=11 // pred_check_branch
          %405 = sbr.rel (%p403) target = $region40
        $region39: #{vgg_forward.1} parent=11 // pred_region
          _
        $region40: #{vgg_forward.1} parent=11 // pred_fallthru
          _
        // Predicated region
        $region41: #{vgg_forward.1} parent=11 // pred_check
          %p406 = pneg %p218
        $region42: #{vgg_forward.1} parent=11 // pred_check_branch
          %408 = sbr.rel (%p406) target = $region44
        $region43: #{vgg_forward.1} parent=11 // pred_region
          _
        $region44: #{vgg_forward.1} parent=11 // pred_fallthru
          _
        // Predicated region
        $region45: #{vgg_forward.1} parent=11 // pred_check
          %p409 = pneg %p239
        $region46: #{vgg_forward.1} parent=11 // pred_check_branch
          %411 = sbr.rel (%p409) target = $region48
        $region47: #{vgg_forward.1} parent=11 // pred_region
          _
        $region48: #{vgg_forward.1} parent=11 // pred_fallthru
          _
        // Predicated region
        $region49: #{vgg_forward.1} parent=11 // pred_check
          %p412 = pneg %p260
        $region50: #{vgg_forward.1} parent=11 // pred_check_branch
          %414 = sbr.rel (%p412) target = $region52
        $region51: #{vgg_forward.1} parent=11 // pred_region
          _
        $region52: #{vgg_forward.1} parent=11 // pred_fallthru
          _
        // Predicated region
        $region53: #{vgg_forward.1} parent=11 // pred_check
          %p415 = pneg %p281
        $region54: #{vgg_forward.1} parent=11 // pred_check_branch
          %417 = sbr.rel (%p415) target = $region56
        $region55: #{vgg_forward.1} parent=11 // pred_region
          _
        $region56: #{vgg_forward.1} parent=11 // pred_fallthru
          _
        // Predicated region
        $region57: #{vgg_forward.1} parent=11 // pred_check
          %p418 = pneg %p302
        $region58: #{vgg_forward.1} parent=11 // pred_check_branch
          %420 = sbr.rel (%p418) target = $region60
        $region59: #{vgg_forward.1} parent=11 // pred_region
          _
        $region60: #{vgg_forward.1} parent=11 // pred_fallthru
          _
        // Predicated region
        $region61: #{vgg_forward.1} parent=11 // pred_check
          %p421 = pneg %p323
        $region62: #{vgg_forward.1} parent=11 // pred_check_branch
          %423 = sbr.rel (%p421) target = $region64
        $region63: #{vgg_forward.1} parent=11 // pred_region
          _
        $region64: #{vgg_forward.1} parent=11 // pred_fallthru
          _
        // Predicated region
        $region65: #{vgg_forward.1} parent=11 // pred_check
          %p424 = pneg %p344
        $region66: #{vgg_forward.1} parent=11 // pred_check_branch
          %426 = sbr.rel (%p424) target = $region68
        $region67: #{vgg_forward.1} parent=11 // pred_region
          _
        $region68: #{vgg_forward.1} parent=11 // pred_fallthru
          _
      $region12: #{vgg_forward.1} parent=5 // pred_fallthru
        _
      %p427 = scmp.lt.s32.totalorder %s24, 2
      // Predicated region
      $region69: #{vgg_forward.1} parent=5 // pred_check
        %p428 = pneg %p427
      $region70: #{vgg_forward.1} parent=5 // pred_check_branch
        %430 = sbr.rel (%p428) target = $region72
      $region71: #{vgg_forward.1} parent=5 // pred_region
        // Predicated region
        $region73: #{vgg_forward.1} parent=71 // pred_check
          %p431 = pneg %p44
        $region74: #{vgg_forward.1} parent=71 // pred_check_branch
          %433 = sbr.rel (%p431) target = $region76
        $region75: #{vgg_forward.1} parent=71 // pred_region
          %s434 = smul.u32 32, %s24
          %p435 = scmp.lt.s32.totalorder %s434, 63
          %s436 = scalar_select %p435, %s434, 63
          %s437 = smul.addr %s436, 4
          %s438 = scalar_lea.vmem %s0, %s437
          %s439 = smul.u32 32, %s24
        $region76: #{vgg_forward.1} parent=71 // pred_fallthru
          _
      $region72: #{vgg_forward.1} parent=5 // pred_fallthru
        _
      %p440 = scmp.le.s32.totalorder 1, %s24
      %p441 = scmp.lt.s32.totalorder %s24, 3
      %p442 = pnand %p440, %p441
      %p443 = pneg %p442
      // Predicated region
      $region77: #{vgg_forward.1} parent=5 // pred_check
        _
      $region78: #{vgg_forward.1} parent=5 // pred_check_branch
        %445 = sbr.rel (%p442) target = $region80
      $region79: #{vgg_forward.1} parent=5 // pred_region
        %s446 = ssub.s32 %s24, 1
        %s447 = smul.u32 32, %s29
        %p448 = scmp.lt.s32.totalorder %s447, 63
        %s449 = scalar_select %p448, %s447, 63
        %s450 = smul.addr %s449, 4
        %s451 = scalar_lea.vmem %s0, %s450
        %p452 = pneg %p50
        %p453 = pneg %p47
        %p454 = pneg %p71
        %p455 = pneg %p68
        %p456 = pneg %p92
        %p457 = pneg %p89
        %p458 = pneg %p113
        %p459 = pneg %p110
        %p460 = pneg %p134
        %p461 = pneg %p131
        %p462 = pneg %p155
        %p463 = pneg %p152
        %p464 = pneg %p176
        %p465 = pneg %p173
        %p466 = pneg %p197
        %p467 = pneg %p194
        %p468 = pneg %p218
        %p469 = pneg %p215
        %p470 = pneg %p239
        %p471 = pneg %p236
        %p472 = pneg %p260
        %p473 = pneg %p257
        %p474 = pneg %p281
        %p475 = pneg %p278
        %p476 = pneg %p302
        %p477 = pneg %p299
        %p478 = pneg %p323
        %p479 = pneg %p320
        %p480 = pneg %p344
        %p481 = pneg %p341
        %p482 = pneg %p370
        %p483 = pneg %p367
        %s484 = sand.u32 %s357, 1
        %s485 = scalar_lea.sflag [#allocation13], %s484
        %s486 = sand.u32 %s357, 1
        %s487 = scalar_lea.vmem [#allocation12], %s486
        %s488 = smul.u32 32, %s29
        %p489 = scmp.lt.s32.totalorder %s488, 63
        %s490 = scalar_select %p489, %s488, 63
        %s491 = smul.addr %s490, 4
        %s492 = scalar_lea.vmem %s0, %s491
        %s493 = smul.u32 32, %s29
        %vm495 = vcmask 130048
        %496 = vst.msk [vmem:[#allocation3] sm:$0xff] %vm495, 0.0
        %497 = vst.msk [vmem:[#allocation3 + $0x8] sm:$0xff] %vm495, 0.0
        %498 = vst.msk [vmem:[#allocation3 + $0x10] sm:$0xff] %vm495, 0.0
        %499 = vst.msk [vmem:[#allocation3 + $0x18] sm:$0xff] %vm495, 0.0
        %500 = vst.msk [vmem:[#allocation3 + $0x20] sm:$0xff] %vm495, 0.0
        %501 = vst.msk [vmem:[#allocation3 + $0x28] sm:$0xff] %vm495, 0.0
        %502 = vst.msk [vmem:[#allocation3 + $0x30] sm:$0xff] %vm495, 0.0
        %503 = vst.msk [vmem:[#allocation3 + $0x38] sm:$0xff] %vm495, 0.0
        %504 = vst.msk [vmem:[#allocation3 + $0x40] sm:$0xff] %vm495, 0.0
        %505 = vst.msk [vmem:[#allocation3 + $0x48] sm:$0xff] %vm495, 0.0
        %506 = vst.msk [vmem:[#allocation3 + $0x50] sm:$0xff] %vm495, 0.0
        %507 = vst.msk [vmem:[#allocation3 + $0x58] sm:$0xff] %vm495, 0.0
        %508 = vst.msk [vmem:[#allocation3 + $0x60] sm:$0xff] %vm495, 0.0
        %509 = vst.msk [vmem:[#allocation3 + $0x68] sm:$0xff] %vm495, 0.0
        %510 = vst.msk [vmem:[#allocation3 + $0x70] sm:$0xff] %vm495, 0.0
        %vm511 = vcmask 123904
        %512 = vst.msk [vmem:[#allocation3 + $0x78] sm:$0x3] %vm511, 0.0
        %vm513 = vcmask 261120
        %514 = vst.msk [vmem:[#allocation6] sm:$0xff] %vm513, 0.0
        %515 = vst.msk [vmem:[#allocation6 + $0x8] sm:$0xff] %vm513, 0.0
        %516 = vst.msk [vmem:[#allocation6 + $0x10] sm:$0xff] %vm513, 0.0
        %517 = vst.msk [vmem:[#allocation6 + $0x18] sm:$0xff] %vm513, 0.0
        %518 = vst.msk [vmem:[#allocation6 + $0x20] sm:$0xff] %vm513, 0.0
        %519 = vst.msk [vmem:[#allocation6 + $0x28] sm:$0xff] %vm513, 0.0
        %vm520 = vcmask 254976
        %521 = vst.msk [vmem:[#allocation6 + $0x30] sm:$0x3] %vm520, 0.0
        %vm522 = vcmask 523264
        %523 = vst.msk [vmem:[#allocation9] sm:$0xff] %vm522, 0.0
        %524 = vst.msk [vmem:[#allocation9 + $0x8] sm:$0xff] %vm522, 0.0
        %525 = vst.msk [vmem:[#allocation9 + $0x10] sm:$0xff] %vm522, 0.0
        %vm526 = vcmask 517120
        %527 = vst.msk [vmem:[#allocation9 + $0x18] sm:$0x3] %vm526, 0.0
        %v528 = vld [vmem:[%s492] sm:$0xf]
        %v529 = vld [vmem:[%s492 + $0x4] sm:$0xf]
        %v530 = vld [vmem:[%s492 + $0x8] sm:$0xf]
        %v531 = vld [vmem:[%s492 + $0xc] sm:$0xf]
        %v532 = vld [vmem:[%s492 + $0x10] sm:$0xf]
        %v533 = vld [vmem:[%s492 + $0x14] sm:$0xf]
        %v534 = vld [vmem:[%s492 + $0x18] sm:$0xf]
        %v535 = vld [vmem:[%s492 + $0x1c] sm:$0xf]
        %v536 = vld [vmem:[%s492 + $0x20] sm:$0xf]
        %v537 = vld [vmem:[%s492 + $0x24] sm:$0xf]
        %v538 = vld [vmem:[%s492 + $0x28] sm:$0xf]
        %v539 = vld [vmem:[%s492 + $0x2c] sm:$0xf]
        %v540 = vld [vmem:[%s492 + $0x30] sm:$0xf]
        %v541 = vld [vmem:[%s492 + $0x34] sm:$0xf]
        %v542 = vld [vmem:[%s492 + $0x38] sm:$0xf]
        %v543 = vld [vmem:[%s492 + $0x3c] sm:$0xf]
        %v544 = vld [vmem:[%s492 + $0x40] sm:$0xf]
        %v545 = vld [vmem:[%s492 + $0x44] sm:$0xf]
        %v546 = vld [vmem:[%s492 + $0x48] sm:$0xf]
        %v547 = vld [vmem:[%s492 + $0x4c] sm:$0xf]
        %v548 = vld [vmem:[%s492 + $0x50] sm:$0xf]
        %v549 = vld [vmem:[%s492 + $0x54] sm:$0xf]
        %v550 = vld [vmem:[%s492 + $0x58] sm:$0xf]
        %v551 = vld [vmem:[%s492 + $0x5c] sm:$0xf]
        %v552 = vld [vmem:[%s492 + $0x60] sm:$0xf]
        %v553 = vld [vmem:[%s492 + $0x64] sm:$0xf]
        %v554 = vld [vmem:[%s492 + $0x68] sm:$0xf]
        %v555 = vld [vmem:[%s492 + $0x6c] sm:$0xf]
        %v556 = vld [vmem:[%s492 + $0x70] sm:$0xf]
        %v557 = vld [vmem:[%s492 + $0x74] sm:$0xf]
        %v558 = vld [vmem:[%s492 + $0x78] sm:$0xf]
        %v559 = vld [vmem:[%s492 + $0x7c] sm:$0xf]
        %v560 = vld [vmem:[%s1] sm:$0xf]
        %v561 = vld [vmem:[%s1 + $0x4] sm:$0x1]
        %v594 = vunpack.c.l.b16 %v528
        %v595 = vunpack.c.l.b16 %v529
        %v596 = vunpack.c.l.b16 %v530
        %v597 = vunpack.c.l.b16 %v531
        %v598 = vunpack.c.l.b16 %v532
        %v599 = vunpack.c.l.b16 %v533
        %v600 = vunpack.c.l.b16 %v534
        %v601 = vunpack.c.l.b16 %v535
        %v602 = vunpack.c.l.b16 %v536
        %v603 = vunpack.c.l.b16 %v537
        %v604 = vunpack.c.l.b16 %v538
        %v605 = vunpack.c.l.b16 %v539
        %v606 = vunpack.c.l.b16 %v540
        %v607 = vunpack.c.l.b16 %v541
        %v608 = vunpack.c.l.b16 %v542
        %v609 = vunpack.c.l.b16 %v543
        %v610 = vunpack.c.l.b16 %v544
        %v611 = vunpack.c.l.b16 %v545
        %v612 = vunpack.c.l.b16 %v546
        %v613 = vunpack.c.l.b16 %v547
        %v614 = vunpack.c.l.b16 %v548
        %v615 = vunpack.c.l.b16 %v549
        %v616 = vunpack.c.l.b16 %v550
        %v617 = vunpack.c.l.b16 %v551
        %v618 = vunpack.c.l.b16 %v552
        %v619 = vunpack.c.l.b16 %v553
        %v620 = vunpack.c.l.b16 %v554
        %v621 = vunpack.c.l.b16 %v555
        %v622 = vunpack.c.l.b16 %v556
        %v623 = vunpack.c.l.b16 %v557
        %v624 = vunpack.c.l.b16 %v558
        %v625 = vunpack.c.l.b16 %v559
        %v626 = vpack.c.b16 %v595, %v594
        %v627 = vpack.c.b16 %v597, %v596
        %v628 = vpack.c.b16 %v599, %v598
        %v629 = vpack.c.b16 %v601, %v600
        %v630 = vpack.c.b16 %v603, %v602
        %v631 = vpack.c.b16 %v605, %v604
        %v632 = vpack.c.b16 %v607, %v606
        %v633 = vpack.c.b16 %v609, %v608
        %v634 = vpack.c.b16 %v611, %v610
        %v635 = vpack.c.b16 %v613, %v612
        %v636 = vpack.c.b16 %v615, %v614
        %v637 = vpack.c.b16 %v617, %v616
        %v638 = vpack.c.b16 %v619, %v618
        %v639 = vpack.c.b16 %v621, %v620
        %v640 = vpack.c.b16 %v623, %v622
        %v641 = vpack.c.b16 %v625, %v624
        %v644 = vunpack.c.l.b16 %v560
        %v645 = vunpack.c.l.b16 %v561
        %v646 = vpack.c.b16 %v645, %v644
        %vm647 = vcmask 72704
        %v649 = vsel %vm647, %v626, 0
        %v652 = vsel %vm647, %v627, 0
        %v655 = vsel %vm647, %v628, 0
        %v658 = vsel %vm647, %v629, 0
        %v661 = vsel %vm647, %v630, 0
        %v664 = vsel %vm647, %v631, 0
        %v667 = vsel %vm647, %v632, 0
        %v670 = vsel %vm647, %v633, 0
        %v673 = vsel %vm647, %v634, 0
        %v676 = vsel %vm647, %v635, 0
        %v679 = vsel %vm647, %v636, 0
        %v682 = vsel %vm647, %v637, 0
        %v685 = vsel %vm647, %v638, 0
        %v688 = vsel %vm647, %v639, 0
        %v691 = vsel %vm647, %v640, 0
        %v694 = vsel %vm647, %v641, 0
        %vm696 = vcmask 1043456
        %vm697 = vcmask 1044480
        %v698 = vsel %vm696, 4294967295, 65535
        %v699 = vsel %vm697, %v698, 0
        %v701 = vand.u32 %v646, %v699
        %703 = vmatprep.subr.bf16.mxu0 0
        %704 = vmatpush1.bf16.msra.mxu0 %v701
        %705 = vmatprep.subr.bf16.mxu0 0
        %706 = vmatpush1.bf16.msra.mxu0 0
        %707 = vmatprep.subr.bf16.mxu0 0
        %708 = vmatpush1.bf16.msra.mxu0 0
        %709 = vmatprep.subr.bf16.mxu0 0
        %710 = vmatpush1.bf16.msra.mxu0 0
        %711 = vmatprep.subr.bf16.mxu0 0
        %712 = vmatpush1.bf16.msra.mxu0 0
        %713 = vmatprep.subr.bf16.mxu0 0
        %714 = vmatpush1.bf16.msra.mxu0 0
        %715 = vmatprep.subr.bf16.mxu0 0
        %716 = vmatpush1.bf16.msra.mxu0 0
        %717 = vmatprep.subr.bf16.mxu0 0
        %718 = vmatpush1.bf16.msra.mxu0 0
        %719 = vmatprep.subr.bf16.mxu0 0
        %720 = vmatpush1.bf16.msra.mxu0 0
        %721 = vmatprep.subr.bf16.mxu0 0
        %722 = vmatpush1.bf16.msra.mxu0 0
        %723 = vmatprep.subr.bf16.mxu0 0
        %724 = vmatpush1.bf16.msra.mxu0 0
        %725 = vmatprep.subr.bf16.mxu0 0
        %726 = vmatpush1.bf16.msra.mxu0 0
        %727 = vmatprep.subr.bf16.mxu0 0
        %728 = vmatpush1.bf16.msra.mxu0 0
        %729 = vmatprep.subr.bf16.mxu0 0
        %730 = vmatpush1.bf16.msra.mxu0 0
        %731 = vmatprep.subr.bf16.mxu0 0
        %732 = vmatpush1.bf16.msra.mxu0 0
        %733 = vmatprep.subr.bf16.mxu0 0
        %734 = vmatpush1.bf16.msra.mxu0 0
        %735 = vmatprep.mubr.bf16.mxu0 0
        %736 = vmatmul.mubr.bf16.gmra.mrb[0].mxu0 %v649
        %v737 = vpop.f32.mrb[0].mxu0
        %v738 = vadd.f32 0.0, %v737
        %v739 = vpop.f32.mrb[0].mxu0
        %v740 = vpop.f32.mrb[0].mxu0
        %v741 = vadd.f32 0.0, %v740
        %v742 = vpop.f32.mrb[0].mxu0
        %743 = vmatprep.mubr.bf16.mxu0 0
        %744 = vmatmul.mubr.bf16.gmra.mrb[0].mxu0 %v652
        %v745 = vpop.f32.mrb[0].mxu0
        %v746 = vadd.f32 0.0, %v745
        %v747 = vpop.f32.mrb[0].mxu0
        %v748 = vpop.f32.mrb[0].mxu0
        %v749 = vadd.f32 0.0, %v748
        %v750 = vpop.f32.mrb[0].mxu0
        %751 = vmatprep.mubr.bf16.mxu0 0
        %752 = vmatmul.mubr.bf16.gmra.mrb[0].mxu0 %v655
        %v753 = vpop.f32.mrb[0].mxu0
        %v754 = vadd.f32 0.0, %v753
        %v755 = vpop.f32.mrb[0].mxu0
        %v756 = vpop.f32.mrb[0].mxu0
        %v757 = vadd.f32 0.0, %v756
        %v758 = vpop.f32.mrb[0].mxu0
        %759 = vmatprep.mubr.bf16.mxu0 0
        %760 = vmatmul.mubr.bf16.gmra.mrb[0].mxu0 %v658
        %v761 = vpop.f32.mrb[0].mxu0
        %v762 = vadd.f32 0.0, %v761
        %v763 = vpop.f32.mrb[0].mxu0
        %v764 = vpop.f32.mrb[0].mxu0
        %v765 = vadd.f32 0.0, %v764
        %v766 = vpop.f32.mrb[0].mxu0
        %767 = vmatprep.mubr.bf16.mxu0 0
        %768 = vmatmul.mubr.bf16.gmra.mrb[0].mxu0 %v661
        %v769 = vpop.f32.mrb[0].mxu0
        %v770 = vadd.f32 0.0, %v769
        %v771 = vpop.f32.mrb[0].mxu0
        %v772 = vpop.f32.mrb[0].mxu0
        %v773 = vadd.f32 0.0, %v772
        %v774 = vpop.f32.mrb[0].mxu0
        %775 = vmatprep.mubr.bf16.mxu0 0
        %776 = vmatmul.mubr.bf16.gmra.mrb[0].mxu0 %v664
        %v777 = vpop.f32.mrb[0].mxu0
        %v778 = vadd.f32 0.0, %v777
        %v779 = vpop.f32.mrb[0].mxu0
        %v780 = vpop.f32.mrb[0].mxu0
        %v781 = vadd.f32 0.0, %v780
        %v782 = vpop.f32.mrb[0].mxu0
        %783 = vmatprep.mubr.bf16.mxu0 0
        %784 = vmatmul.mubr.bf16.gmra.mrb[0].mxu0 %v667
        %v785 = vpop.f32.mrb[0].mxu0
        %v786 = vadd.f32 0.0, %v785
        %v787 = vpop.f32.mrb[0].mxu0
        %v788 = vpop.f32.mrb[0].mxu0
        %v789 = vadd.f32 0.0, %v788
        %v790 = vpop.f32.mrb[0].mxu0
        %791 = vmatprep.mubr.bf16.mxu0 0
        %792 = vmatmul.mubr.bf16.gmra.mrb[0].mxu0 %v670
        %v793 = vpop.f32.mrb[0].mxu0
        %v794 = vadd.f32 0.0, %v793
        %v795 = vpop.f32.mrb[0].mxu0
        %v796 = vpop.f32.mrb[0].mxu0
        %v797 = vadd.f32 0.0, %v796
        %v798 = vpop.f32.mrb[0].mxu0
        %799 = vmatprep.mubr.bf16.mxu0 0
        %800 = vmatmul.mubr.bf16.gmra.mrb[0].mxu0 %v673
        %v801 = vpop.f32.mrb[0].mxu0
        %v802 = vadd.f32 0.0, %v801
        %v803 = vpop.f32.mrb[0].mxu0
        %v804 = vpop.f32.mrb[0].mxu0
        %v805 = vadd.f32 0.0, %v804
        %v806 = vpop.f32.mrb[0].mxu0
        %807 = vmatprep.mubr.bf16.mxu0 0
        %808 = vmatmul.mubr.bf16.gmra.mrb[0].mxu0 %v676
        %v809 = vpop.f32.mrb[0].mxu0
        %v810 = vadd.f32 0.0, %v809
        %v811 = vpop.f32.mrb[0].mxu0
        %v812 = vpop.f32.mrb[0].mxu0
        %v813 = vadd.f32 0.0, %v812
        %v814 = vpop.f32.mrb[0].mxu0
        %815 = vmatprep.mubr.bf16.mxu0 0
        %816 = vmatmul.mubr.bf16.gmra.mrb[0].mxu0 %v679
        %v817 = vpop.f32.mrb[0].mxu0
        %v818 = vadd.f32 0.0, %v817
        %v819 = vpop.f32.mrb[0].mxu0
        %v820 = vpop.f32.mrb[0].mxu0
        %v821 = vadd.f32 0.0, %v820
        %v822 = vpop.f32.mrb[0].mxu0
        %823 = vmatprep.mubr.bf16.mxu0 0
        %824 = vmatmul.mubr.bf16.gmra.mrb[0].mxu0 %v682
        %v825 = vpop.f32.mrb[0].mxu0
        %v826 = vadd.f32 0.0, %v825
        %v827 = vpop.f32.mrb[0].mxu0
        %v828 = vpop.f32.mrb[0].mxu0
        %v829 = vadd.f32 0.0, %v828
        %v830 = vpop.f32.mrb[0].mxu0
        %831 = vmatprep.mubr.bf16.mxu0 0
        %832 = vmatmul.mubr.bf16.gmra.mrb[0].mxu0 %v685
        %v833 = vpop.f32.mrb[0].mxu0
        %v834 = vadd.f32 0.0, %v833
        %v835 = vpop.f32.mrb[0].mxu0
        %v836 = vpop.f32.mrb[0].mxu0
        %v837 = vadd.f32 0.0, %v836
        %v838 = vpop.f32.mrb[0].mxu0
        %839 = vmatprep.mubr.bf16.mxu0 0
        %840 = vmatmul.mubr.bf16.gmra.mrb[0].mxu0 %v688
        %v841 = vpop.f32.mrb[0].mxu0
        %v842 = vadd.f32 0.0, %v841
        %v843 = vpop.f32.mrb[0].mxu0
        %v844 = vpop.f32.mrb[0].mxu0
        %v845 = vadd.f32 0.0, %v844
        %v846 = vpop.f32.mrb[0].mxu0
        %847 = vmatprep.mubr.bf16.mxu0 0
        %848 = vmatmul.mubr.bf16.gmra.mrb[0].mxu0 %v691
        %v849 = vpop.f32.mrb[0].mxu0
        %v850 = vadd.f32 0.0, %v849
        %v851 = vpop.f32.mrb[0].mxu0
        %v852 = vpop.f32.mrb[0].mxu0
        %v853 = vadd.f32 0.0, %v852
        %v854 = vpop.f32.mrb[0].mxu0
        %855 = vmatprep.mubr.bf16.mxu0 0
        %856 = vmatmul.mubr.bf16.gmra.mrb[0].mxu0 %v694
        %v857 = vpop.f32.mrb[0].mxu0
        %v858 = vadd.f32 0.0, %v857
        %v859 = vpop.f32.mrb[0].mxu0
        %v860 = vpop.f32.mrb[0].mxu0
        %v861 = vadd.f32 0.0, %v860
        %v862 = vpop.f32.mrb[0].mxu0
        %863 = vdwg.mxu0
        %v864 = vld [vmem:[%s2] sm:$0x1]
        %v866 = vlaneseq
        %v867 = vshrl.u32 %v866, 7
        %v868 = vsub.s32 0, %v867
        %v869 = vrot.slane %v864, %v868
        %v871 = vmul.f32 %v738, %v869
        %v872 = vmul.f32 %v741, %v869
        %v873 = vmul.f32 %v746, %v869
        %v874 = vmul.f32 %v749, %v869
        %v875 = vmul.f32 %v754, %v869
        %v876 = vmul.f32 %v757, %v869
        %v877 = vmul.f32 %v762, %v869
        %v878 = vmul.f32 %v765, %v869
        %v879 = vmul.f32 %v770, %v869
        %v880 = vmul.f32 %v773, %v869
        %v881 = vmul.f32 %v778, %v869
        %v882 = vmul.f32 %v781, %v869
        %v883 = vmul.f32 %v786, %v869
        %v884 = vmul.f32 %v789, %v869
        %v885 = vmul.f32 %v794, %v869
        %v886 = vmul.f32 %v797, %v869
        %v887 = vmul.f32 %v802, %v869
        %v888 = vmul.f32 %v805, %v869
        %v889 = vmul.f32 %v810, %v869
        %v890 = vmul.f32 %v813, %v869
        %v891 = vmul.f32 %v818, %v869
        %v892 = vmul.f32 %v821, %v869
        %v893 = vmul.f32 %v826, %v869
        %v894 = vmul.f32 %v829, %v869
        %v895 = vmul.f32 %v834, %v869
        %v896 = vmul.f32 %v837, %v869
        %v897 = vmul.f32 %v842, %v869
        %v898 = vmul.f32 %v845, %v869
        %v899 = vmul.f32 %v850, %v869
        %v900 = vmul.f32 %v853, %v869
        %v901 = vmul.f32 %v858, %v869
        %v902 = vmul.f32 %v861, %v869
        %v903 = vld [vmem:[%s3] sm:$0x1]
        %v905 = vlaneseq
        %v906 = vshrl.u32 %v905, 7
        %v907 = vsub.s32 0, %v906
        %v908 = vrot.slane %v903, %v907
        %v910 = vadd.f32 %v871, %v908
        %v911 = vadd.f32 %v872, %v908
        %v912 = vadd.f32 %v873, %v908
        %v913 = vadd.f32 %v874, %v908
        %v914 = vadd.f32 %v875, %v908
        %v915 = vadd.f32 %v876, %v908
        %v916 = vadd.f32 %v877, %v908
        %v917 = vadd.f32 %v878, %v908
        %v918 = vadd.f32 %v879, %v908
        %v919 = vadd.f32 %v880, %v908
        %v920 = vadd.f32 %v881, %v908
        %v921 = vadd.f32 %v882, %v908
        %v922 = vadd.f32 %v883, %v908
        %v923 = vadd.f32 %v884, %v908
        %v924 = vadd.f32 %v885, %v908
        %v925 = vadd.f32 %v886, %v908
        %v926 = vadd.f32 %v887, %v908
        %v927 = vadd.f32 %v888, %v908
        %v928 = vadd.f32 %v889, %v908
        %v929 = vadd.f32 %v890, %v908
        %v930 = vadd.f32 %v891, %v908
        %v931 = vadd.f32 %v892, %v908
        %v932 = vadd.f32 %v893, %v908
        %v933 = vadd.f32 %v894, %v908
        %v934 = vadd.f32 %v895, %v908
        %v935 = vadd.f32 %v896, %v908
        %v936 = vadd.f32 %v897, %v908
        %v937 = vadd.f32 %v898, %v908
        %v938 = vadd.f32 %v899, %v908
        %v939 = vadd.f32 %v900, %v908
        %v940 = vadd.f32 %v901, %v908
        %v941 = vadd.f32 %v902, %v908
        %v942 = vmax.f32 %v910, 0.0
        %v943 = vmax.f32 %v911, 0.0
        %v944 = vmax.f32 %v912, 0.0
        %v945 = vmax.f32 %v913, 0.0
        %v946 = vmax.f32 %v914, 0.0
        %v947 = vmax.f32 %v915, 0.0
        %v948 = vmax.f32 %v916, 0.0
        %v949 = vmax.f32 %v917, 0.0
        %v950 = vmax.f32 %v918, 0.0
        %v951 = vmax.f32 %v919, 0.0
        %v952 = vmax.f32 %v920, 0.0
        %v953 = vmax.f32 %v921, 0.0
        %v954 = vmax.f32 %v922, 0.0
        %v955 = vmax.f32 %v923, 0.0
        %v956 = vmax.f32 %v924, 0.0
        %v957 = vmax.f32 %v925, 0.0
        %v958 = vmax.f32 %v926, 0.0
        %v959 = vmax.f32 %v927, 0.0
        %v960 = vmax.f32 %v928, 0.0
        %v961 = vmax.f32 %v929, 0.0
        %v962 = vmax.f32 %v930, 0.0
        %v963 = vmax.f32 %v931, 0.0
        %v964 = vmax.f32 %v932, 0.0
        %v965 = vmax.f32 %v933, 0.0
        %v966 = vmax.f32 %v934, 0.0
        %v967 = vmax.f32 %v935, 0.0
        %v968 = vmax.f32 %v936, 0.0
        %v969 = vmax.f32 %v937, 0.0
        %v970 = vmax.f32 %v938, 0.0
        %v971 = vmax.f32 %v939, 0.0
        %v972 = vmax.f32 %v940, 0.0
        %v973 = vmax.f32 %v941, 0.0
        %974 = vst.msk [vmem:[#allocation2] sm:$0xff] %vm495, %v942
        %975 = vst.msk [vmem:[#allocation2 + $0x8] sm:$0xff] %vm495, %v943
        %976 = vst.msk [vmem:[#allocation2 + $0x10] sm:$0xff] %vm495, %v944
        %977 = vst.msk [vmem:[#allocation2 + $0x18] sm:$0xff] %vm495, %v945
        %978 = vst.msk [vmem:[#allocation2 + $0x20] sm:$0xff] %vm495, %v946
        %979 = vst.msk [vmem:[#allocation2 + $0x28] sm:$0xff] %vm495, %v947
        %980 = vst.msk [vmem:[#allocation2 + $0x30] sm:$0xff] %vm495, %v948
        %981 = vst.msk [vmem:[#allocation2 + $0x38] sm:$0xff] %vm495, %v949
        %982 = vst.msk [vmem:[#allocation2 + $0x40] sm:$0xff] %vm495, %v950
        %983 = vst.msk [vmem:[#allocation2 + $0x48] sm:$0xff] %vm495, %v951
        %984 = vst.msk [vmem:[#allocation2 + $0x50] sm:$0xff] %vm495, %v952
        %985 = vst.msk [vmem:[#allocation2 + $0x58] sm:$0xff] %vm495, %v953
        %986 = vst.msk [vmem:[#allocation2 + $0x60] sm:$0xff] %vm495, %v954
        %987 = vst.msk [vmem:[#allocation2 + $0x68] sm:$0xff] %vm495, %v955
        %988 = vst.msk [vmem:[#allocation2 + $0x70] sm:$0xff] %vm495, %v956
        %989 = vst.msk [vmem:[#allocation2 + $0x78] sm:$0xff] %vm495, %v957
        %990 = vst.msk [vmem:[#allocation2 + $0x80] sm:$0xff] %vm495, %v958
        %991 = vst.msk [vmem:[#allocation2 + $0x88] sm:$0xff] %vm495, %v959
        %992 = vst.msk [vmem:[#allocation2 + $0x90] sm:$0xff] %vm495, %v960
        %993 = vst.msk [vmem:[#allocation2 + $0x98] sm:$0xff] %vm495, %v961
        %994 = vst.msk [vmem:[#allocation2 + $0xa0] sm:$0xff] %vm495, %v962
        %995 = vst.msk [vmem:[#allocation2 + $0xa8] sm:$0xff] %vm495, %v963
        %996 = vst.msk [vmem:[#allocation2 + $0xb0] sm:$0xff] %vm495, %v964
        %997 = vst.msk [vmem:[#allocation2 + $0xb8] sm:$0xff] %vm495, %v965
        %998 = vst.msk [vmem:[#allocation2 + $0xc0] sm:$0xff] %vm495, %v966
        %999 = vst.msk [vmem:[#allocation2 + $0xc8] sm:$0xff] %vm495, %v967
        %1000 = vst.msk [vmem:[#allocation2 + $0xd0] sm:$0xff] %vm495, %v968
        %1001 = vst.msk [vmem:[#allocation2 + $0xd8] sm:$0xff] %vm495, %v969
        %1002 = vst.msk [vmem:[#allocation2 + $0xe0] sm:$0xff] %vm495, %v970
        %1003 = vst.msk [vmem:[#allocation2 + $0xe8] sm:$0xff] %vm495, %v971
        %1004 = vst.msk [vmem:[#allocation2 + $0xf0] sm:$0xff] %vm495, %v972
        %1005 = vst.msk [vmem:[#allocation2 + $0xf8] sm:$0xff] %vm495, %v973
        %v1006 = vld [vmem:[#allocation2] ss:$2 sm:$0xff]
        %s1007 = scalar_lea.vmem [#allocation2], 1
        %v1008 = vld [vmem:[%s1007] ss:$2 sm:$0xff]
        %v1009 = vmax.f32 %v1006, %v1008
        %s1010 = scalar_lea.vmem [#allocation2], 16
        %v1011 = vld [vmem:[%s1010] ss:$2 sm:$0xff]
        %s1012 = scalar_lea.vmem [#allocation2], 17
        %v1013 = vld [vmem:[%s1012] ss:$2 sm:$0xff]
        %v1014 = vmax.f32 %v1011, %v1013
        %v1015 = vmax.f32 %v1009, %v1014
        %1016 = vst.msk [vmem:[#allocation3 + $0x16] sm:$0xff] %vm495, %v1015
        %s1017 = scalar_lea.vmem [#allocation2], 32
        %v1018 = vld [vmem:[%s1017] ss:$2 sm:$0xff]
        %s1019 = scalar_lea.vmem [#allocation2], 33
        %v1020 = vld [vmem:[%s1019] ss:$2 sm:$0xff]
        %v1021 = vmax.f32 %v1018, %v1020
        %s1022 = scalar_lea.vmem [#allocation2], 48
        %v1023 = vld [vmem:[%s1022] ss:$2 sm:$0xff]
        %s1024 = scalar_lea.vmem [#allocation2], 49
        %v1025 = vld [vmem:[%s1024] ss:$2 sm:$0xff]
        %v1026 = vmax.f32 %v1023, %v1025
        %v1027 = vmax.f32 %v1021, %v1026
        %1028 = vst.msk [vmem:[#allocation3 + $0x20] sm:$0xff] %vm495, %v1027
        %s1029 = scalar_lea.vmem [#allocation2], 64
        %v1030 = vld [vmem:[%s1029] ss:$2 sm:$0xff]
        %s1031 = scalar_lea.vmem [#allocation2], 65
        %v1032 = vld [vmem:[%s1031] ss:$2 sm:$0xff]
        %v1033 = vmax.f32 %v1030, %v1032
        %s1034 = scalar_lea.vmem [#allocation2], 80
        %v1035 = vld [vmem:[%s1034] ss:$2 sm:$0xff]
        %s1036 = scalar_lea.vmem [#allocation2], 81
        %v1037 = vld [vmem:[%s1036] ss:$2 sm:$0xff]
        %v1038 = vmax.f32 %v1035, %v1037
        %v1039 = vmax.f32 %v1033, %v1038
        %1040 = vst.msk [vmem:[#allocation3 + $0x2a] sm:$0xff] %vm495, %v1039
        %s1041 = scalar_lea.vmem [#allocation2], 96
        %v1042 = vld [vmem:[%s1041] ss:$2 sm:$0xff]
        %s1043 = scalar_lea.vmem [#allocation2], 97
        %v1044 = vld [vmem:[%s1043] ss:$2 sm:$0xff]
        %v1045 = vmax.f32 %v1042, %v1044
        %s1046 = scalar_lea.vmem [#allocation2], 112
        %v1047 = vld [vmem:[%s1046] ss:$2 sm:$0xff]
        %s1048 = scalar_lea.vmem [#allocation2], 113
        %v1049 = vld [vmem:[%s1048] ss:$2 sm:$0xff]
        %v1050 = vmax.f32 %v1047, %v1049
        %v1051 = vmax.f32 %v1045, %v1050
        %1052 = vst.msk [vmem:[#allocation3 + $0x34] sm:$0xff] %vm495, %v1051
        %s1053 = scalar_lea.vmem [#allocation2], 128
        %v1054 = vld [vmem:[%s1053] ss:$2 sm:$0xff]
        %s1055 = scalar_lea.vmem [#allocation2], 129
        %v1056 = vld [vmem:[%s1055] ss:$2 sm:$0xff]
        %v1057 = vmax.f32 %v1054, %v1056
        %s1058 = scalar_lea.vmem [#allocation2], 144
        %v1059 = vld [vmem:[%s1058] ss:$2 sm:$0xff]
        %s1060 = scalar_lea.vmem [#allocation2], 145
        %v1061 = vld [vmem:[%s1060] ss:$2 sm:$0xff]
        %v1062 = vmax.f32 %v1059, %v1061
        %v1063 = vmax.f32 %v1057, %v1062
        %1064 = vst.msk [vmem:[#allocation3 + $0x3e] sm:$0xff] %vm495, %v1063
        %s1065 = scalar_lea.vmem [#allocation2], 160
        %v1066 = vld [vmem:[%s1065] ss:$2 sm:$0xff]
        %s1067 = scalar_lea.vmem [#allocation2], 161
        %v1068 = vld [vmem:[%s1067] ss:$2 sm:$0xff]
        %v1069 = vmax.f32 %v1066, %v1068
        %s1070 = scalar_lea.vmem [#allocation2], 176
        %v1071 = vld [vmem:[%s1070] ss:$2 sm:$0xff]
        %s1072 = scalar_lea.vmem [#allocation2], 177
        %v1073 = vld [vmem:[%s1072] ss:$2 sm:$0xff]
        %v1074 = vmax.f32 %v1071, %v1073
        %v1075 = vmax.f32 %v1069, %v1074
        %1076 = vst.msk [vmem:[#allocation3 + $0x48] sm:$0xff] %vm495, %v1075
        %s1077 = scalar_lea.vmem [#allocation2], 192
        %v1078 = vld [vmem:[%s1077] ss:$2 sm:$0xff]
        %s1079 = scalar_lea.vmem [#allocation2], 193
        %v1080 = vld [vmem:[%s1079] ss:$2 sm:$0xff]
        %v1081 = vmax.f32 %v1078, %v1080
        %s1082 = scalar_lea.vmem [#allocation2], 208
        %v1083 = vld [vmem:[%s1082] ss:$2 sm:$0xff]
        %s1084 = scalar_lea.vmem [#allocation2], 209
        %v1085 = vld [vmem:[%s1084] ss:$2 sm:$0xff]
        %v1086 = vmax.f32 %v1083, %v1085
        %v1087 = vmax.f32 %v1081, %v1086
        %1088 = vst.msk [vmem:[#allocation3 + $0x52] sm:$0xff] %vm495, %v1087
        %s1089 = scalar_lea.vmem [#allocation2], 224
        %v1090 = vld [vmem:[%s1089] ss:$2 sm:$0xff]
        %s1091 = scalar_lea.vmem [#allocation2], 225
        %v1092 = vld [vmem:[%s1091] ss:$2 sm:$0xff]
        %v1093 = vmax.f32 %v1090, %v1092
        %s1094 = scalar_lea.vmem [#allocation2], 240
        %v1095 = vld [vmem:[%s1094] ss:$2 sm:$0xff]
        %s1096 = scalar_lea.vmem [#allocation2], 241
        %v1097 = vld [vmem:[%s1096] ss:$2 sm:$0xff]
        %v1098 = vmax.f32 %v1095, %v1097
        %v1099 = vmax.f32 %v1093, %v1098
        %1100 = vst.msk [vmem:[#allocation3 + $0x5c] sm:$0xff] %vm495, %v1099
        %v1101 = vld [vmem:[#allocation3] sm:$0xff]
        %v1102 = vld [vmem:[#allocation3 + $0x8] sm:$0xff]
        %v1103 = vld [vmem:[#allocation3 + $0x10] sm:$0xff]
        %v1104 = vld [vmem:[#allocation3 + $0x18] sm:$0xff]
        %v1105 = vld [vmem:[#allocation3 + $0x20] sm:$0xff]
        %v1106 = vld [vmem:[#allocation3 + $0x28] sm:$0xff]
        %v1107 = vld [vmem:[#allocation3 + $0x30] sm:$0xff]
        %v1108 = vld [vmem:[#allocation3 + $0x38] sm:$0xff]
        %v1109 = vld [vmem:[#allocation3 + $0x40] sm:$0xff]
        %v1110 = vld [vmem:[#allocation3 + $0x48] sm:$0xff]
        %v1111 = vld [vmem:[#allocation3 + $0x50] sm:$0xff]
        %v1112 = vld [vmem:[#allocation3 + $0x58] sm:$0xff]
        %v1113 = vld [vmem:[#allocation3 + $0x60] sm:$0xf]
        %v1114 = vpack.c.bf16 %v1102, %v1101
        %v1115 = vpack.c.bf16 %v1104, %v1103
        %v1116 = vpack.c.bf16 %v1106, %v1105
        %v1117 = vpack.c.bf16 %v1108, %v1107
        %v1118 = vpack.c.bf16 %v1110, %v1109
        %v1119 = vpack.c.bf16 %v1112, %v1111
        %v1120 = vpack.c.bf16 %v1113, %v1113
        %v1128 = vunpack.c.l.b16 %v1114
        %v1129 = vunpack.c.h.b16 %v1114
        %v1130 = vunpack.c.l.b16 %v1115
        %v1131 = vunpack.c.h.b16 %v1115
        %v1132 = vunpack.c.l.b16 %v1116
        %v1133 = vunpack.c.h.b16 %v1116
        %v1134 = vunpack.c.l.b16 %v1117
        %v1135 = vunpack.c.h.b16 %v1117
        %v1136 = vunpack.c.l.b16 %v1118
        %v1137 = vunpack.c.h.b16 %v1118
        %v1138 = vunpack.c.l.b16 %v1119
        %v1139 = vunpack.c.h.b16 %v1119
        %v1140 = vunpack.c.l.b16 %v1120
        %v1141 = vpack.c.b16 %v1128, %v1128
        %v1142 = vpack.c.b16 %v1129, %v1129
        %v1143 = vpack.c.b16 %v1130, %v1130
        %v1144 = vpack.c.b16 %v1131, %v1131
        %v1145 = vpack.c.b16 %v1132, %v1132
        %v1146 = vpack.c.b16 %v1133, %v1133
        %v1147 = vpack.c.b16 %v1134, %v1134
        %v1148 = vpack.c.b16 %v1135, %v1135
        %v1149 = vpack.c.b16 %v1136, %v1136
        %v1150 = vpack.c.b16 %v1137, %v1137
        %v1151 = vpack.c.b16 %v1138, %v1138
        %v1152 = vpack.c.b16 %v1139, %v1139
        %v1153 = vpack.c.b16 %v1140, %v1140
        %vm1167 = vcmask 125952
        %1168 = vst.msk [vmem:[#allocation4] sm:$0xf] %vm1167, %v1141
        %1169 = vst.msk [vmem:[#allocation4 + $0x8] sm:$0xf] %vm1167, %v1142
        %1170 = vst.msk [vmem:[#allocation4 + $0x10] sm:$0xf] %vm1167, %v1143
        %1171 = vst.msk [vmem:[#allocation4 + $0x18] sm:$0xf] %vm1167, %v1144
        %1172 = vst.msk [vmem:[#allocation4 + $0x20] sm:$0xf] %vm1167, %v1145
        %1173 = vst.msk [vmem:[#allocation4 + $0x28] sm:$0xf] %vm1167, %v1146
        %1174 = vst.msk [vmem:[#allocation4 + $0x30] sm:$0xf] %vm1167, %v1147
        %1175 = vst.msk [vmem:[#allocation4 + $0x38] sm:$0xf] %vm1167, %v1148
        %1176 = vst.msk [vmem:[#allocation4 + $0x40] sm:$0xf] %vm1167, %v1149
        %1177 = vst.msk [vmem:[#allocation4 + $0x48] sm:$0xf] %vm1167, %v1150
        %1178 = vst.msk [vmem:[#allocation4 + $0x50] sm:$0xf] %vm1167, %v1151
        %1179 = vst.msk [vmem:[#allocation4 + $0x58] sm:$0xf] %vm1167, %v1152
        %1180 = vst.msk [vmem:[#allocation4 + $0x60] sm:$0x3] %vm511, %v1153
        %v1181 = vld [vmem:[#allocation3 + $0x1] sm:$0xff]
        %v1182 = vld [vmem:[#allocation3 + $0x9] sm:$0xff]
        %v1183 = vld [vmem:[#allocation3 + $0x11] sm:$0xff]
        %v1184 = vld [vmem:[#allocation3 + $0x19] sm:$0xff]
        %v1185 = vld [vmem:[#allocation3 + $0x21] sm:$0xff]
        %v1186 = vld [vmem:[#allocation3 + $0x29] sm:$0xff]
        %v1187 = vld [vmem:[#allocation3 + $0x31] sm:$0xff]
        %v1188 = vld [vmem:[#allocation3 + $0x39] sm:$0xff]
        %v1189 = vld [vmem:[#allocation3 + $0x41] sm:$0xff]
        %v1190 = vld [vmem:[#allocation3 + $0x49] sm:$0xff]
        %v1191 = vld [vmem:[#allocation3 + $0x51] sm:$0xff]
        %v1192 = vld [vmem:[#allocation3 + $0x59] sm:$0xff]
        %v1193 = vld [vmem:[#allocation3 + $0x61] sm:$0xf]
        %v1194 = vpack.c.bf16 %v1182, %v1181
        %v1195 = vpack.c.bf16 %v1184, %v1183
        %v1196 = vpack.c.bf16 %v1186, %v1185
        %v1197 = vpack.c.bf16 %v1188, %v1187
        %v1198 = vpack.c.bf16 %v1190, %v1189
        %v1199 = vpack.c.bf16 %v1192, %v1191
        %v1200 = vpack.c.bf16 %v1193, %v1193
        %v1208 = vunpack.c.l.b16 %v1194
        %v1209 = vunpack.c.h.b16 %v1194
        %v1210 = vunpack.c.l.b16 %v1195
        %v1211 = vunpack.c.h.b16 %v1195
        %v1212 = vunpack.c.l.b16 %v1196
        %v1213 = vunpack.c.h.b16 %v1196
        %v1214 = vunpack.c.l.b16 %v1197
        %v1215 = vunpack.c.h.b16 %v1197
        %v1216 = vunpack.c.l.b16 %v1198
        %v1217 = vunpack.c.h.b16 %v1198
        %v1218 = vunpack.c.l.b16 %v1199
        %v1219 = vunpack.c.h.b16 %v1199
        %v1220 = vunpack.c.l.b16 %v1200
        %v1221 = vpack.c.b16 %v1208, %v1208
        %v1222 = vpack.c.b16 %v1209, %v1209
        %v1223 = vpack.c.b16 %v1210, %v1210
        %v1224 = vpack.c.b16 %v1211, %v1211
        %v1225 = vpack.c.b16 %v1212, %v1212
        %v1226 = vpack.c.b16 %v1213, %v1213
        %v1227 = vpack.c.b16 %v1214, %v1214
        %v1228 = vpack.c.b16 %v1215, %v1215
        %v1229 = vpack.c.b16 %v1216, %v1216
        %v1230 = vpack.c.b16 %v1217, %v1217
        %v1231 = vpack.c.b16 %v1218, %v1218
        %v1232 = vpack.c.b16 %v1219, %v1219
        %v1233 = vpack.c.b16 %v1220, %v1220
        %1234 = vrot.lane.b32.xlu0 %v1221, 16
        %v1235 = vpop.permute.xlu0 %1234
        %1236 = vrot.lane.b32.xlu0 %v1222, 16
        %v1237 = vpop.permute.xlu0 %1236
        %1238 = vrot.lane.b32.xlu0 %v1223, 16
        %v1239 = vpop.permute.xlu0 %1238
        %1240 = vrot.lane.b32.xlu0 %v1224, 16
        %v1241 = vpop.permute.xlu0 %1240
        %1242 = vrot.lane.b32.xlu0 %v1225, 16
        %v1243 = vpop.permute.xlu0 %1242
        %1244 = vrot.lane.b32.xlu0 %v1226, 16
        %v1245 = vpop.permute.xlu0 %1244
        %1246 = vrot.lane.b32.xlu0 %v1227, 16
        %v1247 = vpop.permute.xlu0 %1246
        %1248 = vrot.lane.b32.xlu0 %v1228, 16
        %v1249 = vpop.permute.xlu0 %1248
        %1250 = vrot.lane.b32.xlu0 %v1229, 16
        %v1251 = vpop.permute.xlu0 %1250
        %1252 = vrot.lane.b32.xlu0 %v1230, 16
        %v1253 = vpop.permute.xlu0 %1252
        %1254 = vrot.lane.b32.xlu0 %v1231, 16
        %v1255 = vpop.permute.xlu0 %1254
        %1256 = vrot.lane.b32.xlu0 %v1232, 16
        %v1257 = vpop.permute.xlu0 %1256
        %1258 = vrot.lane.b32.xlu0 %v1233, 16
        %v1259 = vpop.permute.xlu0 %1258
        %vm1273 = vcmask 257152
        %1274 = vst.msk [vmem:[#allocation4] sm:$0xf] %vm1273, %v1235
        %1275 = vst.msk [vmem:[#allocation4 + $0x8] sm:$0xf] %vm1273, %v1237
        %1276 = vst.msk [vmem:[#allocation4 + $0x10] sm:$0xf] %vm1273, %v1239
        %1277 = vst.msk [vmem:[#allocation4 + $0x18] sm:$0xf] %vm1273, %v1241
        %1278 = vst.msk [vmem:[#allocation4 + $0x20] sm:$0xf] %vm1273, %v1243
        %1279 = vst.msk [vmem:[#allocation4 + $0x28] sm:$0xf] %vm1273, %v1245
        %1280 = vst.msk [vmem:[#allocation4 + $0x30] sm:$0xf] %vm1273, %v1247
        %1281 = vst.msk [vmem:[#allocation4 + $0x38] sm:$0xf] %vm1273, %v1249
        %1282 = vst.msk [vmem:[#allocation4 + $0x40] sm:$0xf] %vm1273, %v1251
        %1283 = vst.msk [vmem:[#allocation4 + $0x48] sm:$0xf] %vm1273, %v1253
        %1284 = vst.msk [vmem:[#allocation4 + $0x50] sm:$0xf] %vm1273, %v1255
        %1285 = vst.msk [vmem:[#allocation4 + $0x58] sm:$0xf] %vm1273, %v1257
        %vm1286 = vcmask 255104
        %1287 = vst.msk [vmem:[#allocation4 + $0x60] sm:$0x3] %vm1286, %v1259
        %v1288 = vld [vmem:[#allocation3 + $0x2] sm:$0xff]
        %v1289 = vld [vmem:[#allocation3 + $0xa] sm:$0xff]
        %v1290 = vld [vmem:[#allocation3 + $0x12] sm:$0xff]
        %v1291 = vld [vmem:[#allocation3 + $0x1a] sm:$0xff]
        %v1292 = vld [vmem:[#allocation3 + $0x22] sm:$0xff]
        %v1293 = vld [vmem:[#allocation3 + $0x2a] sm:$0xff]
        %v1294 = vld [vmem:[#allocation3 + $0x32] sm:$0xff]
        %v1295 = vld [vmem:[#allocation3 + $0x3a] sm:$0xff]
        %v1296 = vld [vmem:[#allocation3 + $0x42] sm:$0xff]
        %v1297 = vld [vmem:[#allocation3 + $0x4a] sm:$0xff]
        %v1298 = vld [vmem:[#allocation3 + $0x52] sm:$0xff]
        %v1299 = vld [vmem:[#allocation3 + $0x5a] sm:$0xff]
        %v1300 = vld [vmem:[#allocation3 + $0x62] sm:$0xf]
        %v1301 = vpack.c.bf16 %v1289, %v1288
        %v1302 = vpack.c.bf16 %v1291, %v1290
        %v1303 = vpack.c.bf16 %v1293, %v1292
        %v1304 = vpack.c.bf16 %v1295, %v1294
        %v1305 = vpack.c.bf16 %v1297, %v1296
        %v1306 = vpack.c.bf16 %v1299, %v1298
        %v1307 = vpack.c.bf16 %v1300, %v1300
        %v1315 = vunpack.c.l.b16 %v1301
        %v1316 = vunpack.c.h.b16 %v1301
        %v1317 = vunpack.c.l.b16 %v1302
        %v1318 = vunpack.c.h.b16 %v1302
        %v1319 = vunpack.c.l.b16 %v1303
        %v1320 = vunpack.c.h.b16 %v1303
        %v1321 = vunpack.c.l.b16 %v1304
        %v1322 = vunpack.c.h.b16 %v1304
        %v1323 = vunpack.c.l.b16 %v1305
        %v1324 = vunpack.c.h.b16 %v1305
        %v1325 = vunpack.c.l.b16 %v1306
        %v1326 = vunpack.c.h.b16 %v1306
        %v1327 = vunpack.c.l.b16 %v1307
        %v1328 = vpack.c.b16 %v1315, %v1315
        %v1329 = vpack.c.b16 %v1316, %v1316
        %v1330 = vpack.c.b16 %v1317, %v1317
        %v1331 = vpack.c.b16 %v1318, %v1318
        %v1332 = vpack.c.b16 %v1319, %v1319
        %v1333 = vpack.c.b16 %v1320, %v1320
        %v1334 = vpack.c.b16 %v1321, %v1321
        %v1335 = vpack.c.b16 %v1322, %v1322
        %v1336 = vpack.c.b16 %v1323, %v1323
        %v1337 = vpack.c.b16 %v1324, %v1324
        %v1338 = vpack.c.b16 %v1325, %v1325
        %v1339 = vpack.c.b16 %v1326, %v1326
        %v1340 = vpack.c.b16 %v1327, %v1327
        %1341 = vrot.lane.b32.xlu0 %v1328, 32
        %v1342 = vpop.permute.xlu0 %1341
        %1343 = vrot.lane.b32.xlu0 %v1329, 32
        %v1344 = vpop.permute.xlu0 %1343
        %1345 = vrot.lane.b32.xlu0 %v1330, 32
        %v1346 = vpop.permute.xlu0 %1345
        %1347 = vrot.lane.b32.xlu0 %v1331, 32
        %v1348 = vpop.permute.xlu0 %1347
        %1349 = vrot.lane.b32.xlu0 %v1332, 32
        %v1350 = vpop.permute.xlu0 %1349
        %1351 = vrot.lane.b32.xlu0 %v1333, 32
        %v1352 = vpop.permute.xlu0 %1351
        %1353 = vrot.lane.b32.xlu0 %v1334, 32
        %v1354 = vpop.permute.xlu0 %1353
        %1355 = vrot.lane.b32.xlu0 %v1335, 32
        %v1356 = vpop.permute.xlu0 %1355
        %1357 = vrot.lane.b32.xlu0 %v1336, 32
        %v1358 = vpop.permute.xlu0 %1357
        %1359 = vrot.lane.b32.xlu0 %v1337, 32
        %v1360 = vpop.permute.xlu0 %1359
        %1361 = vrot.lane.b32.xlu0 %v1338, 32
        %v1362 = vpop.permute.xlu0 %1361
        %1363 = vrot.lane.b32.xlu0 %v1339, 32
        %v1364 = vpop.permute.xlu0 %1363
        %1365 = vrot.lane.b32.xlu0 %v1340, 32
        %v1366 = vpop.permute.xlu0 %1365
        %vm1380 = vcmask 388352
        %1381 = vst.msk [vmem:[#allocation4] sm:$0xf] %vm1380, %v1342
        %1382 = vst.msk [vmem:[#allocation4 + $0x8] sm:$0xf] %vm1380, %v1344
        %1383 = vst.msk [vmem:[#allocation4 + $0x10] sm:$0xf] %vm1380, %v1346
        %1384 = vst.msk [vmem:[#allocation4 + $0x18] sm:$0xf] %vm1380, %v1348
        %1385 = vst.msk [vmem:[#allocation4 + $0x20] sm:$0xf] %vm1380, %v1350
        %1386 = vst.msk [vmem:[#allocation4 + $0x28] sm:$0xf] %vm1380, %v1352
        %1387 = vst.msk [vmem:[#allocation4 + $0x30] sm:$0xf] %vm1380, %v1354
        %1388 = vst.msk [vmem:[#allocation4 + $0x38] sm:$0xf] %vm1380, %v1356
        %1389 = vst.msk [vmem:[#allocation4 + $0x40] sm:$0xf] %vm1380, %v1358
        %1390 = vst.msk [vmem:[#allocation4 + $0x48] sm:$0xf] %vm1380, %v1360
        %1391 = vst.msk [vmem:[#allocation4 + $0x50] sm:$0xf] %vm1380, %v1362
        %1392 = vst.msk [vmem:[#allocation4 + $0x58] sm:$0xf] %vm1380, %v1364
        %vm1393 = vcmask 386304
        %1394 = vst.msk [vmem:[#allocation4 + $0x60] sm:$0x3] %vm1393, %v1366
        %v1395 = vld [vmem:[#allocation3 + $0xa] sm:$0xff]
        %v1396 = vld [vmem:[#allocation3 + $0x12] sm:$0xff]
        %v1397 = vld [vmem:[#allocation3 + $0x1a] sm:$0xff]
        %v1398 = vld [vmem:[#allocation3 + $0x22] sm:$0xff]
        %v1399 = vld [vmem:[#allocation3 + $0x2a] sm:$0xff]
        %v1400 = vld [vmem:[#allocation3 + $0x32] sm:$0xff]
        %v1401 = vld [vmem:[#allocation3 + $0x3a] sm:$0xff]
        %v1402 = vld [vmem:[#allocation3 + $0x42] sm:$0xff]
        %v1403 = vld [vmem:[#allocation3 + $0x4a] sm:$0xff]
        %v1404 = vld [vmem:[#allocation3 + $0x52] sm:$0xff]
        %v1405 = vld [vmem:[#allocation3 + $0x5a] sm:$0xff]
        %v1406 = vld [vmem:[#allocation3 + $0x62] sm:$0xff]
        %v1407 = vld [vmem:[#allocation3 + $0x6a] sm:$0xf]
        %v1408 = vpack.c.bf16 %v1396, %v1395
        %v1409 = vpack.c.bf16 %v1398, %v1397
        %v1410 = vpack.c.bf16 %v1400, %v1399
        %v1411 = vpack.c.bf16 %v1402, %v1401
        %v1412 = vpack.c.bf16 %v1404, %v1403
        %v1413 = vpack.c.bf16 %v1406, %v1405
        %v1414 = vpack.c.bf16 %v1407, %v1407
        %v1422 = vunpack.c.l.b16 %v1408
        %v1423 = vunpack.c.h.b16 %v1408
        %v1424 = vunpack.c.l.b16 %v1409
        %v1425 = vunpack.c.h.b16 %v1409
        %v1426 = vunpack.c.l.b16 %v1410
        %v1427 = vunpack.c.h.b16 %v1410
        %v1428 = vunpack.c.l.b16 %v1411
        %v1429 = vunpack.c.h.b16 %v1411
        %v1430 = vunpack.c.l.b16 %v1412
        %v1431 = vunpack.c.h.b16 %v1412
        %v1432 = vunpack.c.l.b16 %v1413
        %v1433 = vunpack.c.h.b16 %v1413
        %v1434 = vunpack.c.l.b16 %v1414
        %v1435 = vpack.c.b16 %v1422, %v1422
        %v1436 = vpack.c.b16 %v1423, %v1423
        %v1437 = vpack.c.b16 %v1424, %v1424
        %v1438 = vpack.c.b16 %v1425, %v1425
        %v1439 = vpack.c.b16 %v1426, %v1426
        %v1440 = vpack.c.b16 %v1427, %v1427
        %v1441 = vpack.c.b16 %v1428, %v1428
        %v1442 = vpack.c.b16 %v1429, %v1429
        %v1443 = vpack.c.b16 %v1430, %v1430
        %v1444 = vpack.c.b16 %v1431, %v1431
        %v1445 = vpack.c.b16 %v1432, %v1432
        %v1446 = vpack.c.b16 %v1433, %v1433
        %v1447 = vpack.c.b16 %v1434, %v1434
        %1448 = vrot.lane.b32.xlu0 %v1435, 48
        %v1449 = vpop.permute.xlu0 %1448
        %1450 = vrot.lane.b32.xlu0 %v1436, 48
        %v1451 = vpop.permute.xlu0 %1450
        %1452 = vrot.lane.b32.xlu0 %v1437, 48
        %v1453 = vpop.permute.xlu0 %1452
        %1454 = vrot.lane.b32.xlu0 %v1438, 48
        %v1455 = vpop.permute.xlu0 %1454
        %1456 = vrot.lane.b32.xlu0 %v1439, 48
        %v1457 = vpop.permute.xlu0 %1456
        %1458 = vrot.lane.b32.xlu0 %v1440, 48
        %v1459 = vpop.permute.xlu0 %1458
        %1460 = vrot.lane.b32.xlu0 %v1441, 48
        %v1461 = vpop.permute.xlu0 %1460
        %1462 = vrot.lane.b32.xlu0 %v1442, 48
        %v1463 = vpop.permute.xlu0 %1462
        %1464 = vrot.lane.b32.xlu0 %v1443, 48
        %v1465 = vpop.permute.xlu0 %1464
        %1466 = vrot.lane.b32.xlu0 %v1444, 48
        %v1467 = vpop.permute.xlu0 %1466
        %1468 = vrot.lane.b32.xlu0 %v1445, 48
        %v1469 = vpop.permute.xlu0 %1468
        %1470 = vrot.lane.b32.xlu0 %v1446, 48
        %v1471 = vpop.permute.xlu0 %1470
        %1472 = vrot.lane.b32.xlu0 %v1447, 48
        %v1473 = vpop.permute.xlu0 %1472
        %vm1487 = vcmask 519552
        %1488 = vst.msk [vmem:[#allocation4] sm:$0xf] %vm1487, %v1449
        %1489 = vst.msk [vmem:[#allocation4 + $0x8] sm:$0xf] %vm1487, %v1451
        %1490 = vst.msk [vmem:[#allocation4 + $0x10] sm:$0xf] %vm1487, %v1453
        %1491 = vst.msk [vmem:[#allocation4 + $0x18] sm:$0xf] %vm1487, %v1455
        %1492 = vst.msk [vmem:[#allocation4 + $0x20] sm:$0xf] %vm1487, %v1457
        %1493 = vst.msk [vmem:[#allocation4 + $0x28] sm:$0xf] %vm1487, %v1459
        %1494 = vst.msk [vmem:[#allocation4 + $0x30] sm:$0xf] %vm1487, %v1461
        %1495 = vst.msk [vmem:[#allocation4 + $0x38] sm:$0xf] %vm1487, %v1463
        %1496 = vst.msk [vmem:[#allocation4 + $0x40] sm:$0xf] %vm1487, %v1465
        %1497 = vst.msk [vmem:[#allocation4 + $0x48] sm:$0xf] %vm1487, %v1467
        %1498 = vst.msk [vmem:[#allocation4 + $0x50] sm:$0xf] %vm1487, %v1469
        %1499 = vst.msk [vmem:[#allocation4 + $0x58] sm:$0xf] %vm1487, %v1471
        %vm1500 = vcmask 517504
        %1501 = vst.msk [vmem:[#allocation4 + $0x60] sm:$0x3] %vm1500, %v1473
        %v1502 = vld [vmem:[#allocation3 + $0xb] sm:$0xff]
        %v1503 = vld [vmem:[#allocation3 + $0x13] sm:$0xff]
        %v1504 = vld [vmem:[#allocation3 + $0x1b] sm:$0xff]
        %v1505 = vld [vmem:[#allocation3 + $0x23] sm:$0xff]
        %v1506 = vld [vmem:[#allocation3 + $0x2b] sm:$0xff]
        %v1507 = vld [vmem:[#allocation3 + $0x33] sm:$0xff]
        %v1508 = vld [vmem:[#allocation3 + $0x3b] sm:$0xff]
        %v1509 = vld [vmem:[#allocation3 + $0x43] sm:$0xff]
        %v1510 = vld [vmem:[#allocation3 + $0x4b] sm:$0xff]
        %v1511 = vld [vmem:[#allocation3 + $0x53] sm:$0xff]
        %v1512 = vld [vmem:[#allocation3 + $0x5b] sm:$0xff]
        %v1513 = vld [vmem:[#allocation3 + $0x63] sm:$0xff]
        %v1514 = vld [vmem:[#allocation3 + $0x6b] sm:$0xf]
        %v1515 = vpack.c.bf16 %v1503, %v1502
        %v1516 = vpack.c.bf16 %v1505, %v1504
        %v1517 = vpack.c.bf16 %v1507, %v1506
        %v1518 = vpack.c.bf16 %v1509, %v1508
        %v1519 = vpack.c.bf16 %v1511, %v1510
        %v1520 = vpack.c.bf16 %v1513, %v1512
        %v1521 = vpack.c.bf16 %v1514, %v1514
        %v1529 = vunpack.c.l.b16 %v1515
        %v1530 = vunpack.c.h.b16 %v1515
        %v1531 = vunpack.c.l.b16 %v1516
        %v1532 = vunpack.c.h.b16 %v1516
        %v1533 = vunpack.c.l.b16 %v1517
        %v1534 = vunpack.c.h.b16 %v1517
        %v1535 = vunpack.c.l.b16 %v1518
        %v1536 = vunpack.c.h.b16 %v1518
        %v1537 = vunpack.c.l.b16 %v1519
        %v1538 = vunpack.c.h.b16 %v1519
        %v1539 = vunpack.c.l.b16 %v1520
        %v1540 = vunpack.c.h.b16 %v1520
        %v1541 = vunpack.c.l.b16 %v1521
        %v1542 = vpack.c.b16 %v1529, %v1529
        %v1543 = vpack.c.b16 %v1530, %v1530
        %v1544 = vpack.c.b16 %v1531, %v1531
        %v1545 = vpack.c.b16 %v1532, %v1532
        %v1546 = vpack.c.b16 %v1533, %v1533
        %v1547 = vpack.c.b16 %v1534, %v1534
        %v1548 = vpack.c.b16 %v1535, %v1535
        %v1549 = vpack.c.b16 %v1536, %v1536
        %v1550 = vpack.c.b16 %v1537, %v1537
        %v1551 = vpack.c.b16 %v1538, %v1538
        %v1552 = vpack.c.b16 %v1539, %v1539
        %v1553 = vpack.c.b16 %v1540, %v1540
        %v1554 = vpack.c.b16 %v1541, %v1541
        %1555 = vrot.lane.b32.xlu0 %v1542, 64
        %v1556 = vpop.permute.xlu0 %1555
        %1557 = vrot.lane.b32.xlu0 %v1543, 64
        %v1558 = vpop.permute.xlu0 %1557
        %1559 = vrot.lane.b32.xlu0 %v1544, 64
        %v1560 = vpop.permute.xlu0 %1559
        %1561 = vrot.lane.b32.xlu0 %v1545, 64
        %v1562 = vpop.permute.xlu0 %1561
        %1563 = vrot.lane.b32.xlu0 %v1546, 64
        %v1564 = vpop.permute.xlu0 %1563
        %1565 = vrot.lane.b32.xlu0 %v1547, 64
        %v1566 = vpop.permute.xlu0 %1565
        %1567 = vrot.lane.b32.xlu0 %v1548, 64
        %v1568 = vpop.permute.xlu0 %1567
        %1569 = vrot.lane.b32.xlu0 %v1549, 64
        %v1570 = vpop.permute.xlu0 %1569
        %1571 = vrot.lane.b32.xlu0 %v1550, 64
        %v1572 = vpop.permute.xlu0 %1571
        %1573 = vrot.lane.b32.xlu0 %v1551, 64
        %v1574 = vpop.permute.xlu0 %1573
        %1575 = vrot.lane.b32.xlu0 %v1552, 64
        %v1576 = vpop.permute.xlu0 %1575
        %1577 = vrot.lane.b32.xlu0 %v1553, 64
        %v1578 = vpop.permute.xlu0 %1577
        %1579 = vrot.lane.b32.xlu0 %v1554, 64
        %v1580 = vpop.permute.xlu0 %1579
        %vm1594 = vcmask 650752
        %1595 = vst.msk [vmem:[#allocation4] sm:$0xf] %vm1594, %v1556
        %1596 = vst.msk [vmem:[#allocation4 + $0x8] sm:$0xf] %vm1594, %v1558
        %1597 = vst.msk [vmem:[#allocation4 + $0x10] sm:$0xf] %vm1594, %v1560
        %1598 = vst.msk [vmem:[#allocation4 + $0x18] sm:$0xf] %vm1594, %v1562
        %1599 = vst.msk [vmem:[#allocation4 + $0x20] sm:$0xf] %vm1594, %v1564
        %1600 = vst.msk [vmem:[#allocation4 + $0x28] sm:$0xf] %vm1594, %v1566
        %1601 = vst.msk [vmem:[#allocation4 + $0x30] sm:$0xf] %vm1594, %v1568
        %1602 = vst.msk [vmem:[#allocation4 + $0x38] sm:$0xf] %vm1594, %v1570
        %1603 = vst.msk [vmem:[#allocation4 + $0x40] sm:$0xf] %vm1594, %v1572
        %1604 = vst.msk [vmem:[#allocation4 + $0x48] sm:$0xf] %vm1594, %v1574
        %1605 = vst.msk [vmem:[#allocation4 + $0x50] sm:$0xf] %vm1594, %v1576
        %1606 = vst.msk [vmem:[#allocation4 + $0x58] sm:$0xf] %vm1594, %v1578
        %vm1607 = vcmask 648704
        %1608 = vst.msk [vmem:[#allocation4 + $0x60] sm:$0x3] %vm1607, %v1580
        %v1609 = vld [vmem:[#allocation3 + $0xc] sm:$0xff]
        %v1610 = vld [vmem:[#allocation3 + $0x14] sm:$0xff]
        %v1611 = vld [vmem:[#allocation3 + $0x1c] sm:$0xff]
        %v1612 = vld [vmem:[#allocation3 + $0x24] sm:$0xff]
        %v1613 = vld [vmem:[#allocation3 + $0x2c] sm:$0xff]
        %v1614 = vld [vmem:[#allocation3 + $0x34] sm:$0xff]
        %v1615 = vld [vmem:[#allocation3 + $0x3c] sm:$0xff]
        %v1616 = vld [vmem:[#allocation3 + $0x44] sm:$0xff]
        %v1617 = vld [vmem:[#allocation3 + $0x4c] sm:$0xff]
        %v1618 = vld [vmem:[#allocation3 + $0x54] sm:$0xff]
        %v1619 = vld [vmem:[#allocation3 + $0x5c] sm:$0xff]
        %v1620 = vld [vmem:[#allocation3 + $0x64] sm:$0xff]
        %v1621 = vld [vmem:[#allocation3 + $0x6c] sm:$0xf]
        %v1622 = vpack.c.bf16 %v1610, %v1609
        %v1623 = vpack.c.bf16 %v1612, %v1611
        %v1624 = vpack.c.bf16 %v1614, %v1613
        %v1625 = vpack.c.bf16 %v1616, %v1615
        %v1626 = vpack.c.bf16 %v1618, %v1617
        %v1627 = vpack.c.bf16 %v1620, %v1619
        %v1628 = vpack.c.bf16 %v1621, %v1621
        %v1636 = vunpack.c.l.b16 %v1622
        %v1637 = vunpack.c.h.b16 %v1622
        %v1638 = vunpack.c.l.b16 %v1623
        %v1639 = vunpack.c.h.b16 %v1623
        %v1640 = vunpack.c.l.b16 %v1624
        %v1641 = vunpack.c.h.b16 %v1624
        %v1642 = vunpack.c.l.b16 %v1625
        %v1643 = vunpack.c.h.b16 %v1625
        %v1644 = vunpack.c.l.b16 %v1626
        %v1645 = vunpack.c.h.b16 %v1626
        %v1646 = vunpack.c.l.b16 %v1627
        %v1647 = vunpack.c.h.b16 %v1627
        %v1648 = vunpack.c.l.b16 %v1628
        %v1649 = vpack.c.b16 %v1636, %v1636
        %v1650 = vpack.c.b16 %v1637, %v1637
        %v1651 = vpack.c.b16 %v1638, %v1638
        %v1652 = vpack.c.b16 %v1639, %v1639
        %v1653 = vpack.c.b16 %v1640, %v1640
        %v1654 = vpack.c.b16 %v1641, %v1641
        %v1655 = vpack.c.b16 %v1642, %v1642
        %v1656 = vpack.c.b16 %v1643, %v1643
        %v1657 = vpack.c.b16 %v1644, %v1644
        %v1658 = vpack.c.b16 %v1645, %v1645
        %v1659 = vpack.c.b16 %v1646, %v1646
        %v1660 = vpack.c.b16 %v1647, %v1647
        %v1661 = vpack.c.b16 %v1648, %v1648
        %1662 = vrot.lane.b32.xlu0 %v1649, 80
        %v1663 = vpop.permute.xlu0 %1662
        %1664 = vrot.lane.b32.xlu0 %v1650, 80
        %v1665 = vpop.permute.xlu0 %1664
        %1666 = vrot.lane.b32.xlu0 %v1651, 80
        %v1667 = vpop.permute.xlu0 %1666
        %1668 = vrot.lane.b32.xlu0 %v1652, 80
        %v1669 = vpop.permute.xlu0 %1668
        %1670 = vrot.lane.b32.xlu0 %v1653, 80
        %v1671 = vpop.permute.xlu0 %1670
        %1672 = vrot.lane.b32.xlu0 %v1654, 80
        %v1673 = vpop.permute.xlu0 %1672
        %1674 = vrot.lane.b32.xlu0 %v1655, 80
        %v1675 = vpop.permute.xlu0 %1674
        %1676 = vrot.lane.b32.xlu0 %v1656, 80
        %v1677 = vpop.permute.xlu0 %1676
        %1678 = vrot.lane.b32.xlu0 %v1657, 80
        %v1679 = vpop.permute.xlu0 %1678
        %1680 = vrot.lane.b32.xlu0 %v1658, 80
        %v1681 = vpop.permute.xlu0 %1680
        %1682 = vrot.lane.b32.xlu0 %v1659, 80
        %v1683 = vpop.permute.xlu0 %1682
        %1684 = vrot.lane.b32.xlu0 %v1660, 80
        %v1685 = vpop.permute.xlu0 %1684
        %1686 = vrot.lane.b32.xlu0 %v1661, 80
        %v1687 = vpop.permute.xlu0 %1686
        %vm1701 = vcmask 781952
        %1702 = vst.msk [vmem:[#allocation4] sm:$0xf] %vm1701, %v1663
        %1703 = vst.msk [vmem:[#allocation4 + $0x8] sm:$0xf] %vm1701, %v1665
        %1704 = vst.msk [vmem:[#allocation4 + $0x10] sm:$0xf] %vm1701, %v1667
        %1705 = vst.msk [vmem:[#allocation4 + $0x18] sm:$0xf] %vm1701, %v1669
        %1706 = vst.msk [vmem:[#allocation4 + $0x20] sm:$0xf] %vm1701, %v1671
        %1707 = vst.msk [vmem:[#allocation4 + $0x28] sm:$0xf] %vm1701, %v1673
        %1708 = vst.msk [vmem:[#allocation4 + $0x30] sm:$0xf] %vm1701, %v1675
        %1709 = vst.msk [vmem:[#allocation4 + $0x38] sm:$0xf] %vm1701, %v1677
        %1710 = vst.msk [vmem:[#allocation4 + $0x40] sm:$0xf] %vm1701, %v1679
        %1711 = vst.msk [vmem:[#allocation4 + $0x48] sm:$0xf] %vm1701, %v1681
        %1712 = vst.msk [vmem:[#allocation4 + $0x50] sm:$0xf] %vm1701, %v1683
        %1713 = vst.msk [vmem:[#allocation4 + $0x58] sm:$0xf] %vm1701, %v1685
        %vm1714 = vcmask 779904
        %1715 = vst.msk [vmem:[#allocation4 + $0x60] sm:$0x3] %vm1714, %v1687
        %v1716 = vld [vmem:[#allocation3 + $0x14] sm:$0xff]
        %v1717 = vld [vmem:[#allocation3 + $0x1c] sm:$0xff]
        %v1718 = vld [vmem:[#allocation3 + $0x24] sm:$0xff]
        %v1719 = vld [vmem:[#allocation3 + $0x2c] sm:$0xff]
        %v1720 = vld [vmem:[#allocation3 + $0x34] sm:$0xff]
        %v1721 = vld [vmem:[#allocation3 + $0x3c] sm:$0xff]
        %v1722 = vld [vmem:[#allocation3 + $0x44] sm:$0xff]
        %v1723 = vld [vmem:[#allocation3 + $0x4c] sm:$0xff]
        %v1724 = vld [vmem:[#allocation3 + $0x54] sm:$0xff]
        %v1725 = vld [vmem:[#allocation3 + $0x5c] sm:$0xff]
        %v1726 = vld [vmem:[#allocation3 + $0x64] sm:$0xff]
        %v1727 = vld [vmem:[#allocation3 + $0x6c] sm:$0xff]
        %v1728 = vld [vmem:[#allocation3 + $0x74] sm:$0xf]
        %v1729 = vpack.c.bf16 %v1717, %v1716
        %v1730 = vpack.c.bf16 %v1719, %v1718
        %v1731 = vpack.c.bf16 %v1721, %v1720
        %v1732 = vpack.c.bf16 %v1723, %v1722
        %v1733 = vpack.c.bf16 %v1725, %v1724
        %v1734 = vpack.c.bf16 %v1727, %v1726
        %v1735 = vpack.c.bf16 %v1728, %v1728
        %v1743 = vunpack.c.l.b16 %v1729
        %v1744 = vunpack.c.h.b16 %v1729
        %v1745 = vunpack.c.l.b16 %v1730
        %v1746 = vunpack.c.h.b16 %v1730
        %v1747 = vunpack.c.l.b16 %v1731
        %v1748 = vunpack.c.h.b16 %v1731
        %v1749 = vunpack.c.l.b16 %v1732
        %v1750 = vunpack.c.h.b16 %v1732
        %v1751 = vunpack.c.l.b16 %v1733
        %v1752 = vunpack.c.h.b16 %v1733
        %v1753 = vunpack.c.l.b16 %v1734
        %v1754 = vunpack.c.h.b16 %v1734
        %v1755 = vunpack.c.l.b16 %v1735
        %v1756 = vpack.c.b16 %v1743, %v1743
        %v1757 = vpack.c.b16 %v1744, %v1744
        %v1758 = vpack.c.b16 %v1745, %v1745
        %v1759 = vpack.c.b16 %v1746, %v1746
        %v1760 = vpack.c.b16 %v1747, %v1747
        %v1761 = vpack.c.b16 %v1748, %v1748
        %v1762 = vpack.c.b16 %v1749, %v1749
        %v1763 = vpack.c.b16 %v1750, %v1750
        %v1764 = vpack.c.b16 %v1751, %v1751
        %v1765 = vpack.c.b16 %v1752, %v1752
        %v1766 = vpack.c.b16 %v1753, %v1753
        %v1767 = vpack.c.b16 %v1754, %v1754
        %v1768 = vpack.c.b16 %v1755, %v1755
        %1769 = vrot.lane.b32.xlu0 %v1756, 96
        %v1770 = vpop.permute.xlu0 %1769
        %1771 = vrot.lane.b32.xlu0 %v1757, 96
        %v1772 = vpop.permute.xlu0 %1771
        %1773 = vrot.lane.b32.xlu0 %v1758, 96
        %v1774 = vpop.permute.xlu0 %1773
        %1775 = vrot.lane.b32.xlu0 %v1759, 96
        %v1776 = vpop.permute.xlu0 %1775
        %1777 = vrot.lane.b32.xlu0 %v1760, 96
        %v1778 = vpop.permute.xlu0 %1777
        %1779 = vrot.lane.b32.xlu0 %v1761, 96
        %v1780 = vpop.permute.xlu0 %1779
        %1781 = vrot.lane.b32.xlu0 %v1762, 96
        %v1782 = vpop.permute.xlu0 %1781
        %1783 = vrot.lane.b32.xlu0 %v1763, 96
        %v1784 = vpop.permute.xlu0 %1783
        %1785 = vrot.lane.b32.xlu0 %v1764, 96
        %v1786 = vpop.permute.xlu0 %1785
        %1787 = vrot.lane.b32.xlu0 %v1765, 96
        %v1788 = vpop.permute.xlu0 %1787
        %1789 = vrot.lane.b32.xlu0 %v1766, 96
        %v1790 = vpop.permute.xlu0 %1789
        %1791 = vrot.lane.b32.xlu0 %v1767, 96
        %v1792 = vpop.permute.xlu0 %1791
        %1793 = vrot.lane.b32.xlu0 %v1768, 96
        %v1794 = vpop.permute.xlu0 %1793
        %vm1808 = vcmask 913152
        %1809 = vst.msk [vmem:[#allocation4] sm:$0xf] %vm1808, %v1770
        %1810 = vst.msk [vmem:[#allocation4 + $0x8] sm:$0xf] %vm1808, %v1772
        %1811 = vst.msk [vmem:[#allocation4 + $0x10] sm:$0xf] %vm1808, %v1774
        %1812 = vst.msk [vmem:[#allocation4 + $0x18] sm:$0xf] %vm1808, %v1776
        %1813 = vst.msk [vmem:[#allocation4 + $0x20] sm:$0xf] %vm1808, %v1778
        %1814 = vst.msk [vmem:[#allocation4 + $0x28] sm:$0xf] %vm1808, %v1780
        %1815 = vst.msk [vmem:[#allocation4 + $0x30] sm:$0xf] %vm1808, %v1782
        %1816 = vst.msk [vmem:[#allocation4 + $0x38] sm:$0xf] %vm1808, %v1784
        %1817 = vst.msk [vmem:[#allocation4 + $0x40] sm:$0xf] %vm1808, %v1786
        %1818 = vst.msk [vmem:[#allocation4 + $0x48] sm:$0xf] %vm1808, %v1788
        %1819 = vst.msk [vmem:[#allocation4 + $0x50] sm:$0xf] %vm1808, %v1790
        %1820 = vst.msk [vmem:[#allocation4 + $0x58] sm:$0xf] %vm1808, %v1792
        %vm1821 = vcmask 911104
        %1822 = vst.msk [vmem:[#allocation4 + $0x60] sm:$0x3] %vm1821, %v1794
        %v1823 = vld [vmem:[#allocation3 + $0x15] sm:$0xff]
        %v1824 = vld [vmem:[#allocation3 + $0x1d] sm:$0xff]
        %v1825 = vld [vmem:[#allocation3 + $0x25] sm:$0xff]
        %v1826 = vld [vmem:[#allocation3 + $0x2d] sm:$0xff]
        %v1827 = vld [vmem:[#allocation3 + $0x35] sm:$0xff]
        %v1828 = vld [vmem:[#allocation3 + $0x3d] sm:$0xff]
        %v1829 = vld [vmem:[#allocation3 + $0x45] sm:$0xff]
        %v1830 = vld [vmem:[#allocation3 + $0x4d] sm:$0xff]
        %v1831 = vld [vmem:[#allocation3 + $0x55] sm:$0xff]
        %v1832 = vld [vmem:[#allocation3 + $0x5d] sm:$0xff]
        %v1833 = vld [vmem:[#allocation3 + $0x65] sm:$0xff]
        %v1834 = vld [vmem:[#allocation3 + $0x6d] sm:$0xff]
        %v1835 = vld [vmem:[#allocation3 + $0x75] sm:$0xf]
        %v1836 = vpack.c.bf16 %v1824, %v1823
        %v1837 = vpack.c.bf16 %v1826, %v1825
        %v1838 = vpack.c.bf16 %v1828, %v1827
        %v1839 = vpack.c.bf16 %v1830, %v1829
        %v1840 = vpack.c.bf16 %v1832, %v1831
        %v1841 = vpack.c.bf16 %v1834, %v1833
        %v1842 = vpack.c.bf16 %v1835, %v1835
        %v1850 = vunpack.c.l.b16 %v1836
        %v1851 = vunpack.c.h.b16 %v1836
        %v1852 = vunpack.c.l.b16 %v1837
        %v1853 = vunpack.c.h.b16 %v1837
        %v1854 = vunpack.c.l.b16 %v1838
        %v1855 = vunpack.c.h.b16 %v1838
        %v1856 = vunpack.c.l.b16 %v1839
        %v1857 = vunpack.c.h.b16 %v1839
        %v1858 = vunpack.c.l.b16 %v1840
        %v1859 = vunpack.c.h.b16 %v1840
        %v1860 = vunpack.c.l.b16 %v1841
        %v1861 = vunpack.c.h.b16 %v1841
        %v1862 = vunpack.c.l.b16 %v1842
        %v1863 = vpack.c.b16 %v1850, %v1850
        %v1864 = vpack.c.b16 %v1851, %v1851
        %v1865 = vpack.c.b16 %v1852, %v1852
        %v1866 = vpack.c.b16 %v1853, %v1853
        %v1867 = vpack.c.b16 %v1854, %v1854
        %v1868 = vpack.c.b16 %v1855, %v1855
        %v1869 = vpack.c.b16 %v1856, %v1856
        %v1870 = vpack.c.b16 %v1857, %v1857
        %v1871 = vpack.c.b16 %v1858, %v1858
        %v1872 = vpack.c.b16 %v1859, %v1859
        %v1873 = vpack.c.b16 %v1860, %v1860
        %v1874 = vpack.c.b16 %v1861, %v1861
        %v1875 = vpack.c.b16 %v1862, %v1862
        %1876 = vrot.lane.b32.xlu0 %v1863, 112
        %v1877 = vpop.permute.xlu0 %1876
        %1878 = vrot.lane.b32.xlu0 %v1864, 112
        %v1879 = vpop.permute.xlu0 %1878
        %1880 = vrot.lane.b32.xlu0 %v1865, 112
        %v1881 = vpop.permute.xlu0 %1880
        %1882 = vrot.lane.b32.xlu0 %v1866, 112
        %v1883 = vpop.permute.xlu0 %1882
        %1884 = vrot.lane.b32.xlu0 %v1867, 112
        %v1885 = vpop.permute.xlu0 %1884
        %1886 = vrot.lane.b32.xlu0 %v1868, 112
        %v1887 = vpop.permute.xlu0 %1886
        %1888 = vrot.lane.b32.xlu0 %v1869, 112
        %v1889 = vpop.permute.xlu0 %1888
        %1890 = vrot.lane.b32.xlu0 %v1870, 112
        %v1891 = vpop.permute.xlu0 %1890
        %1892 = vrot.lane.b32.xlu0 %v1871, 112
        %v1893 = vpop.permute.xlu0 %1892
        %1894 = vrot.lane.b32.xlu0 %v1872, 112
        %v1895 = vpop.permute.xlu0 %1894
        %1896 = vrot.lane.b32.xlu0 %v1873, 112
        %v1897 = vpop.permute.xlu0 %1896
        %1898 = vrot.lane.b32.xlu0 %v1874, 112
        %v1899 = vpop.permute.xlu0 %1898
        %1900 = vrot.lane.b32.xlu0 %v1875, 112
        %v1901 = vpop.permute.xlu0 %1900
        %vm1915 = vcmask 1044352
        %1916 = vst.msk [vmem:[#allocation4] sm:$0xf] %vm1915, %v1877
        %1917 = vst.msk [vmem:[#allocation4 + $0x8] sm:$0xf] %vm1915, %v1879
        %1918 = vst.msk [vmem:[#allocation4 + $0x10] sm:$0xf] %vm1915, %v1881
        %1919 = vst.msk [vmem:[#allocation4 + $0x18] sm:$0xf] %vm1915, %v1883
        %1920 = vst.msk [vmem:[#allocation4 + $0x20] sm:$0xf] %vm1915, %v1885
        %1921 = vst.msk [vmem:[#allocation4 + $0x28] sm:$0xf] %vm1915, %v1887
        %1922 = vst.msk [vmem:[#allocation4 + $0x30] sm:$0xf] %vm1915, %v1889
        %1923 = vst.msk [vmem:[#allocation4 + $0x38] sm:$0xf] %vm1915, %v1891
        %1924 = vst.msk [vmem:[#allocation4 + $0x40] sm:$0xf] %vm1915, %v1893
        %1925 = vst.msk [vmem:[#allocation4 + $0x48] sm:$0xf] %vm1915, %v1895
        %1926 = vst.msk [vmem:[#allocation4 + $0x50] sm:$0xf] %vm1915, %v1897
        %1927 = vst.msk [vmem:[#allocation4 + $0x58] sm:$0xf] %vm1915, %v1899
        %vm1928 = vcmask 1042304
        %1929 = vst.msk [vmem:[#allocation4 + $0x60] sm:$0x3] %vm1928, %v1901
        %v1930 = vld [vmem:[#allocation3 + $0x16] sm:$0xff]
        %v1931 = vld [vmem:[#allocation3 + $0x1e] sm:$0xff]
        %v1932 = vld [vmem:[#allocation3 + $0x26] sm:$0xff]
        %v1933 = vld [vmem:[#allocation3 + $0x2e] sm:$0xff]
        %v1934 = vld [vmem:[#allocation3 + $0x36] sm:$0xff]
        %v1935 = vld [vmem:[#allocation3 + $0x3e] sm:$0xff]
        %v1936 = vld [vmem:[#allocation3 + $0x46] sm:$0xff]
        %v1937 = vld [vmem:[#allocation3 + $0x4e] sm:$0xff]
        %v1938 = vld [vmem:[#allocation3 + $0x56] sm:$0xff]
        %v1939 = vld [vmem:[#allocation3 + $0x5e] sm:$0xff]
        %v1940 = vld [vmem:[#allocation3 + $0x66] sm:$0xff]
        %v1941 = vld [vmem:[#allocation3 + $0x6e] sm:$0xff]
        %v1942 = vld [vmem:[#allocation3 + $0x76] sm:$0xf]
        %v1943 = vpack.c.bf16 %v1931, %v1930
        %v1944 = vpack.c.bf16 %v1933, %v1932
        %v1945 = vpack.c.bf16 %v1935, %v1934
        %v1946 = vpack.c.bf16 %v1937, %v1936
        %v1947 = vpack.c.bf16 %v1939, %v1938
        %v1948 = vpack.c.bf16 %v1941, %v1940
        %v1949 = vpack.c.bf16 %v1942, %v1942
        %v1957 = vunpack.c.l.b16 %v1943
        %v1958 = vunpack.c.h.b16 %v1943
        %v1959 = vunpack.c.l.b16 %v1944
        %v1960 = vunpack.c.h.b16 %v1944
        %v1961 = vunpack.c.l.b16 %v1945
        %v1962 = vunpack.c.h.b16 %v1945
        %v1963 = vunpack.c.l.b16 %v1946
        %v1964 = vunpack.c.h.b16 %v1946
        %v1965 = vunpack.c.l.b16 %v1947
        %v1966 = vunpack.c.h.b16 %v1947
        %v1967 = vunpack.c.l.b16 %v1948
        %v1968 = vunpack.c.h.b16 %v1948
        %v1969 = vunpack.c.l.b16 %v1949
        %v1970 = vpack.c.b16 %v1957, %v1957
        %v1971 = vpack.c.b16 %v1958, %v1958
        %v1972 = vpack.c.b16 %v1959, %v1959
        %v1973 = vpack.c.b16 %v1960, %v1960
        %v1974 = vpack.c.b16 %v1961, %v1961
        %v1975 = vpack.c.b16 %v1962, %v1962
        %v1976 = vpack.c.b16 %v1963, %v1963
        %v1977 = vpack.c.b16 %v1964, %v1964
        %v1978 = vpack.c.b16 %v1965, %v1965
        %v1979 = vpack.c.b16 %v1966, %v1966
        %v1980 = vpack.c.b16 %v1967, %v1967
        %v1981 = vpack.c.b16 %v1968, %v1968
        %v1982 = vpack.c.b16 %v1969, %v1969
        %1996 = vst.msk [vmem:[#allocation4 + $0x4] sm:$0xf] %vm1167, %v1970
        %1997 = vst.msk [vmem:[#allocation4 + $0xc] sm:$0xf] %vm1167, %v1971
        %1998 = vst.msk [vmem:[#allocation4 + $0x14] sm:$0xf] %vm1167, %v1972
        %1999 = vst.msk [vmem:[#allocation4 + $0x1c] sm:$0xf] %vm1167, %v1973
        %2000 = vst.msk [vmem:[#allocation4 + $0x24] sm:$0xf] %vm1167, %v1974
        %2001 = vst.msk [vmem:[#allocation4 + $0x2c] sm:$0xf] %vm1167, %v1975
        %2002 = vst.msk [vmem:[#allocation4 + $0x34] sm:$0xf] %vm1167, %v1976
        %2003 = vst.msk [vmem:[#allocation4 + $0x3c] sm:$0xf] %vm1167, %v1977
        %2004 = vst.msk [vmem:[#allocation4 + $0x44] sm:$0xf] %vm1167, %v1978
        %2005 = vst.msk [vmem:[#allocation4 + $0x4c] sm:$0xf] %vm1167, %v1979
        %2006 = vst.msk [vmem:[#allocation4 + $0x54] sm:$0xf] %vm1167, %v1980
        %2007 = vst.msk [vmem:[#allocation4 + $0x5c] sm:$0xf] %vm1167, %v1981
        %2008 = vst.msk [vmem:[#allocation4 + $0x64] sm:$0x3] %vm511, %v1982
        %v2009 = vld [vmem:[#allocation4] sm:$0xff]
        %v2010 = vld [vmem:[#allocation4 + $0x8] sm:$0xff]
        %v2011 = vld [vmem:[#allocation4 + $0x10] sm:$0xff]
        %v2012 = vld [vmem:[#allocation4 + $0x18] sm:$0xff]
        %v2013 = vld [vmem:[#allocation4 + $0x20] sm:$0xff]
        %v2014 = vld [vmem:[#allocation4 + $0x28] sm:$0xff]
        %v2015 = vld [vmem:[#allocation4 + $0x30] sm:$0xff]
        %v2016 = vld [vmem:[#allocation4 + $0x38] sm:$0xff]
        %v2017 = vld [vmem:[#allocation4 + $0x40] sm:$0xff]
        %v2018 = vld [vmem:[#allocation4 + $0x48] sm:$0xff]
        %v2019 = vld [vmem:[#allocation4 + $0x50] sm:$0xff]
        %v2020 = vld [vmem:[#allocation4 + $0x58] sm:$0xff]
        %v2021 = vld [vmem:[#allocation4 + $0x60] sm:$0x33]
        %v2022 = vld [vmem:[%s4] sm:$0xf]
        %v2023 = vld [vmem:[%s4 + $0x4] sm:$0xf]
        %v2024 = vld [vmem:[%s4 + $0x8] sm:$0xf]
        %v2025 = vld [vmem:[%s4 + $0xc] sm:$0xf]
        %v2026 = vld [vmem:[%s4 + $0x10] sm:$0xf]
        %v2027 = vld [vmem:[%s4 + $0x14] sm:$0xf]
        %v2028 = vld [vmem:[%s4 + $0x18] sm:$0xf]
        %v2029 = vld [vmem:[%s4 + $0x1c] sm:$0xf]
        %v2030 = vld [vmem:[%s4 + $0x20] sm:$0xf]
        %v2031 = vld [vmem:[%s4 + $0x24] sm:$0xf]
        %v2032 = vld [vmem:[%s4 + $0x28] sm:$0xf]
        %v2033 = vld [vmem:[%s4 + $0x2c] sm:$0xf]
        %v2034 = vld [vmem:[%s4 + $0x30] sm:$0xf]
        %v2035 = vld [vmem:[%s4 + $0x34] sm:$0xf]
        %v2036 = vld [vmem:[%s4 + $0x38] sm:$0xf]
        %v2037 = vld [vmem:[%s4 + $0x3c] sm:$0xf]
        %v2038 = vld [vmem:[%s4 + $0x40] sm:$0xf]
        %v2039 = vld [vmem:[%s4 + $0x44] sm:$0xf]
        %v2053 = vunpack.c.l.b16 %v2009
        %v2054 = vunpack.c.h.b16 %v2009
        %v2055 = vunpack.c.l.b16 %v2010
        %v2056 = vunpack.c.h.b16 %v2010
        %v2057 = vunpack.c.l.b16 %v2011
        %v2058 = vunpack.c.h.b16 %v2011
        %v2059 = vunpack.c.l.b16 %v2012
        %v2060 = vunpack.c.h.b16 %v2012
        %v2061 = vunpack.c.l.b16 %v2013
        %v2062 = vunpack.c.h.b16 %v2013
        %v2063 = vunpack.c.l.b16 %v2014
        %v2064 = vunpack.c.h.b16 %v2014
        %v2065 = vunpack.c.l.b16 %v2015
        %v2066 = vunpack.c.h.b16 %v2015
        %v2067 = vunpack.c.l.b16 %v2016
        %v2068 = vunpack.c.h.b16 %v2016
        %v2069 = vunpack.c.l.b16 %v2017
        %v2070 = vunpack.c.h.b16 %v2017
        %v2071 = vunpack.c.l.b16 %v2018
        %v2072 = vunpack.c.h.b16 %v2018
        %v2073 = vunpack.c.l.b16 %v2019
        %v2074 = vunpack.c.h.b16 %v2019
        %v2075 = vunpack.c.l.b16 %v2020
        %v2076 = vunpack.c.h.b16 %v2020
        %v2077 = vunpack.c.l.b16 %v2021
        %v2078 = vunpack.c.h.b16 %v2021
        %v2079 = vpack.c.b16 %v2055, %v2053
        %v2080 = vpack.c.b16 %v2056, %v2054
        %v2081 = vpack.c.b16 %v2059, %v2057
        %v2082 = vpack.c.b16 %v2060, %v2058
        %v2083 = vpack.c.b16 %v2063, %v2061
        %v2084 = vpack.c.b16 %v2064, %v2062
        %v2085 = vpack.c.b16 %v2067, %v2065
        %v2086 = vpack.c.b16 %v2068, %v2066
        %v2087 = vpack.c.b16 %v2071, %v2069
        %v2088 = vpack.c.b16 %v2072, %v2070
        %v2089 = vpack.c.b16 %v2075, %v2073
        %v2090 = vpack.c.b16 %v2076, %v2074
        %v2091 = vpack.c.b16 %v2077, %v2077
        %v2092 = vpack.c.b16 %v2078, %v2078
        %v2118 = vunpack.c.l.b16 %v2022
        %v2119 = vunpack.c.l.b16 %v2023
        %v2120 = vunpack.c.l.b16 %v2024
        %v2121 = vunpack.c.l.b16 %v2025
        %v2122 = vunpack.c.l.b16 %v2026
        %v2123 = vunpack.c.l.b16 %v2027
        %v2124 = vunpack.c.l.b16 %v2028
        %v2125 = vunpack.c.l.b16 %v2029
        %v2126 = vunpack.c.l.b16 %v2030
        %v2127 = vunpack.c.l.b16 %v2031
        %v2128 = vunpack.c.l.b16 %v2032
        %v2129 = vunpack.c.l.b16 %v2033
        %v2130 = vunpack.c.l.b16 %v2034
        %v2131 = vunpack.c.l.b16 %v2035
        %v2132 = vunpack.c.l.b16 %v2036
        %v2133 = vunpack.c.l.b16 %v2037
        %v2134 = vunpack.c.l.b16 %v2038
        %v2135 = vunpack.c.l.b16 %v2039
        %v2136 = vpack.c.b16 %v2119, %v2118
        %v2137 = vpack.c.b16 %v2121, %v2120
        %v2138 = vpack.c.b16 %v2123, %v2122
        %v2139 = vpack.c.b16 %v2125, %v2124
        %v2140 = vpack.c.b16 %v2127, %v2126
        %v2141 = vpack.c.b16 %v2129, %v2128
        %v2142 = vpack.c.b16 %v2131, %v2130
        %v2143 = vpack.c.b16 %v2133, %v2132
        %v2144 = vpack.c.b16 %v2135, %v2134
        %v2155 = vsel %vm495, %v2080, 0
        %v2158 = vsel %vm495, %v2082, 0
        %v2161 = vsel %vm495, %v2084, 0
        %v2164 = vsel %vm495, %v2086, 0
        %v2167 = vsel %vm495, %v2088, 0
        %v2170 = vsel %vm495, %v2090, 0
        %v2173 = vsel %vm495, %v2092, 0
        %2175 = vmatprep.subr.bf16.mxu0 0
        %2176 = vmatpush1.bf16.msra.mxu0 %v2136
        %2177 = vmatprep.subr.bf16.mxu0 0
        %2178 = vmatpush1.bf16.msra.mxu0 %v2137
        %2179 = vmatprep.subr.bf16.mxu0 0
        %2180 = vmatpush1.bf16.msra.mxu0 %v2138
        %2181 = vmatprep.subr.bf16.mxu0 0
        %2182 = vmatpush1.bf16.msra.mxu0 %v2139
        %2183 = vmatprep.subr.bf16.mxu0 0
        %2184 = vmatpush1.bf16.msra.mxu0 %v2140
        %2185 = vmatprep.subr.bf16.mxu0 0
        %2186 = vmatpush1.bf16.msra.mxu0 %v2141
        %2187 = vmatprep.subr.bf16.mxu0 0
        %2188 = vmatpush1.bf16.msra.mxu0 %v2142
        %2189 = vmatprep.subr.bf16.mxu0 0
        %2190 = vmatpush1.bf16.msra.mxu0 %v2143
        %2191 = vmatprep.subr.bf16.mxu0 0
        %2192 = vmatpush1.bf16.msra.mxu0 %v2144
        %2193 = vmatprep.subr.bf16.mxu0 0
        %2194 = vmatpush1.bf16.msra.mxu0 0
        %2195 = vmatprep.subr.bf16.mxu0 0
        %2196 = vmatpush1.bf16.msra.mxu0 0
        %2197 = vmatprep.subr.bf16.mxu0 0
        %2198 = vmatpush1.bf16.msra.mxu0 0
        %2199 = vmatprep.subr.bf16.mxu0 0
        %2200 = vmatpush1.bf16.msra.mxu0 0
        %2201 = vmatprep.subr.bf16.mxu0 0
        %2202 = vmatpush1.bf16.msra.mxu0 0
        %2203 = vmatprep.subr.bf16.mxu0 0
        %2204 = vmatpush1.bf16.msra.mxu0 0
        %2205 = vmatprep.subr.bf16.mxu0 0
        %2206 = vmatpush1.bf16.msra.mxu0 0
        %2207 = vmatprep.mubr.bf16.mxu0 %v2155
        %2208 = vmatmul.mubr.bf16.gmra.mrb[0].mxu0 %v2079
        %v2209 = vpop.f32.mrb[0].mxu0
        %v2210 = vadd.f32 0.0, %v2209
        %v2211 = vpop.f32.mrb[0].mxu0
        %v2212 = vpop.f32.mrb[0].mxu0
        %v2213 = vadd.f32 0.0, %v2212
        %v2214 = vpop.f32.mrb[0].mxu0
        %2215 = vmatprep.mubr.bf16.mxu0 %v2158
        %2216 = vmatmul.mubr.bf16.gmra.mrb[0].mxu0 %v2081
        %v2217 = vpop.f32.mrb[0].mxu0
        %v2218 = vadd.f32 0.0, %v2217
        %v2219 = vpop.f32.mrb[0].mxu0
        %v2220 = vpop.f32.mrb[0].mxu0
        %v2221 = vadd.f32 0.0, %v2220
        %v2222 = vpop.f32.mrb[0].mxu0
        %2223 = vmatprep.mubr.bf16.mxu0 %v2161
        %2224 = vmatmul.mubr.bf16.gmra.mrb[0].mxu0 %v2083
        %v2225 = vpop.f32.mrb[0].mxu0
        %v2226 = vadd.f32 0.0, %v2225
        %v2227 = vpop.f32.mrb[0].mxu0
        %v2228 = vpop.f32.mrb[0].mxu0
        %v2229 = vadd.f32 0.0, %v2228
        %v2230 = vpop.f32.mrb[0].mxu0
        %2231 = vmatprep.mubr.bf16.mxu0 %v2164
        %2232 = vmatmul.mubr.bf16.gmra.mrb[0].mxu0 %v2085
        %v2233 = vpop.f32.mrb[0].mxu0
        %v2234 = vadd.f32 0.0, %v2233
        %v2235 = vpop.f32.mrb[0].mxu0
        %v2236 = vpop.f32.mrb[0].mxu0
        %v2237 = vadd.f32 0.0, %v2236
        %v2238 = vpop.f32.mrb[0].mxu0
        %2239 = vmatprep.mubr.bf16.mxu0 %v2167
        %2240 = vmatmul.mubr.bf16.gmra.mrb[0].mxu0 %v2087
        %v2241 = vpop.f32.mrb[0].mxu0
        %v2242 = vadd.f32 0.0, %v2241
        %v2243 = vpop.f32.mrb[0].mxu0
        %v2244 = vpop.f32.mrb[0].mxu0
        %v2245 = vadd.f32 0.0, %v2244
        %v2246 = vpop.f32.mrb[0].mxu0
        %2247 = vmatprep.mubr.bf16.mxu0 %v2170
        %2248 = vmatmul.mubr.bf16.gmra.mrb[0].mxu0 %v2089
        %v2249 = vpop.f32.mrb[0].mxu0
        %v2250 = vadd.f32 0.0, %v2249
        %v2251 = vpop.f32.mrb[0].mxu0
        %v2252 = vpop.f32.mrb[0].mxu0
        %v2253 = vadd.f32 0.0, %v2252
        %v2254 = vpop.f32.mrb[0].mxu0
        %2255 = vmatprep.mubr.bf16.mxu0 %v2173
        %2256 = vmatmul.mubr.bf16.gmra.mrb[0].mxu0 %v2091
        %v2257 = vpop.f32.mrb[0].mxu0
        %v2258 = vadd.f32 0.0, %v2257
        %v2259 = vpop.f32.mrb[0].mxu0
        %v2260 = vpop.f32.mrb[0].mxu0
        %v2261 = vpop.f32.mrb[0].mxu0
        %2262 = vdwg.mxu0
        %v2263 = vld [vmem:[%s5] sm:$0x1]
        %v2265 = vlaneseq
        %v2266 = vshrl.u32 %v2265, 7
        %v2267 = vsub.s32 0, %v2266
        %v2268 = vrot.slane %v2263, %v2267
        %v2270 = vmul.f32 %v2210, %v2268
        %v2271 = vmul.f32 %v2213, %v2268
        %v2272 = vmul.f32 %v2218, %v2268
        %v2273 = vmul.f32 %v2221, %v2268
        %v2274 = vmul.f32 %v2226, %v2268
        %v2275 = vmul.f32 %v2229, %v2268
        %v2276 = vmul.f32 %v2234, %v2268
        %v2277 = vmul.f32 %v2237, %v2268
        %v2278 = vmul.f32 %v2242, %v2268
        %v2279 = vmul.f32 %v2245, %v2268
        %v2280 = vmul.f32 %v2250, %v2268
        %v2281 = vmul.f32 %v2253, %v2268
        %v2282 = vmul.f32 %v2258, %v2268
        %v2283 = vld [vmem:[%s6] sm:$0x1]
        %v2285 = vlaneseq
        %v2286 = vshrl.u32 %v2285, 7
        %v2287 = vsub.s32 0, %v2286
        %v2288 = vrot.slane %v2283, %v2287
        %v2290 = vadd.f32 %v2270, %v2288
        %v2291 = vadd.f32 %v2271, %v2288
        %v2292 = vadd.f32 %v2272, %v2288
        %v2293 = vadd.f32 %v2273, %v2288
        %v2294 = vadd.f32 %v2274, %v2288
        %v2295 = vadd.f32 %v2275, %v2288
        %v2296 = vadd.f32 %v2276, %v2288
        %v2297 = vadd.f32 %v2277, %v2288
        %v2298 = vadd.f32 %v2278, %v2288
        %v2299 = vadd.f32 %v2279, %v2288
        %v2300 = vadd.f32 %v2280, %v2288
        %v2301 = vadd.f32 %v2281, %v2288
        %v2302 = vadd.f32 %v2282, %v2288
        %v2303 = vmax.f32 %v2290, 0.0
        %v2304 = vmax.f32 %v2291, 0.0
        %v2305 = vmax.f32 %v2292, 0.0
        %v2306 = vmax.f32 %v2293, 0.0
        %v2307 = vmax.f32 %v2294, 0.0
        %v2308 = vmax.f32 %v2295, 0.0
        %v2309 = vmax.f32 %v2296, 0.0
        %v2310 = vmax.f32 %v2297, 0.0
        %v2311 = vmax.f32 %v2298, 0.0
        %v2312 = vmax.f32 %v2299, 0.0
        %v2313 = vmax.f32 %v2300, 0.0
        %v2314 = vmax.f32 %v2301, 0.0
        %v2315 = vmax.f32 %v2302, 0.0
        %2316 = vst.msk [vmem:[#allocation5] sm:$0xff] %vm513, %v2303
        %2317 = vst.msk [vmem:[#allocation5 + $0x8] sm:$0xff] %vm513, %v2304
        %2318 = vst.msk [vmem:[#allocation5 + $0x10] sm:$0xff] %vm513, %v2305
        %2319 = vst.msk [vmem:[#allocation5 + $0x18] sm:$0xff] %vm513, %v2306
        %2320 = vst.msk [vmem:[#allocation5 + $0x20] sm:$0xff] %vm513, %v2307
        %2321 = vst.msk [vmem:[#allocation5 + $0x28] sm:$0xff] %vm513, %v2308
        %2322 = vst.msk [vmem:[#allocation5 + $0x30] sm:$0xff] %vm513, %v2309
        %2323 = vst.msk [vmem:[#allocation5 + $0x38] sm:$0xff] %vm513, %v2310
        %2324 = vst.msk [vmem:[#allocation5 + $0x40] sm:$0xff] %vm513, %v2311
        %2325 = vst.msk [vmem:[#allocation5 + $0x48] sm:$0xff] %vm513, %v2312
        %2326 = vst.msk [vmem:[#allocation5 + $0x50] sm:$0xff] %vm513, %v2313
        %2327 = vst.msk [vmem:[#allocation5 + $0x58] sm:$0xff] %vm513, %v2314
        %vm2328 = vcmask 257024
        %2329 = vst.msk [vmem:[#allocation5 + $0x60] sm:$0xf] %vm2328, %v2315
        %s2330 = scalar_lea.vmem [#allocation5], 11
        %v2331 = vld [vmem:[%s2330] ss:$2 sm:$0xf]
        %s2332 = scalar_lea.vmem [#allocation5], 12
        %v2333 = vld [vmem:[%s2332] ss:$2 sm:$0xf]
        %v2334 = vmax.f32 %v2331, %v2333
        %s2335 = scalar_lea.vmem [#allocation5], 21
        %v2336 = vld [vmem:[%s2335] ss:$2 sm:$0xf]
        %s2337 = scalar_lea.vmem [#allocation5], 22
        %v2338 = vld [vmem:[%s2337] ss:$2 sm:$0xf]
        %v2339 = vmax.f32 %v2336, %v2338
        %v2340 = vmax.f32 %v2334, %v2339
        %2341 = vst.msk [vmem:[#allocation6 + $0xe] sm:$0xf] %vm2328, %v2340
        %s2342 = scalar_lea.vmem [#allocation5], 31
        %v2343 = vld [vmem:[%s2342] ss:$2 sm:$0xf]
        %s2344 = scalar_lea.vmem [#allocation5], 32
        %v2345 = vld [vmem:[%s2344] ss:$2 sm:$0xf]
        %v2346 = vmax.f32 %v2343, %v2345
        %s2347 = scalar_lea.vmem [#allocation5], 41
        %v2348 = vld [vmem:[%s2347] ss:$2 sm:$0xf]
        %s2349 = scalar_lea.vmem [#allocation5], 42
        %v2350 = vld [vmem:[%s2349] ss:$2 sm:$0xf]
        %v2351 = vmax.f32 %v2348, %v2350
        %v2352 = vmax.f32 %v2346, %v2351
        %2353 = vst.msk [vmem:[#allocation6 + $0x14] sm:$0xf] %vm2328, %v2352
        %s2354 = scalar_lea.vmem [#allocation5], 51
        %v2355 = vld [vmem:[%s2354] ss:$2 sm:$0xf]
        %s2356 = scalar_lea.vmem [#allocation5], 52
        %v2357 = vld [vmem:[%s2356] ss:$2 sm:$0xf]
        %v2358 = vmax.f32 %v2355, %v2357
        %s2359 = scalar_lea.vmem [#allocation5], 61
        %v2360 = vld [vmem:[%s2359] ss:$2 sm:$0xf]
        %s2361 = scalar_lea.vmem [#allocation5], 62
        %v2362 = vld [vmem:[%s2361] ss:$2 sm:$0xf]
        %v2363 = vmax.f32 %v2360, %v2362
        %v2364 = vmax.f32 %v2358, %v2363
        %2365 = vst.msk [vmem:[#allocation6 + $0x1a] sm:$0xf] %vm2328, %v2364
        %s2366 = scalar_lea.vmem [#allocation5], 71
        %v2367 = vld [vmem:[%s2366] ss:$2 sm:$0xf]
        %s2368 = scalar_lea.vmem [#allocation5], 72
        %v2369 = vld [vmem:[%s2368] ss:$2 sm:$0xf]
        %v2370 = vmax.f32 %v2367, %v2369
        %s2371 = scalar_lea.vmem [#allocation5], 81
        %v2372 = vld [vmem:[%s2371] ss:$2 sm:$0xf]
        %s2373 = scalar_lea.vmem [#allocation5], 82
        %v2374 = vld [vmem:[%s2373] ss:$2 sm:$0xf]
        %v2375 = vmax.f32 %v2372, %v2374
        %v2376 = vmax.f32 %v2370, %v2375
        %2377 = vst.msk [vmem:[#allocation6 + $0x20] sm:$0xf] %vm2328, %v2376
        %v2378 = vld [vmem:[#allocation6] sm:$0xff]
        %v2379 = vld [vmem:[#allocation6 + $0x8] sm:$0xff]
        %v2380 = vld [vmem:[#allocation6 + $0x10] sm:$0xff]
        %v2381 = vld [vmem:[#allocation6 + $0x18] sm:$0xff]
        %v2382 = vld [vmem:[#allocation6 + $0x20] sm:$0xf]
        %v2383 = vpack.c.bf16 %v2379, %v2378
        %v2384 = vpack.c.bf16 %v2381, %v2380
        %v2385 = vpack.c.bf16 %v2382, %v2382
        %v2389 = vunpack.c.l.b16 %v2383
        %v2390 = vunpack.c.h.b16 %v2383
        %v2391 = vunpack.c.l.b16 %v2384
        %v2392 = vunpack.c.h.b16 %v2384
        %v2393 = vunpack.c.l.b16 %v2385
        %v2394 = vpack.c.b16 %v2389, %v2389
        %v2395 = vpack.c.b16 %v2390, %v2390
        %v2396 = vpack.c.b16 %v2391, %v2391
        %v2397 = vpack.c.b16 %v2392, %v2392
        %v2398 = vpack.c.b16 %v2393, %v2393
        %2404 = vst.msk [vmem:[#allocation7] sm:$0xf] %vm2328, %v2394
        %2405 = vst.msk [vmem:[#allocation7 + $0xc] sm:$0xf] %vm2328, %v2395
        %2406 = vst.msk [vmem:[#allocation7 + $0x18] sm:$0xf] %vm2328, %v2396
        %2407 = vst.msk [vmem:[#allocation7 + $0x24] sm:$0xf] %vm2328, %v2397
        %2408 = vst.msk [vmem:[#allocation7 + $0x30] sm:$0x3] %vm520, %v2398
        %v2409 = vld [vmem:[#allocation6 + $0x1] sm:$0xff]
        %v2410 = vld [vmem:[#allocation6 + $0x9] sm:$0xff]
        %v2411 = vld [vmem:[#allocation6 + $0x11] sm:$0xff]
        %v2412 = vld [vmem:[#allocation6 + $0x19] sm:$0xff]
        %v2413 = vld [vmem:[#allocation6 + $0x21] sm:$0xf]
        %v2414 = vpack.c.bf16 %v2410, %v2409
        %v2415 = vpack.c.bf16 %v2412, %v2411
        %v2416 = vpack.c.bf16 %v2413, %v2413
        %v2420 = vunpack.c.l.b16 %v2414
        %v2421 = vunpack.c.h.b16 %v2414
        %v2422 = vunpack.c.l.b16 %v2415
        %v2423 = vunpack.c.h.b16 %v2415
        %v2424 = vunpack.c.l.b16 %v2416
        %v2425 = vpack.c.b16 %v2420, %v2420
        %v2426 = vpack.c.b16 %v2421, %v2421
        %v2427 = vpack.c.b16 %v2422, %v2422
        %v2428 = vpack.c.b16 %v2423, %v2423
        %v2429 = vpack.c.b16 %v2424, %v2424
        %2430 = vrot.lane.b32.xlu0 %v2425, 32
        %v2431 = vpop.permute.xlu0 %2430
        %2432 = vrot.lane.b32.xlu0 %v2426, 32
        %v2433 = vpop.permute.xlu0 %2432
        %2434 = vrot.lane.b32.xlu0 %v2427, 32
        %v2435 = vpop.permute.xlu0 %2434
        %2436 = vrot.lane.b32.xlu0 %v2428, 32
        %v2437 = vpop.permute.xlu0 %2436
        %2438 = vrot.lane.b32.xlu0 %v2429, 32
        %v2439 = vpop.permute.xlu0 %2438
        %vm2445 = vcmask 519424
        %2446 = vst.msk [vmem:[#allocation7] sm:$0xf] %vm2445, %v2431
        %2447 = vst.msk [vmem:[#allocation7 + $0xc] sm:$0xf] %vm2445, %v2433
        %2448 = vst.msk [vmem:[#allocation7 + $0x18] sm:$0xf] %vm2445, %v2435
        %2449 = vst.msk [vmem:[#allocation7 + $0x24] sm:$0xf] %vm2445, %v2437
        %vm2450 = vcmask 517376
        %2451 = vst.msk [vmem:[#allocation7 + $0x30] sm:$0x3] %vm2450, %v2439
        %v2452 = vld [vmem:[#allocation6 + $0x2] sm:$0xff]
        %v2453 = vld [vmem:[#allocation6 + $0xa] sm:$0xff]
        %v2454 = vld [vmem:[#allocation6 + $0x12] sm:$0xff]
        %v2455 = vld [vmem:[#allocation6 + $0x1a] sm:$0xff]
        %v2456 = vld [vmem:[#allocation6 + $0x22] sm:$0xf]
        %v2457 = vpack.c.bf16 %v2453, %v2452
        %v2458 = vpack.c.bf16 %v2455, %v2454
        %v2459 = vpack.c.bf16 %v2456, %v2456
        %v2463 = vunpack.c.l.b16 %v2457
        %v2464 = vunpack.c.h.b16 %v2457
        %v2465 = vunpack.c.l.b16 %v2458
        %v2466 = vunpack.c.h.b16 %v2458
        %v2467 = vunpack.c.l.b16 %v2459
        %v2468 = vpack.c.b16 %v2463, %v2463
        %v2469 = vpack.c.b16 %v2464, %v2464
        %v2470 = vpack.c.b16 %v2465, %v2465
        %v2471 = vpack.c.b16 %v2466, %v2466
        %v2472 = vpack.c.b16 %v2467, %v2467
        %2473 = vrot.lane.b32.xlu0 %v2468, 64
        %v2474 = vpop.permute.xlu0 %2473
        %2475 = vrot.lane.b32.xlu0 %v2469, 64
        %v2476 = vpop.permute.xlu0 %2475
        %2477 = vrot.lane.b32.xlu0 %v2470, 64
        %v2478 = vpop.permute.xlu0 %2477
        %2479 = vrot.lane.b32.xlu0 %v2471, 64
        %v2480 = vpop.permute.xlu0 %2479
        %2481 = vrot.lane.b32.xlu0 %v2472, 64
        %v2482 = vpop.permute.xlu0 %2481
        %vm2488 = vcmask 781824
        %2489 = vst.msk [vmem:[#allocation7] sm:$0xf] %vm2488, %v2474
        %2490 = vst.msk [vmem:[#allocation7 + $0xc] sm:$0xf] %vm2488, %v2476
        %2491 = vst.msk [vmem:[#allocation7 + $0x18] sm:$0xf] %vm2488, %v2478
        %2492 = vst.msk [vmem:[#allocation7 + $0x24] sm:$0xf] %vm2488, %v2480
        %vm2493 = vcmask 779776
        %2494 = vst.msk [vmem:[#allocation7 + $0x30] sm:$0x3] %vm2493, %v2482
        %v2495 = vld [vmem:[#allocation6 + $0x6] sm:$0xff]
        %v2496 = vld [vmem:[#allocation6 + $0xe] sm:$0xff]
        %v2497 = vld [vmem:[#allocation6 + $0x16] sm:$0xff]
        %v2498 = vld [vmem:[#allocation6 + $0x1e] sm:$0xff]
        %v2499 = vld [vmem:[#allocation6 + $0x26] sm:$0xf]
        %v2500 = vpack.c.bf16 %v2496, %v2495
        %v2501 = vpack.c.bf16 %v2498, %v2497
        %v2502 = vpack.c.bf16 %v2499, %v2499
        %v2506 = vunpack.c.l.b16 %v2500
        %v2507 = vunpack.c.h.b16 %v2500
        %v2508 = vunpack.c.l.b16 %v2501
        %v2509 = vunpack.c.h.b16 %v2501
        %v2510 = vunpack.c.l.b16 %v2502
        %v2511 = vpack.c.b16 %v2506, %v2506
        %v2512 = vpack.c.b16 %v2507, %v2507
        %v2513 = vpack.c.b16 %v2508, %v2508
        %v2514 = vpack.c.b16 %v2509, %v2509
        %v2515 = vpack.c.b16 %v2510, %v2510
        %2516 = vrot.lane.b32.xlu0 %v2511, 96
        %v2517 = vpop.permute.xlu0 %2516
        %2518 = vrot.lane.b32.xlu0 %v2512, 96
        %v2519 = vpop.permute.xlu0 %2518
        %2520 = vrot.lane.b32.xlu0 %v2513, 96
        %v2521 = vpop.permute.xlu0 %2520
        %2522 = vrot.lane.b32.xlu0 %v2514, 96
        %v2523 = vpop.permute.xlu0 %2522
        %2524 = vrot.lane.b32.xlu0 %v2515, 96
        %v2525 = vpop.permute.xlu0 %2524
        %vm2531 = vcmask 1044224
        %2532 = vst.msk [vmem:[#allocation7] sm:$0xf] %vm2531, %v2517
        %2533 = vst.msk [vmem:[#allocation7 + $0xc] sm:$0xf] %vm2531, %v2519
        %2534 = vst.msk [vmem:[#allocation7 + $0x18] sm:$0xf] %vm2531, %v2521
        %2535 = vst.msk [vmem:[#allocation7 + $0x24] sm:$0xf] %vm2531, %v2523
        %vm2536 = vcmask 1042176
        %2537 = vst.msk [vmem:[#allocation7 + $0x30] sm:$0x3] %vm2536, %v2525
        %v2538 = vld [vmem:[#allocation6 + $0x7] sm:$0xff]
        %v2539 = vld [vmem:[#allocation6 + $0xf] sm:$0xff]
        %v2540 = vld [vmem:[#allocation6 + $0x17] sm:$0xff]
        %v2541 = vld [vmem:[#allocation6 + $0x1f] sm:$0xff]
        %v2542 = vld [vmem:[#allocation6 + $0x27] sm:$0xf]
        %v2543 = vpack.c.bf16 %v2539, %v2538
        %v2544 = vpack.c.bf16 %v2541, %v2540
        %v2545 = vpack.c.bf16 %v2542, %v2542
        %v2549 = vunpack.c.l.b16 %v2543
        %v2550 = vunpack.c.h.b16 %v2543
        %v2551 = vunpack.c.l.b16 %v2544
        %v2552 = vunpack.c.h.b16 %v2544
        %v2553 = vunpack.c.l.b16 %v2545
        %v2554 = vpack.c.b16 %v2549, %v2549
        %v2555 = vpack.c.b16 %v2550, %v2550
        %v2556 = vpack.c.b16 %v2551, %v2551
        %v2557 = vpack.c.b16 %v2552, %v2552
        %v2558 = vpack.c.b16 %v2553, %v2553
        %2564 = vst.msk [vmem:[#allocation7 + $0x4] sm:$0xf] %vm2328, %v2554
        %2565 = vst.msk [vmem:[#allocation7 + $0x10] sm:$0xf] %vm2328, %v2555
        %2566 = vst.msk [vmem:[#allocation7 + $0x1c] sm:$0xf] %vm2328, %v2556
        %2567 = vst.msk [vmem:[#allocation7 + $0x28] sm:$0xf] %vm2328, %v2557
        %2568 = vst.msk [vmem:[#allocation7 + $0x34] sm:$0x3] %vm520, %v2558
        %v2569 = vld [vmem:[#allocation6 + $0x8] sm:$0xff]
        %v2570 = vld [vmem:[#allocation6 + $0x10] sm:$0xff]
        %v2571 = vld [vmem:[#allocation6 + $0x18] sm:$0xff]
        %v2572 = vld [vmem:[#allocation6 + $0x20] sm:$0xff]
        %v2573 = vld [vmem:[#allocation6 + $0x28] sm:$0xf]
        %v2574 = vpack.c.bf16 %v2570, %v2569
        %v2575 = vpack.c.bf16 %v2572, %v2571
        %v2576 = vpack.c.bf16 %v2573, %v2573
        %v2580 = vunpack.c.l.b16 %v2574
        %v2581 = vunpack.c.h.b16 %v2574
        %v2582 = vunpack.c.l.b16 %v2575
        %v2583 = vunpack.c.h.b16 %v2575
        %v2584 = vunpack.c.l.b16 %v2576
        %v2585 = vpack.c.b16 %v2580, %v2580
        %v2586 = vpack.c.b16 %v2581, %v2581
        %v2587 = vpack.c.b16 %v2582, %v2582
        %v2588 = vpack.c.b16 %v2583, %v2583
        %v2589 = vpack.c.b16 %v2584, %v2584
        %2590 = vrot.lane.b32.xlu0 %v2585, 32
        %v2591 = vpop.permute.xlu0 %2590
        %2592 = vrot.lane.b32.xlu0 %v2586, 32
        %v2593 = vpop.permute.xlu0 %2592
        %2594 = vrot.lane.b32.xlu0 %v2587, 32
        %v2595 = vpop.permute.xlu0 %2594
        %2596 = vrot.lane.b32.xlu0 %v2588, 32
        %v2597 = vpop.permute.xlu0 %2596
        %2598 = vrot.lane.b32.xlu0 %v2589, 32
        %v2599 = vpop.permute.xlu0 %2598
        %2605 = vst.msk [vmem:[#allocation7 + $0x4] sm:$0xf] %vm2445, %v2591
        %2606 = vst.msk [vmem:[#allocation7 + $0x10] sm:$0xf] %vm2445, %v2593
        %2607 = vst.msk [vmem:[#allocation7 + $0x1c] sm:$0xf] %vm2445, %v2595
        %2608 = vst.msk [vmem:[#allocation7 + $0x28] sm:$0xf] %vm2445, %v2597
        %2609 = vst.msk [vmem:[#allocation7 + $0x34] sm:$0x3] %vm2450, %v2599
        %v2610 = vld [vmem:[#allocation6 + $0xc] sm:$0xff]
        %v2611 = vld [vmem:[#allocation6 + $0x14] sm:$0xff]
        %v2612 = vld [vmem:[#allocation6 + $0x1c] sm:$0xff]
        %v2613 = vld [vmem:[#allocation6 + $0x24] sm:$0xff]
        %v2614 = vld [vmem:[#allocation6 + $0x2c] sm:$0xf]
        %v2615 = vpack.c.bf16 %v2611, %v2610
        %v2616 = vpack.c.bf16 %v2613, %v2612
        %v2617 = vpack.c.bf16 %v2614, %v2614
        %v2621 = vunpack.c.l.b16 %v2615
        %v2622 = vunpack.c.h.b16 %v2615
        %v2623 = vunpack.c.l.b16 %v2616
        %v2624 = vunpack.c.h.b16 %v2616
        %v2625 = vunpack.c.l.b16 %v2617
        %v2626 = vpack.c.b16 %v2621, %v2621
        %v2627 = vpack.c.b16 %v2622, %v2622
        %v2628 = vpack.c.b16 %v2623, %v2623
        %v2629 = vpack.c.b16 %v2624, %v2624
        %v2630 = vpack.c.b16 %v2625, %v2625
        %2631 = vrot.lane.b32.xlu0 %v2626, 64
        %v2632 = vpop.permute.xlu0 %2631
        %2633 = vrot.lane.b32.xlu0 %v2627, 64
        %v2634 = vpop.permute.xlu0 %2633
        %2635 = vrot.lane.b32.xlu0 %v2628, 64
        %v2636 = vpop.permute.xlu0 %2635
        %2637 = vrot.lane.b32.xlu0 %v2629, 64
        %v2638 = vpop.permute.xlu0 %2637
        %2639 = vrot.lane.b32.xlu0 %v2630, 64
        %v2640 = vpop.permute.xlu0 %2639
        %2646 = vst.msk [vmem:[#allocation7 + $0x4] sm:$0xf] %vm2488, %v2632
        %2647 = vst.msk [vmem:[#allocation7 + $0x10] sm:$0xf] %vm2488, %v2634
        %2648 = vst.msk [vmem:[#allocation7 + $0x1c] sm:$0xf] %vm2488, %v2636
        %2649 = vst.msk [vmem:[#allocation7 + $0x28] sm:$0xf] %vm2488, %v2638
        %2650 = vst.msk [vmem:[#allocation7 + $0x34] sm:$0x3] %vm2493, %v2640
        %v2651 = vld [vmem:[#allocation6 + $0xd] sm:$0xff]
        %v2652 = vld [vmem:[#allocation6 + $0x15] sm:$0xff]
        %v2653 = vld [vmem:[#allocation6 + $0x1d] sm:$0xff]
        %v2654 = vld [vmem:[#allocation6 + $0x25] sm:$0xff]
        %v2655 = vld [vmem:[#allocation6 + $0x2d] sm:$0xf]
        %v2656 = vpack.c.bf16 %v2652, %v2651
        %v2657 = vpack.c.bf16 %v2654, %v2653
        %v2658 = vpack.c.bf16 %v2655, %v2655
        %v2662 = vunpack.c.l.b16 %v2656
        %v2663 = vunpack.c.h.b16 %v2656
        %v2664 = vunpack.c.l.b16 %v2657
        %v2665 = vunpack.c.h.b16 %v2657
        %v2666 = vunpack.c.l.b16 %v2658
        %v2667 = vpack.c.b16 %v2662, %v2662
        %v2668 = vpack.c.b16 %v2663, %v2663
        %v2669 = vpack.c.b16 %v2664, %v2664
        %v2670 = vpack.c.b16 %v2665, %v2665
        %v2671 = vpack.c.b16 %v2666, %v2666
        %2672 = vrot.lane.b32.xlu0 %v2667, 96
        %v2673 = vpop.permute.xlu0 %2672
        %2674 = vrot.lane.b32.xlu0 %v2668, 96
        %v2675 = vpop.permute.xlu0 %2674
        %2676 = vrot.lane.b32.xlu0 %v2669, 96
        %v2677 = vpop.permute.xlu0 %2676
        %2678 = vrot.lane.b32.xlu0 %v2670, 96
        %v2679 = vpop.permute.xlu0 %2678
        %2680 = vrot.lane.b32.xlu0 %v2671, 96
        %v2681 = vpop.permute.xlu0 %2680
        %2687 = vst.msk [vmem:[#allocation7 + $0x4] sm:$0xf] %vm2531, %v2673
        %2688 = vst.msk [vmem:[#allocation7 + $0x10] sm:$0xf] %vm2531, %v2675
        %2689 = vst.msk [vmem:[#allocation7 + $0x1c] sm:$0xf] %vm2531, %v2677
        %2690 = vst.msk [vmem:[#allocation7 + $0x28] sm:$0xf] %vm2531, %v2679
        %2691 = vst.msk [vmem:[#allocation7 + $0x34] sm:$0x3] %vm2536, %v2681
        %v2692 = vld [vmem:[#allocation6 + $0xe] sm:$0xff]
        %v2693 = vld [vmem:[#allocation6 + $0x16] sm:$0xff]
        %v2694 = vld [vmem:[#allocation6 + $0x1e] sm:$0xff]
        %v2695 = vld [vmem:[#allocation6 + $0x26] sm:$0xff]
        %v2696 = vld [vmem:[#allocation6 + $0x2e] sm:$0xf]
        %v2697 = vpack.c.bf16 %v2693, %v2692
        %v2698 = vpack.c.bf16 %v2695, %v2694
        %v2699 = vpack.c.bf16 %v2696, %v2696
        %v2703 = vunpack.c.l.b16 %v2697
        %v2704 = vunpack.c.h.b16 %v2697
        %v2705 = vunpack.c.l.b16 %v2698
        %v2706 = vunpack.c.h.b16 %v2698
        %v2707 = vunpack.c.l.b16 %v2699
        %v2708 = vpack.c.b16 %v2703, %v2703
        %v2709 = vpack.c.b16 %v2704, %v2704
        %v2710 = vpack.c.b16 %v2705, %v2705
        %v2711 = vpack.c.b16 %v2706, %v2706
        %v2712 = vpack.c.b16 %v2707, %v2707
        %2718 = vst.msk [vmem:[#allocation7 + $0x8] sm:$0xf] %vm2328, %v2708
        %2719 = vst.msk [vmem:[#allocation7 + $0x14] sm:$0xf] %vm2328, %v2709
        %2720 = vst.msk [vmem:[#allocation7 + $0x20] sm:$0xf] %vm2328, %v2710
        %2721 = vst.msk [vmem:[#allocation7 + $0x2c] sm:$0xf] %vm2328, %v2711
        %2722 = vst.msk [vmem:[#allocation7 + $0x38] sm:$0x3] %vm520, %v2712
        %v2723 = vld [vmem:[#allocation7] sm:$0xff]
        %v2724 = vld [vmem:[#allocation7 + $0x8] sm:$0xf]
        %v2725 = vld [vmem:[#allocation7 + $0xc] sm:$0xff]
        %v2726 = vld [vmem:[#allocation7 + $0x14] sm:$0xf]
        %v2727 = vld [vmem:[#allocation7 + $0x18] sm:$0xff]
        %v2728 = vld [vmem:[#allocation7 + $0x20] sm:$0xf]
        %v2729 = vld [vmem:[#allocation7 + $0x24] sm:$0xff]
        %v2730 = vld [vmem:[#allocation7 + $0x2c] sm:$0xf]
        %v2731 = vld [vmem:[#allocation7 + $0x30] sm:$0x33]
        %v2732 = vld [vmem:[#allocation7 + $0x38] sm:$0x3]
        %v2733 = vld [vmem:[%s7] sm:$0xf]
        %v2734 = vld [vmem:[%s7 + $0x4] sm:$0xf]
        %v2735 = vld [vmem:[%s7 + $0x8] sm:$0xf]
        %v2736 = vld [vmem:[%s7 + $0xc] sm:$0xf]
        %v2737 = vld [vmem:[%s7 + $0x10] sm:$0xf]
        %v2738 = vld [vmem:[%s7 + $0x14] sm:$0xf]
        %v2739 = vld [vmem:[%s7 + $0x18] sm:$0xf]
        %v2740 = vld [vmem:[%s7 + $0x1c] sm:$0xf]
        %v2741 = vld [vmem:[%s7 + $0x20] sm:$0xf]
        %v2742 = vld [vmem:[%s7 + $0x24] sm:$0xf]
        %v2743 = vld [vmem:[%s7 + $0x28] sm:$0xf]
        %v2744 = vld [vmem:[%s7 + $0x2c] sm:$0xf]
        %v2745 = vld [vmem:[%s7 + $0x30] sm:$0xf]
        %v2746 = vld [vmem:[%s7 + $0x34] sm:$0xf]
        %v2747 = vld [vmem:[%s7 + $0x38] sm:$0xf]
        %v2748 = vld [vmem:[%s7 + $0x3c] sm:$0xf]
        %v2749 = vld [vmem:[%s7 + $0x40] sm:$0xf]
        %v2750 = vld [vmem:[%s7 + $0x44] sm:$0xf]
        %v2751 = vld [vmem:[%s7 + $0x48] sm:$0xf]
        %v2752 = vld [vmem:[%s7 + $0x4c] sm:$0xf]
        %v2753 = vld [vmem:[%s7 + $0x50] sm:$0xf]
        %v2754 = vld [vmem:[%s7 + $0x54] sm:$0xf]
        %v2755 = vld [vmem:[%s7 + $0x58] sm:$0xf]
        %v2756 = vld [vmem:[%s7 + $0x5c] sm:$0xf]
        %v2757 = vld [vmem:[%s7 + $0x60] sm:$0xf]
        %v2758 = vld [vmem:[%s7 + $0x64] sm:$0xf]
        %v2759 = vld [vmem:[%s7 + $0x68] sm:$0xf]
        %v2760 = vld [vmem:[%s7 + $0x6c] sm:$0xf]
        %v2761 = vld [vmem:[%s7 + $0x70] sm:$0xf]
        %v2762 = vld [vmem:[%s7 + $0x74] sm:$0xf]
        %v2763 = vld [vmem:[%s7 + $0x78] sm:$0xf]
        %v2764 = vld [vmem:[%s7 + $0x7c] sm:$0xf]
        %v2765 = vld [vmem:[%s7 + $0x80] sm:$0xf]
        %v2766 = vld [vmem:[%s7 + $0x84] sm:$0xf]
        %v2767 = vld [vmem:[%s7 + $0x88] sm:$0xf]
        %v2768 = vld [vmem:[%s7 + $0x8c] sm:$0xf]
        %v2779 = vunpack.c.l.b16 %v2723
        %v2780 = vunpack.c.h.b16 %v2723
        %v2781 = vunpack.c.l.b16 %v2724
        %v2782 = vunpack.c.l.b16 %v2725
        %v2783 = vunpack.c.h.b16 %v2725
        %v2784 = vunpack.c.l.b16 %v2726
        %v2785 = vunpack.c.l.b16 %v2727
        %v2786 = vunpack.c.h.b16 %v2727
        %v2787 = vunpack.c.l.b16 %v2728
        %v2788 = vunpack.c.l.b16 %v2729
        %v2789 = vunpack.c.h.b16 %v2729
        %v2790 = vunpack.c.l.b16 %v2730
        %v2791 = vunpack.c.l.b16 %v2731
        %v2792 = vunpack.c.h.b16 %v2731
        %v2793 = vunpack.c.l.b16 %v2732
        %v2794 = vpack.c.b16 %v2782, %v2779
        %v2795 = vpack.c.b16 %v2783, %v2780
        %v2796 = vpack.c.b16 %v2784, %v2781
        %v2797 = vpack.c.b16 %v2788, %v2785
        %v2798 = vpack.c.b16 %v2789, %v2786
        %v2799 = vpack.c.b16 %v2790, %v2787
        %v2800 = vpack.c.b16 %v2791, %v2791
        %v2801 = vpack.c.b16 %v2792, %v2792
        %v2802 = vpack.c.b16 %v2793, %v2793
        %v2845 = vunpack.c.l.b16 %v2733
        %v2846 = vunpack.c.l.b16 %v2734
        %v2847 = vunpack.c.l.b16 %v2735
        %v2848 = vunpack.c.l.b16 %v2736
        %v2849 = vunpack.c.l.b16 %v2737
        %v2850 = vunpack.c.l.b16 %v2738
        %v2851 = vunpack.c.l.b16 %v2739
        %v2852 = vunpack.c.l.b16 %v2740
        %v2853 = vunpack.c.l.b16 %v2741
        %v2854 = vunpack.c.l.b16 %v2742
        %v2855 = vunpack.c.l.b16 %v2743
        %v2856 = vunpack.c.l.b16 %v2744
        %v2857 = vunpack.c.l.b16 %v2745
        %v2858 = vunpack.c.l.b16 %v2746
        %v2859 = vunpack.c.l.b16 %v2747
        %v2860 = vunpack.c.l.b16 %v2748
        %v2861 = vunpack.c.l.b16 %v2749
        %v2862 = vunpack.c.l.b16 %v2750
        %v2863 = vunpack.c.l.b16 %v2751
        %v2864 = vunpack.c.l.b16 %v2752
        %v2865 = vunpack.c.l.b16 %v2753
        %v2866 = vunpack.c.l.b16 %v2754
        %v2867 = vunpack.c.l.b16 %v2755
        %v2868 = vunpack.c.l.b16 %v2756
        %v2869 = vunpack.c.l.b16 %v2757
        %v2870 = vunpack.c.l.b16 %v2758
        %v2871 = vunpack.c.l.b16 %v2759
        %v2872 = vunpack.c.l.b16 %v2760
        %v2873 = vunpack.c.l.b16 %v2761
        %v2874 = vunpack.c.l.b16 %v2762
        %v2875 = vunpack.c.l.b16 %v2763
        %v2876 = vunpack.c.l.b16 %v2764
        %v2877 = vunpack.c.l.b16 %v2765
        %v2878 = vunpack.c.l.b16 %v2766
        %v2879 = vunpack.c.l.b16 %v2767
        %v2880 = vunpack.c.l.b16 %v2768
        %v2881 = vpack.c.b16 %v2846, %v2845
        %v2882 = vpack.c.b16 %v2848, %v2847
        %v2883 = vpack.c.b16 %v2850, %v2849
        %v2884 = vpack.c.b16 %v2852, %v2851
        %v2885 = vpack.c.b16 %v2854, %v2853
        %v2886 = vpack.c.b16 %v2856, %v2855
        %v2887 = vpack.c.b16 %v2858, %v2857
        %v2888 = vpack.c.b16 %v2860, %v2859
        %v2889 = vpack.c.b16 %v2862, %v2861
        %v2890 = vpack.c.b16 %v2864, %v2863
        %v2891 = vpack.c.b16 %v2866, %v2865
        %v2892 = vpack.c.b16 %v2868, %v2867
        %v2893 = vpack.c.b16 %v2870, %v2869
        %v2894 = vpack.c.b16 %v2872, %v2871
        %v2895 = vpack.c.b16 %v2874, %v2873
        %v2896 = vpack.c.b16 %v2876, %v2875
        %v2897 = vpack.c.b16 %v2878, %v2877
        %v2898 = vpack.c.b16 %v2880, %v2879
        %v2918 = vsel %vm513, %v2796, 0
        %v2921 = vsel %vm513, %v2799, 0
        %v2924 = vsel %vm513, %v2802, 0
        %2926 = vmatprep.subr.bf16.mxu0 0
        %2927 = vmatpush1.bf16.msra.mxu0 %v2881
        %2928 = vmatprep.subr.bf16.mxu0 0
        %2929 = vmatpush1.bf16.msra.mxu0 %v2882
        %2930 = vmatprep.subr.bf16.mxu0 0
        %2931 = vmatpush1.bf16.msra.mxu0 %v2883
        %2932 = vmatprep.subr.bf16.mxu0 0
        %2933 = vmatpush1.bf16.msra.mxu0 %v2884
        %2934 = vmatprep.subr.bf16.mxu0 0
        %2935 = vmatpush1.bf16.msra.mxu0 %v2885
        %2936 = vmatprep.subr.bf16.mxu0 0
        %2937 = vmatpush1.bf16.msra.mxu0 %v2886
        %2938 = vmatprep.subr.bf16.mxu0 0
        %2939 = vmatpush1.bf16.msra.mxu0 %v2887
        %2940 = vmatprep.subr.bf16.mxu0 0
        %2941 = vmatpush1.bf16.msra.mxu0 %v2888
        %2942 = vmatprep.subr.bf16.mxu0 0
        %2943 = vmatpush1.bf16.msra.mxu0 %v2889
        %2944 = vmatprep.subr.bf16.mxu0 0
        %2945 = vmatpush1.bf16.msra.mxu0 %v2890
        %2946 = vmatprep.subr.bf16.mxu0 0
        %2947 = vmatpush1.bf16.msra.mxu0 %v2891
        %2948 = vmatprep.subr.bf16.mxu0 0
        %2949 = vmatpush1.bf16.msra.mxu0 %v2892
        %2950 = vmatprep.subr.bf16.mxu0 0
        %2951 = vmatpush1.bf16.msra.mxu0 %v2893
        %2952 = vmatprep.subr.bf16.mxu0 0
        %2953 = vmatpush1.bf16.msra.mxu0 %v2894
        %2954 = vmatprep.subr.bf16.mxu0 0
        %2955 = vmatpush1.bf16.msra.mxu0 %v2895
        %2956 = vmatprep.subr.bf16.mxu0 0
        %2957 = vmatpush1.bf16.msra.mxu0 %v2896
        %2958 = vmatprep.mubr.bf16.mxu0 %v2795
        %2959 = vmatmul.mubr.bf16.gmra.mrb[0].mxu0 %v2794
        %v2960 = vpop.f32.mrb[0].mxu0
        %v2961 = vadd.f32 0.0, %v2960
        %v2962 = vpop.f32.mrb[0].mxu0
        %v2963 = vpop.f32.mrb[0].mxu0
        %v2964 = vadd.f32 0.0, %v2963
        %v2965 = vpop.f32.mrb[0].mxu0
        %2966 = vmatprep.mubr.bf16.mxu0 %v2798
        %2967 = vmatmul.mubr.bf16.gmra.mrb[0].mxu0 %v2797
        %v2968 = vpop.f32.mrb[0].mxu0
        %v2969 = vadd.f32 0.0, %v2968
        %v2970 = vpop.f32.mrb[0].mxu0
        %v2971 = vpop.f32.mrb[0].mxu0
        %v2972 = vadd.f32 0.0, %v2971
        %v2973 = vpop.f32.mrb[0].mxu0
        %2974 = vmatprep.mubr.bf16.mxu0 %v2801
        %2975 = vmatmul.mubr.bf16.gmra.mrb[0].mxu0 %v2800
        %v2976 = vpop.f32.mrb[0].mxu0
        %v2977 = vadd.f32 0.0, %v2976
        %v2978 = vpop.f32.mrb[0].mxu0
        %v2979 = vpop.f32.mrb[0].mxu0
        %v2980 = vpop.f32.mrb[0].mxu0
        %2981 = vdwg.mxu0
        %2982 = vmatprep.subr.bf16.mxu0 0
        %2983 = vmatpush1.bf16.msra.mxu0 %v2897
        %2984 = vmatprep.subr.bf16.mxu0 0
        %2985 = vmatpush1.bf16.msra.mxu0 %v2898
        %2986 = vmatprep.subr.bf16.mxu0 0
        %2987 = vmatpush1.bf16.msra.mxu0 0
        %2988 = vmatprep.subr.bf16.mxu0 0
        %2989 = vmatpush1.bf16.msra.mxu0 0
        %2990 = vmatprep.subr.bf16.mxu0 0
        %2991 = vmatpush1.bf16.msra.mxu0 0
        %2992 = vmatprep.subr.bf16.mxu0 0
        %2993 = vmatpush1.bf16.msra.mxu0 0
        %2994 = vmatprep.subr.bf16.mxu0 0
        %2995 = vmatpush1.bf16.msra.mxu0 0
        %2996 = vmatprep.subr.bf16.mxu0 0
        %2997 = vmatpush1.bf16.msra.mxu0 0
        %2998 = vmatprep.subr.bf16.mxu0 0
        %2999 = vmatpush1.bf16.msra.mxu0 0
        %3000 = vmatprep.subr.bf16.mxu0 0
        %3001 = vmatpush1.bf16.msra.mxu0 0
        %3002 = vmatprep.subr.bf16.mxu0 0
        %3003 = vmatpush1.bf16.msra.mxu0 0
        %3004 = vmatprep.subr.bf16.mxu0 0
        %3005 = vmatpush1.bf16.msra.mxu0 0
        %3006 = vmatprep.subr.bf16.mxu0 0
        %3007 = vmatpush1.bf16.msra.mxu0 0
        %3008 = vmatprep.subr.bf16.mxu0 0
        %3009 = vmatpush1.bf16.msra.mxu0 0
        %3010 = vmatprep.subr.bf16.mxu0 0
        %3011 = vmatpush1.bf16.msra.mxu0 0
        %3012 = vmatprep.subr.bf16.mxu0 0
        %3013 = vmatpush1.bf16.msra.mxu0 0
        %3014 = vmatprep.mubr.bf16.mxu0 0
        %3015 = vmatmul.mubr.bf16.gmra.mrb[0].mxu0 %v2918
        %v3016 = vpop.f32.mrb[0].mxu0
        %v3017 = vadd.f32 %v2961, %v3016
        %v3018 = vpop.f32.mrb[0].mxu0
        %v3019 = vpop.f32.mrb[0].mxu0
        %v3020 = vadd.f32 %v2964, %v3019
        %v3021 = vpop.f32.mrb[0].mxu0
        %3022 = vmatprep.mubr.bf16.mxu0 0
        %3023 = vmatmul.mubr.bf16.gmra.mrb[0].mxu0 %v2921
        %v3024 = vpop.f32.mrb[0].mxu0
        %v3025 = vadd.f32 %v2969, %v3024
        %v3026 = vpop.f32.mrb[0].mxu0
        %v3027 = vpop.f32.mrb[0].mxu0
        %v3028 = vadd.f32 %v2972, %v3027
        %v3029 = vpop.f32.mrb[0].mxu0
        %3030 = vmatprep.mubr.bf16.mxu0 0
        %3031 = vmatmul.mubr.bf16.gmra.mrb[0].mxu0 %v2924
        %v3032 = vpop.f32.mrb[0].mxu0
        %v3033 = vadd.f32 %v2977, %v3032
        %v3034 = vpop.f32.mrb[0].mxu0
        %v3035 = vpop.f32.mrb[0].mxu0
        %v3036 = vpop.f32.mrb[0].mxu0
        %3037 = vdwg.mxu0
        %v3038 = vld [vmem:[%s8] sm:$0x1]
        %v3040 = vlaneseq
        %v3041 = vshrl.u32 %v3040, 7
        %v3042 = vsub.s32 0, %v3041
        %v3043 = vrot.slane %v3038, %v3042
        %v3045 = vmul.f32 %v3017, %v3043
        %v3046 = vmul.f32 %v3020, %v3043
        %v3047 = vmul.f32 %v3025, %v3043
        %v3048 = vmul.f32 %v3028, %v3043
        %v3049 = vmul.f32 %v3033, %v3043
        %v3050 = vld [vmem:[%s9] sm:$0x1]
        %v3052 = vlaneseq
        %v3053 = vshrl.u32 %v3052, 7
        %v3054 = vsub.s32 0, %v3053
        %v3055 = vrot.slane %v3050, %v3054
        %v3057 = vadd.f32 %v3045, %v3055
        %v3058 = vadd.f32 %v3046, %v3055
        %v3059 = vadd.f32 %v3047, %v3055
        %v3060 = vadd.f32 %v3048, %v3055
        %v3061 = vadd.f32 %v3049, %v3055
        %v3062 = vmax.f32 %v3057, 0.0
        %v3063 = vmax.f32 %v3058, 0.0
        %v3064 = vmax.f32 %v3059, 0.0
        %v3065 = vmax.f32 %v3060, 0.0
        %v3066 = vmax.f32 %v3061, 0.0
        %3067 = vst.msk [vmem:[#allocation8] sm:$0xff] %vm522, %v3062
        %3068 = vst.msk [vmem:[#allocation8 + $0x8] sm:$0xff] %vm522, %v3063
        %3069 = vst.msk [vmem:[#allocation8 + $0x10] sm:$0xff] %vm522, %v3064
        %3070 = vst.msk [vmem:[#allocation8 + $0x18] sm:$0xff] %vm522, %v3065
        %vm3071 = vcmask 519168
        %3072 = vst.msk [vmem:[#allocation8 + $0x20] sm:$0xf] %vm3071, %v3066
        %s3073 = scalar_lea.vmem [#allocation8], 7
        %v3074 = vld [vmem:[%s3073] ss:$2 sm:$0x3]
        %s3075 = scalar_lea.vmem [#allocation8], 8
        %v3076 = vld [vmem:[%s3075] ss:$2 sm:$0x3]
        %v3077 = vmax.f32 %v3074, %v3076
        %s3078 = scalar_lea.vmem [#allocation8], 13
        %v3079 = vld [vmem:[%s3078] ss:$2 sm:$0x3]
        %s3080 = scalar_lea.vmem [#allocation8], 14
        %v3081 = vld [vmem:[%s3080] ss:$2 sm:$0x3]
        %v3082 = vmax.f32 %v3079, %v3081
        %v3083 = vmax.f32 %v3077, %v3082
        %3084 = vst.msk [vmem:[#allocation9 + $0xa] sm:$0x3] %vm526, %v3083
        %s3085 = scalar_lea.vmem [#allocation8], 19
        %v3086 = vld [vmem:[%s3085] ss:$2 sm:$0x3]
        %s3087 = scalar_lea.vmem [#allocation8], 20
        %v3088 = vld [vmem:[%s3087] ss:$2 sm:$0x3]
        %v3089 = vmax.f32 %v3086, %v3088
        %s3090 = scalar_lea.vmem [#allocation8], 25
        %v3091 = vld [vmem:[%s3090] ss:$2 sm:$0x3]
        %s3092 = scalar_lea.vmem [#allocation8], 26
        %v3093 = vld [vmem:[%s3092] ss:$2 sm:$0x3]
        %v3094 = vmax.f32 %v3091, %v3093
        %v3095 = vmax.f32 %v3089, %v3094
        %3096 = vst.msk [vmem:[#allocation9 + $0xe] sm:$0x3] %vm526, %v3095
        %v3097 = vld [vmem:[#allocation9] sm:$0xff]
        %v3098 = vld [vmem:[#allocation9 + $0x8] sm:$0xff]
        %v3099 = vpack.c.bf16 %v3098, %v3097
        %3100 = vst.msk [vmem:[#allocation10] sm:$0xff] %vm522, %v3099
        %v3101 = vld [vmem:[#allocation9 + $0x1] sm:$0xff]
        %v3102 = vld [vmem:[#allocation9 + $0x9] sm:$0xff]
        %v3103 = vpack.c.bf16 %v3102, %v3101
        %3105 = vrot.lane.b32.xlu0 %v3103, 64
        %v3106 = vpop.permute.xlu0 %3105
        %vm3108 = vcmask 1048064
        %3109 = vst.msk [vmem:[#allocation10] sm:$0xff] %vm3108, %v3106
        %v3110 = vld [vmem:[#allocation9 + $0x2] sm:$0xff]
        %v3111 = vld [vmem:[#allocation9 + $0xa] sm:$0xff]
        %v3112 = vpack.c.bf16 %v3111, %v3110
        %3113 = vst.msk [vmem:[#allocation10 + $0x8] sm:$0xff] %vm522, %v3112
        %v3114 = vld [vmem:[#allocation9 + $0x4] sm:$0xff]
        %v3115 = vld [vmem:[#allocation9 + $0xc] sm:$0xff]
        %v3116 = vpack.c.bf16 %v3115, %v3114
        %3118 = vrot.lane.b32.xlu0 %v3116, 64
        %v3119 = vpop.permute.xlu0 %3118
        %3121 = vst.msk [vmem:[#allocation10 + $0x8] sm:$0xff] %vm3108, %v3119
        %v3122 = vld [vmem:[#allocation9 + $0x5] sm:$0xff]
        %v3123 = vld [vmem:[#allocation9 + $0xd] sm:$0xff]
        %v3124 = vpack.c.bf16 %v3123, %v3122
        %3125 = vst.msk [vmem:[#allocation10 + $0x10] sm:$0xff] %vm522, %v3124
        %v3126 = vld [vmem:[#allocation9 + $0x6] sm:$0xff]
        %v3127 = vld [vmem:[#allocation9 + $0xe] sm:$0xff]
        %v3128 = vpack.c.bf16 %v3127, %v3126
        %3130 = vrot.lane.b32.xlu0 %v3128, 64
        %v3131 = vpop.permute.xlu0 %3130
        %3133 = vst.msk [vmem:[#allocation10 + $0x10] sm:$0xff] %vm3108, %v3131
        %v3134 = vld [vmem:[#allocation9 + $0x8] sm:$0xff]
        %v3135 = vld [vmem:[#allocation9 + $0x10] sm:$0xff]
        %v3136 = vpack.c.bf16 %v3135, %v3134
        %3137 = vst.msk [vmem:[#allocation10 + $0x18] sm:$0xff] %vm522, %v3136
        %v3138 = vld [vmem:[#allocation9 + $0x9] sm:$0xff]
        %v3139 = vld [vmem:[#allocation9 + $0x11] sm:$0xff]
        %v3140 = vpack.c.bf16 %v3139, %v3138
        %3142 = vrot.lane.b32.xlu0 %v3140, 64
        %v3143 = vpop.permute.xlu0 %3142
        %3145 = vst.msk [vmem:[#allocation10 + $0x18] sm:$0xff] %vm3108, %v3143
        %v3146 = vld [vmem:[#allocation9 + $0xa] sm:$0xff]
        %v3147 = vld [vmem:[#allocation9 + $0x12] sm:$0xff]
        %v3148 = vpack.c.bf16 %v3147, %v3146
        %3149 = vst.msk [vmem:[#allocation10 + $0x20] sm:$0xff] %vm522, %v3148
        %v3150 = vld [vmem:[#allocation10] sm:$0xff]
        %v3151 = vld [vmem:[#allocation10 + $0x8] sm:$0xff]
        %v3152 = vld [vmem:[#allocation10 + $0x10] sm:$0xff]
        %v3153 = vld [vmem:[#allocation10 + $0x18] sm:$0xff]
        %v3154 = vld [vmem:[#allocation10 + $0x20] sm:$0xff]
        %v3155 = vld [vmem:[%s10] sm:$0xff]
        %v3156 = vld [vmem:[%s10 + $0x8] sm:$0xff]
        %v3157 = vld [vmem:[%s10 + $0x10] sm:$0xff]
        %v3158 = vld [vmem:[%s10 + $0x18] sm:$0xff]
        %v3159 = vld [vmem:[%s10 + $0x20] sm:$0xff]
        %v3160 = vld [vmem:[%s10 + $0x28] sm:$0xff]
        %v3161 = vld [vmem:[%s10 + $0x30] sm:$0xff]
        %v3162 = vld [vmem:[%s10 + $0x38] sm:$0xff]
        %v3163 = vld [vmem:[%s10 + $0x40] sm:$0xff]
        %v3164 = vld [vmem:[%s10 + $0x48] sm:$0xff]
        %v3165 = vld [vmem:[%s10 + $0x50] sm:$0xff]
        %v3166 = vld [vmem:[%s10 + $0x58] sm:$0xff]
        %v3167 = vld [vmem:[%s10 + $0x60] sm:$0xff]
        %v3168 = vld [vmem:[%s10 + $0x68] sm:$0xff]
        %v3169 = vld [vmem:[%s10 + $0x70] sm:$0xff]
        %v3170 = vld [vmem:[%s10 + $0x78] sm:$0xff]
        %v3171 = vld [vmem:[%s10 + $0x80] sm:$0xff]
        %v3172 = vld [vmem:[%s10 + $0x88] sm:$0xff]
        %v3173 = vld [vmem:[%s10 + $0x90] sm:$0xff]
        %v3174 = vld [vmem:[%s10 + $0x98] sm:$0xff]
        %v3175 = vld [vmem:[%s10 + $0xa0] sm:$0xff]
        %v3176 = vld [vmem:[%s10 + $0xa8] sm:$0xff]
        %v3177 = vld [vmem:[%s10 + $0xb0] sm:$0xff]
        %v3178 = vld [vmem:[%s10 + $0xb8] sm:$0xff]
        %v3179 = vld [vmem:[%s10 + $0xc0] sm:$0xff]
        %v3180 = vld [vmem:[%s10 + $0xc8] sm:$0xff]
        %v3181 = vld [vmem:[%s10 + $0xd0] sm:$0xff]
        %v3182 = vld [vmem:[%s10 + $0xd8] sm:$0xff]
        %v3183 = vld [vmem:[%s10 + $0xe0] sm:$0xff]
        %v3184 = vld [vmem:[%s10 + $0xe8] sm:$0xff]
        %v3185 = vld [vmem:[%s10 + $0xf0] sm:$0xff]
        %v3186 = vld [vmem:[%s10 + $0xf8] sm:$0xff]
        %v3187 = vld [vmem:[%s10 + $0x100] sm:$0xff]
        %v3188 = vld [vmem:[%s10 + $0x108] sm:$0xff]
        %v3189 = vld [vmem:[%s10 + $0x110] sm:$0xff]
        %v3190 = vld [vmem:[%s10 + $0x118] sm:$0xff]
        %v3191 = vld [vmem:[%s10 + $0x120] sm:$0xff]
        %v3192 = vld [vmem:[%s10 + $0x128] sm:$0xff]
        %v3193 = vld [vmem:[%s10 + $0x130] sm:$0xff]
        %v3194 = vld [vmem:[%s10 + $0x138] sm:$0xff]
        %v3195 = vld [vmem:[%s10 + $0x140] sm:$0xff]
        %v3196 = vld [vmem:[%s10 + $0x148] sm:$0xff]
        %v3197 = vld [vmem:[%s10 + $0x150] sm:$0xff]
        %v3198 = vld [vmem:[%s10 + $0x158] sm:$0xff]
        %v3199 = vld [vmem:[%s10 + $0x160] sm:$0xff]
        %v3200 = vld [vmem:[%s10 + $0x168] sm:$0xff]
        %v3201 = vld [vmem:[%s10 + $0x170] sm:$0xff]
        %v3202 = vld [vmem:[%s10 + $0x178] sm:$0xff]
        %v3203 = vld [vmem:[%s10 + $0x180] sm:$0xff]
        %v3204 = vld [vmem:[%s10 + $0x188] sm:$0xff]
        %v3205 = vld [vmem:[%s10 + $0x190] sm:$0xff]
        %v3206 = vld [vmem:[%s10 + $0x198] sm:$0xff]
        %v3207 = vld [vmem:[%s10 + $0x1a0] sm:$0xff]
        %v3208 = vld [vmem:[%s10 + $0x1a8] sm:$0xff]
        %v3209 = vld [vmem:[%s10 + $0x1b0] sm:$0xff]
        %v3210 = vld [vmem:[%s10 + $0x1b8] sm:$0xff]
        %v3211 = vld [vmem:[%s10 + $0x1c0] sm:$0xff]
        %v3212 = vld [vmem:[%s10 + $0x1c8] sm:$0xff]
        %v3213 = vld [vmem:[%s10 + $0x1d0] sm:$0xff]
        %v3214 = vld [vmem:[%s10 + $0x1d8] sm:$0xff]
        %v3215 = vld [vmem:[%s10 + $0x1e0] sm:$0xff]
        %v3216 = vld [vmem:[%s10 + $0x1e8] sm:$0xff]
        %v3217 = vld [vmem:[%s10 + $0x1f0] sm:$0xff]
        %v3218 = vld [vmem:[%s10 + $0x1f8] sm:$0xff]
        %v3219 = vld [vmem:[%s10 + $0x200] sm:$0xff]
        %v3220 = vld [vmem:[%s10 + $0x208] sm:$0xff]
        %v3221 = vld [vmem:[%s10 + $0x210] sm:$0xff]
        %v3222 = vld [vmem:[%s10 + $0x218] sm:$0xff]
        %v3223 = vld [vmem:[%s10 + $0x220] sm:$0xff]
        %v3224 = vld [vmem:[%s10 + $0x228] sm:$0xff]
        %v3225 = vld [vmem:[%s10 + $0x230] sm:$0xff]
        %v3226 = vld [vmem:[%s10 + $0x238] sm:$0xff]
        %v3227 = vld [vmem:[%s10 + $0x240] sm:$0xff]
        %v3228 = vld [vmem:[%s10 + $0x248] sm:$0xff]
        %v3229 = vld [vmem:[%s10 + $0x250] sm:$0xff]
        %v3230 = vld [vmem:[%s10 + $0x258] sm:$0xff]
        %v3231 = vld [vmem:[%s10 + $0x260] sm:$0xff]
        %v3232 = vld [vmem:[%s10 + $0x268] sm:$0xff]
        %v3233 = vld [vmem:[%s10 + $0x270] sm:$0xff]
        %v3234 = vld [vmem:[%s10 + $0x278] sm:$0xff]
        %v3235 = vld [vmem:[%s10 + $0x280] sm:$0xff]
        %v3236 = vld [vmem:[%s10 + $0x288] sm:$0xff]
        %v3237 = vld [vmem:[%s10 + $0x290] sm:$0xff]
        %v3238 = vld [vmem:[%s10 + $0x298] sm:$0xff]
        %v3239 = vld [vmem:[%s10 + $0x2a0] sm:$0xff]
        %v3240 = vld [vmem:[%s10 + $0x2a8] sm:$0xff]
        %v3241 = vld [vmem:[%s10 + $0x2b0] sm:$0xff]
        %v3242 = vld [vmem:[%s10 + $0x2b8] sm:$0xff]
        %v3243 = vld [vmem:[%s10 + $0x2c0] sm:$0xff]
        %v3244 = vld [vmem:[%s10 + $0x2c8] sm:$0xff]
        %v3245 = vld [vmem:[%s10 + $0x2d0] sm:$0xff]
        %v3246 = vld [vmem:[%s10 + $0x2d8] sm:$0xff]
        %v3247 = vld [vmem:[%s10 + $0x2e0] sm:$0xff]
        %v3248 = vld [vmem:[%s10 + $0x2e8] sm:$0xff]
        %v3249 = vld [vmem:[%s10 + $0x2f0] sm:$0xff]
        %v3250 = vld [vmem:[%s10 + $0x2f8] sm:$0xff]
        %v3251 = vld [vmem:[%s10 + $0x300] sm:$0xff]
        %v3252 = vld [vmem:[%s10 + $0x308] sm:$0xff]
        %v3253 = vld [vmem:[%s10 + $0x310] sm:$0xff]
        %v3254 = vld [vmem:[%s10 + $0x318] sm:$0xff]
        %v3255 = vld [vmem:[%s10 + $0x320] sm:$0xff]
        %v3256 = vld [vmem:[%s10 + $0x328] sm:$0xff]
        %v3257 = vld [vmem:[%s10 + $0x330] sm:$0xff]
        %v3258 = vld [vmem:[%s10 + $0x338] sm:$0xff]
        %v3259 = vld [vmem:[%s10 + $0x340] sm:$0xff]
        %v3260 = vld [vmem:[%s10 + $0x348] sm:$0xff]
        %v3261 = vld [vmem:[%s10 + $0x350] sm:$0xff]
        %v3262 = vld [vmem:[%s10 + $0x358] sm:$0xff]
        %v3263 = vld [vmem:[%s10 + $0x360] sm:$0xff]
        %v3264 = vld [vmem:[%s10 + $0x368] sm:$0xff]
        %v3265 = vld [vmem:[%s10 + $0x370] sm:$0xff]
        %v3266 = vld [vmem:[%s10 + $0x378] sm:$0xff]
        %v3267 = vld [vmem:[%s10 + $0x380] sm:$0xff]
        %v3268 = vld [vmem:[%s10 + $0x388] sm:$0xff]
        %v3269 = vld [vmem:[%s10 + $0x390] sm:$0xff]
        %v3270 = vld [vmem:[%s10 + $0x398] sm:$0xff]
        %v3271 = vld [vmem:[%s10 + $0x3a0] sm:$0xff]
        %v3272 = vld [vmem:[%s10 + $0x3a8] sm:$0xff]
        %v3273 = vld [vmem:[%s10 + $0x3b0] sm:$0xff]
        %v3274 = vld [vmem:[%s10 + $0x3b8] sm:$0xff]
        %v3275 = vld [vmem:[%s10 + $0x3c0] sm:$0xff]
        %v3276 = vld [vmem:[%s10 + $0x3c8] sm:$0xff]
        %v3277 = vld [vmem:[%s10 + $0x3d0] sm:$0xff]
        %v3278 = vld [vmem:[%s10 + $0x3d8] sm:$0xff]
        %v3279 = vld [vmem:[%s10 + $0x3e0] sm:$0xff]
        %v3280 = vld [vmem:[%s10 + $0x3e8] sm:$0xff]
        %v3281 = vld [vmem:[%s10 + $0x3f0] sm:$0xff]
        %v3282 = vld [vmem:[%s10 + $0x3f8] sm:$0xff]
        %v3283 = vld [vmem:[%s10 + $0x400] sm:$0xff]
        %v3284 = vld [vmem:[%s10 + $0x408] sm:$0xff]
        %v3285 = vld [vmem:[%s10 + $0x410] sm:$0xff]
        %v3286 = vld [vmem:[%s10 + $0x418] sm:$0xff]
        %v3287 = vld [vmem:[%s10 + $0x420] sm:$0xff]
        %v3288 = vld [vmem:[%s10 + $0x428] sm:$0xff]
        %v3289 = vld [vmem:[%s10 + $0x430] sm:$0xff]
        %v3290 = vld [vmem:[%s10 + $0x438] sm:$0xff]
        %v3291 = vld [vmem:[%s10 + $0x440] sm:$0xff]
        %v3292 = vld [vmem:[%s10 + $0x448] sm:$0xff]
        %v3293 = vld [vmem:[%s10 + $0x450] sm:$0xff]
        %v3294 = vld [vmem:[%s10 + $0x458] sm:$0xff]
        %v3295 = vld [vmem:[%s10 + $0x460] sm:$0xff]
        %v3296 = vld [vmem:[%s10 + $0x468] sm:$0xff]
        %v3297 = vld [vmem:[%s10 + $0x470] sm:$0xff]
        %v3298 = vld [vmem:[%s10 + $0x478] sm:$0xff]
        %v3443 = vunpack.c.l.b16 %v3155
        %v3444 = vunpack.c.h.b16 %v3155
        %v3445 = vunpack.c.l.b16 %v3156
        %v3446 = vunpack.c.h.b16 %v3156
        %v3447 = vunpack.c.l.b16 %v3157
        %v3448 = vunpack.c.h.b16 %v3157
        %v3449 = vunpack.c.l.b16 %v3158
        %v3450 = vunpack.c.h.b16 %v3158
        %v3451 = vunpack.c.l.b16 %v3159
        %v3452 = vunpack.c.h.b16 %v3159
        %v3453 = vunpack.c.l.b16 %v3160
        %v3454 = vunpack.c.h.b16 %v3160
        %v3455 = vunpack.c.l.b16 %v3161
        %v3456 = vunpack.c.h.b16 %v3161
        %v3457 = vunpack.c.l.b16 %v3162
        %v3458 = vunpack.c.h.b16 %v3162
        %v3459 = vunpack.c.l.b16 %v3163
        %v3460 = vunpack.c.h.b16 %v3163
        %v3461 = vunpack.c.l.b16 %v3164
        %v3462 = vunpack.c.h.b16 %v3164
        %v3463 = vunpack.c.l.b16 %v3165
        %v3464 = vunpack.c.h.b16 %v3165
        %v3465 = vunpack.c.l.b16 %v3166
        %v3466 = vunpack.c.h.b16 %v3166
        %v3467 = vunpack.c.l.b16 %v3167
        %v3468 = vunpack.c.h.b16 %v3167
        %v3469 = vunpack.c.l.b16 %v3168
        %v3470 = vunpack.c.h.b16 %v3168
        %v3471 = vunpack.c.l.b16 %v3169
        %v3472 = vunpack.c.h.b16 %v3169
        %v3473 = vunpack.c.l.b16 %v3170
        %v3474 = vunpack.c.h.b16 %v3170
        %v3475 = vunpack.c.l.b16 %v3171
        %v3476 = vunpack.c.h.b16 %v3171
        %v3477 = vunpack.c.l.b16 %v3172
        %v3478 = vunpack.c.h.b16 %v3172
        %v3479 = vunpack.c.l.b16 %v3173
        %v3480 = vunpack.c.h.b16 %v3173
        %v3481 = vunpack.c.l.b16 %v3174
        %v3482 = vunpack.c.h.b16 %v3174
        %v3483 = vunpack.c.l.b16 %v3175
        %v3484 = vunpack.c.h.b16 %v3175
        %v3485 = vunpack.c.l.b16 %v3176
        %v3486 = vunpack.c.h.b16 %v3176
        %v3487 = vunpack.c.l.b16 %v3177
        %v3488 = vunpack.c.h.b16 %v3177
        %v3489 = vunpack.c.l.b16 %v3178
        %v3490 = vunpack.c.h.b16 %v3178
        %v3491 = vunpack.c.l.b16 %v3179
        %v3492 = vunpack.c.h.b16 %v3179
        %v3493 = vunpack.c.l.b16 %v3180
        %v3494 = vunpack.c.h.b16 %v3180
        %v3495 = vunpack.c.l.b16 %v3181
        %v3496 = vunpack.c.h.b16 %v3181
        %v3497 = vunpack.c.l.b16 %v3182
        %v3498 = vunpack.c.h.b16 %v3182
        %v3499 = vunpack.c.l.b16 %v3183
        %v3500 = vunpack.c.h.b16 %v3183
        %v3501 = vunpack.c.l.b16 %v3184
        %v3502 = vunpack.c.h.b16 %v3184
        %v3503 = vunpack.c.l.b16 %v3185
        %v3504 = vunpack.c.h.b16 %v3185
        %v3505 = vunpack.c.l.b16 %v3186
        %v3506 = vunpack.c.h.b16 %v3186
        %v3507 = vunpack.c.l.b16 %v3187
        %v3508 = vunpack.c.h.b16 %v3187
        %v3509 = vunpack.c.l.b16 %v3188
        %v3510 = vunpack.c.h.b16 %v3188
        %v3511 = vunpack.c.l.b16 %v3189
        %v3512 = vunpack.c.h.b16 %v3189
        %v3513 = vunpack.c.l.b16 %v3190
        %v3514 = vunpack.c.h.b16 %v3190
        %v3515 = vunpack.c.l.b16 %v3191
        %v3516 = vunpack.c.h.b16 %v3191
        %v3517 = vunpack.c.l.b16 %v3192
        %v3518 = vunpack.c.h.b16 %v3192
        %v3519 = vunpack.c.l.b16 %v3193
        %v3520 = vunpack.c.h.b16 %v3193
        %v3521 = vunpack.c.l.b16 %v3194
        %v3522 = vunpack.c.h.b16 %v3194
        %v3523 = vunpack.c.l.b16 %v3195
        %v3524 = vunpack.c.h.b16 %v3195
        %v3525 = vunpack.c.l.b16 %v3196
        %v3526 = vunpack.c.h.b16 %v3196
        %v3527 = vunpack.c.l.b16 %v3197
        %v3528 = vunpack.c.h.b16 %v3197
        %v3529 = vunpack.c.l.b16 %v3198
        %v3530 = vunpack.c.h.b16 %v3198
        %v3531 = vunpack.c.l.b16 %v3199
        %v3532 = vunpack.c.h.b16 %v3199
        %v3533 = vunpack.c.l.b16 %v3200
        %v3534 = vunpack.c.h.b16 %v3200
        %v3535 = vunpack.c.l.b16 %v3201
        %v3536 = vunpack.c.h.b16 %v3201
        %v3537 = vunpack.c.l.b16 %v3202
        %v3538 = vunpack.c.h.b16 %v3202
        %v3539 = vunpack.c.l.b16 %v3203
        %v3540 = vunpack.c.h.b16 %v3203
        %v3541 = vunpack.c.l.b16 %v3204
        %v3542 = vunpack.c.h.b16 %v3204
        %v3543 = vunpack.c.l.b16 %v3205
        %v3544 = vunpack.c.h.b16 %v3205
        %v3545 = vunpack.c.l.b16 %v3206
        %v3546 = vunpack.c.h.b16 %v3206
        %v3547 = vunpack.c.l.b16 %v3207
        %v3548 = vunpack.c.h.b16 %v3207
        %v3549 = vunpack.c.l.b16 %v3208
        %v3550 = vunpack.c.h.b16 %v3208
        %v3551 = vunpack.c.l.b16 %v3209
        %v3552 = vunpack.c.h.b16 %v3209
        %v3553 = vunpack.c.l.b16 %v3210
        %v3554 = vunpack.c.h.b16 %v3210
        %v3555 = vunpack.c.l.b16 %v3211
        %v3556 = vunpack.c.h.b16 %v3211
        %v3557 = vunpack.c.l.b16 %v3212
        %v3558 = vunpack.c.h.b16 %v3212
        %v3559 = vunpack.c.l.b16 %v3213
        %v3560 = vunpack.c.h.b16 %v3213
        %v3561 = vunpack.c.l.b16 %v3214
        %v3562 = vunpack.c.h.b16 %v3214
        %v3563 = vunpack.c.l.b16 %v3215
        %v3564 = vunpack.c.h.b16 %v3215
        %v3565 = vunpack.c.l.b16 %v3216
        %v3566 = vunpack.c.h.b16 %v3216
        %v3567 = vunpack.c.l.b16 %v3217
        %v3568 = vunpack.c.h.b16 %v3217
        %v3569 = vunpack.c.l.b16 %v3218
        %v3570 = vunpack.c.h.b16 %v3218
        %v3571 = vunpack.c.l.b16 %v3219
        %v3572 = vunpack.c.h.b16 %v3219
        %v3573 = vunpack.c.l.b16 %v3220
        %v3574 = vunpack.c.h.b16 %v3220
        %v3575 = vunpack.c.l.b16 %v3221
        %v3576 = vunpack.c.h.b16 %v3221
        %v3577 = vunpack.c.l.b16 %v3222
        %v3578 = vunpack.c.h.b16 %v3222
        %v3579 = vunpack.c.l.b16 %v3223
        %v3580 = vunpack.c.h.b16 %v3223
        %v3581 = vunpack.c.l.b16 %v3224
        %v3582 = vunpack.c.h.b16 %v3224
        %v3583 = vunpack.c.l.b16 %v3225
        %v3584 = vunpack.c.h.b16 %v3225
        %v3585 = vunpack.c.l.b16 %v3226
        %v3586 = vunpack.c.h.b16 %v3226
        %v3587 = vunpack.c.l.b16 %v3227
        %v3588 = vunpack.c.h.b16 %v3227
        %v3589 = vunpack.c.l.b16 %v3228
        %v3590 = vunpack.c.h.b16 %v3228
        %v3591 = vunpack.c.l.b16 %v3229
        %v3592 = vunpack.c.h.b16 %v3229
        %v3593 = vunpack.c.l.b16 %v3230
        %v3594 = vunpack.c.h.b16 %v3230
        %v3595 = vunpack.c.l.b16 %v3231
        %v3596 = vunpack.c.h.b16 %v3231
        %v3597 = vunpack.c.l.b16 %v3232
        %v3598 = vunpack.c.h.b16 %v3232
        %v3599 = vunpack.c.l.b16 %v3233
        %v3600 = vunpack.c.h.b16 %v3233
        %v3601 = vunpack.c.l.b16 %v3234
        %v3602 = vunpack.c.h.b16 %v3234
        %v3603 = vunpack.c.l.b16 %v3235
        %v3604 = vunpack.c.h.b16 %v3235
        %v3605 = vunpack.c.l.b16 %v3236
        %v3606 = vunpack.c.h.b16 %v3236
        %v3607 = vunpack.c.l.b16 %v3237
        %v3608 = vunpack.c.h.b16 %v3237
        %v3609 = vunpack.c.l.b16 %v3238
        %v3610 = vunpack.c.h.b16 %v3238
        %v3611 = vunpack.c.l.b16 %v3239
        %v3612 = vunpack.c.h.b16 %v3239
        %v3613 = vunpack.c.l.b16 %v3240
        %v3614 = vunpack.c.h.b16 %v3240
        %v3615 = vunpack.c.l.b16 %v3241
        %v3616 = vunpack.c.h.b16 %v3241
        %v3617 = vunpack.c.l.b16 %v3242
        %v3618 = vunpack.c.h.b16 %v3242
        %v3619 = vunpack.c.l.b16 %v3243
        %v3620 = vunpack.c.h.b16 %v3243
        %v3621 = vunpack.c.l.b16 %v3244
        %v3622 = vunpack.c.h.b16 %v3244
        %v3623 = vunpack.c.l.b16 %v3245
        %v3624 = vunpack.c.h.b16 %v3245
        %v3625 = vunpack.c.l.b16 %v3246
        %v3626 = vunpack.c.h.b16 %v3246
        %v3627 = vunpack.c.l.b16 %v3247
        %v3628 = vunpack.c.h.b16 %v3247
        %v3629 = vunpack.c.l.b16 %v3248
        %v3630 = vunpack.c.h.b16 %v3248
        %v3631 = vunpack.c.l.b16 %v3249
        %v3632 = vunpack.c.h.b16 %v3249
        %v3633 = vunpack.c.l.b16 %v3250
        %v3634 = vunpack.c.h.b16 %v3250
        %v3635 = vunpack.c.l.b16 %v3251
        %v3636 = vunpack.c.h.b16 %v3251
        %v3637 = vunpack.c.l.b16 %v3252
        %v3638 = vunpack.c.h.b16 %v3252
        %v3639 = vunpack.c.l.b16 %v3253
        %v3640 = vunpack.c.h.b16 %v3253
        %v3641 = vunpack.c.l.b16 %v3254
        %v3642 = vunpack.c.h.b16 %v3254
        %v3643 = vunpack.c.l.b16 %v3255
        %v3644 = vunpack.c.h.b16 %v3255
        %v3645 = vunpack.c.l.b16 %v3256
        %v3646 = vunpack.c.h.b16 %v3256
        %v3647 = vunpack.c.l.b16 %v3257
        %v3648 = vunpack.c.h.b16 %v3257
        %v3649 = vunpack.c.l.b16 %v3258
        %v3650 = vunpack.c.h.b16 %v3258
        %v3651 = vunpack.c.l.b16 %v3259
        %v3652 = vunpack.c.h.b16 %v3259
        %v3653 = vunpack.c.l.b16 %v3260
        %v3654 = vunpack.c.h.b16 %v3260
        %v3655 = vunpack.c.l.b16 %v3261
        %v3656 = vunpack.c.h.b16 %v3261
        %v3657 = vunpack.c.l.b16 %v3262
        %v3658 = vunpack.c.h.b16 %v3262
        %v3659 = vunpack.c.l.b16 %v3263
        %v3660 = vunpack.c.h.b16 %v3263
        %v3661 = vunpack.c.l.b16 %v3264
        %v3662 = vunpack.c.h.b16 %v3264
        %v3663 = vunpack.c.l.b16 %v3265
        %v3664 = vunpack.c.h.b16 %v3265
        %v3665 = vunpack.c.l.b16 %v3266
        %v3666 = vunpack.c.h.b16 %v3266
        %v3667 = vunpack.c.l.b16 %v3267
        %v3668 = vunpack.c.h.b16 %v3267
        %v3669 = vunpack.c.l.b16 %v3268
        %v3670 = vunpack.c.h.b16 %v3268
        %v3671 = vunpack.c.l.b16 %v3269
        %v3672 = vunpack.c.h.b16 %v3269
        %v3673 = vunpack.c.l.b16 %v3270
        %v3674 = vunpack.c.h.b16 %v3270
        %v3675 = vunpack.c.l.b16 %v3271
        %v3676 = vunpack.c.h.b16 %v3271
        %v3677 = vunpack.c.l.b16 %v3272
        %v3678 = vunpack.c.h.b16 %v3272
        %v3679 = vunpack.c.l.b16 %v3273
        %v3680 = vunpack.c.h.b16 %v3273
        %v3681 = vunpack.c.l.b16 %v3274
        %v3682 = vunpack.c.h.b16 %v3274
        %v3683 = vunpack.c.l.b16 %v3275
        %v3684 = vunpack.c.h.b16 %v3275
        %v3685 = vunpack.c.l.b16 %v3276
        %v3686 = vunpack.c.h.b16 %v3276
        %v3687 = vunpack.c.l.b16 %v3277
        %v3688 = vunpack.c.h.b16 %v3277
        %v3689 = vunpack.c.l.b16 %v3278
        %v3690 = vunpack.c.h.b16 %v3278
        %v3691 = vunpack.c.l.b16 %v3279
        %v3692 = vunpack.c.h.b16 %v3279
        %v3693 = vunpack.c.l.b16 %v3280
        %v3694 = vunpack.c.h.b16 %v3280
        %v3695 = vunpack.c.l.b16 %v3281
        %v3696 = vunpack.c.h.b16 %v3281
        %v3697 = vunpack.c.l.b16 %v3282
        %v3698 = vunpack.c.h.b16 %v3282
        %v3699 = vunpack.c.l.b16 %v3283
        %v3700 = vunpack.c.h.b16 %v3283
        %v3701 = vunpack.c.l.b16 %v3284
        %v3702 = vunpack.c.h.b16 %v3284
        %v3703 = vunpack.c.l.b16 %v3285
        %v3704 = vunpack.c.h.b16 %v3285
        %v3705 = vunpack.c.l.b16 %v3286
        %v3706 = vunpack.c.h.b16 %v3286
        %v3707 = vunpack.c.l.b16 %v3287
        %v3708 = vunpack.c.h.b16 %v3287
        %v3709 = vunpack.c.l.b16 %v3288
        %v3710 = vunpack.c.h.b16 %v3288
        %v3711 = vunpack.c.l.b16 %v3289
        %v3712 = vunpack.c.h.b16 %v3289
        %v3713 = vunpack.c.l.b16 %v3290
        %v3714 = vunpack.c.h.b16 %v3290
        %v3715 = vunpack.c.l.b16 %v3291
        %v3716 = vunpack.c.h.b16 %v3291
        %v3717 = vunpack.c.l.b16 %v3292
        %v3718 = vunpack.c.h.b16 %v3292
        %v3719 = vunpack.c.l.b16 %v3293
        %v3720 = vunpack.c.h.b16 %v3293
        %v3721 = vunpack.c.l.b16 %v3294
        %v3722 = vunpack.c.h.b16 %v3294
        %v3723 = vunpack.c.l.b16 %v3295
        %v3724 = vunpack.c.h.b16 %v3295
        %v3725 = vunpack.c.l.b16 %v3296
        %v3726 = vunpack.c.h.b16 %v3296
        %v3727 = vunpack.c.l.b16 %v3297
        %v3728 = vunpack.c.h.b16 %v3297
        %v3729 = vunpack.c.l.b16 %v3298
        %v3730 = vunpack.c.h.b16 %v3298
        %v3731 = vpack.c.b16 %v3447, %v3443
        %v3732 = vpack.c.b16 %v3448, %v3444
        %v3733 = vpack.c.b16 %v3449, %v3445
        %v3734 = vpack.c.b16 %v3450, %v3446
        %v3735 = vpack.c.b16 %v3455, %v3451
        %v3736 = vpack.c.b16 %v3456, %v3452
        %v3737 = vpack.c.b16 %v3457, %v3453
        %v3738 = vpack.c.b16 %v3458, %v3454
        %v3739 = vpack.c.b16 %v3463, %v3459
        %v3740 = vpack.c.b16 %v3464, %v3460
        %v3741 = vpack.c.b16 %v3465, %v3461
        %v3742 = vpack.c.b16 %v3466, %v3462
        %v3743 = vpack.c.b16 %v3471, %v3467
        %v3744 = vpack.c.b16 %v3472, %v3468
        %v3745 = vpack.c.b16 %v3473, %v3469
        %v3746 = vpack.c.b16 %v3474, %v3470
        %v3747 = vpack.c.b16 %v3479, %v3475
        %v3748 = vpack.c.b16 %v3480, %v3476
        %v3749 = vpack.c.b16 %v3481, %v3477
        %v3750 = vpack.c.b16 %v3482, %v3478
        %v3751 = vpack.c.b16 %v3487, %v3483
        %v3752 = vpack.c.b16 %v3488, %v3484
        %v3753 = vpack.c.b16 %v3489, %v3485
        %v3754 = vpack.c.b16 %v3490, %v3486
        %v3755 = vpack.c.b16 %v3495, %v3491
        %v3756 = vpack.c.b16 %v3496, %v3492
        %v3757 = vpack.c.b16 %v3497, %v3493
        %v3758 = vpack.c.b16 %v3498, %v3494
        %v3759 = vpack.c.b16 %v3503, %v3499
        %v3760 = vpack.c.b16 %v3504, %v3500
        %v3761 = vpack.c.b16 %v3505, %v3501
        %v3762 = vpack.c.b16 %v3506, %v3502
        %v3763 = vpack.c.b16 %v3511, %v3507
        %v3764 = vpack.c.b16 %v3512, %v3508
        %v3765 = vpack.c.b16 %v3513, %v3509
        %v3766 = vpack.c.b16 %v3514, %v3510
        %v3767 = vpack.c.b16 %v3519, %v3515
        %v3768 = vpack.c.b16 %v3520, %v3516
        %v3769 = vpack.c.b16 %v3521, %v3517
        %v3770 = vpack.c.b16 %v3522, %v3518
        %v3771 = vpack.c.b16 %v3527, %v3523
        %v3772 = vpack.c.b16 %v3528, %v3524
        %v3773 = vpack.c.b16 %v3529, %v3525
        %v3774 = vpack.c.b16 %v3530, %v3526
        %v3775 = vpack.c.b16 %v3535, %v3531
        %v3776 = vpack.c.b16 %v3536, %v3532
        %v3777 = vpack.c.b16 %v3537, %v3533
        %v3778 = vpack.c.b16 %v3538, %v3534
        %v3779 = vpack.c.b16 %v3543, %v3539
        %v3780 = vpack.c.b16 %v3544, %v3540
        %v3781 = vpack.c.b16 %v3545, %v3541
        %v3782 = vpack.c.b16 %v3546, %v3542
        %v3783 = vpack.c.b16 %v3551, %v3547
        %v3784 = vpack.c.b16 %v3552, %v3548
        %v3785 = vpack.c.b16 %v3553, %v3549
        %v3786 = vpack.c.b16 %v3554, %v3550
        %v3787 = vpack.c.b16 %v3559, %v3555
        %v3788 = vpack.c.b16 %v3560, %v3556
        %v3789 = vpack.c.b16 %v3561, %v3557
        %v3790 = vpack.c.b16 %v3562, %v3558
        %v3791 = vpack.c.b16 %v3567, %v3563
        %v3792 = vpack.c.b16 %v3568, %v3564
        %v3793 = vpack.c.b16 %v3569, %v3565
        %v3794 = vpack.c.b16 %v3570, %v3566
        %v3795 = vpack.c.b16 %v3575, %v3571
        %v3796 = vpack.c.b16 %v3576, %v3572
        %v3797 = vpack.c.b16 %v3577, %v3573
        %v3798 = vpack.c.b16 %v3578, %v3574
        %v3799 = vpack.c.b16 %v3583, %v3579
        %v3800 = vpack.c.b16 %v3584, %v3580
        %v3801 = vpack.c.b16 %v3585, %v3581
        %v3802 = vpack.c.b16 %v3586, %v3582
        %v3803 = vpack.c.b16 %v3591, %v3587
        %v3804 = vpack.c.b16 %v3592, %v3588
        %v3805 = vpack.c.b16 %v3593, %v3589
        %v3806 = vpack.c.b16 %v3594, %v3590
        %v3807 = vpack.c.b16 %v3599, %v3595
        %v3808 = vpack.c.b16 %v3600, %v3596
        %v3809 = vpack.c.b16 %v3601, %v3597
        %v3810 = vpack.c.b16 %v3602, %v3598
        %v3811 = vpack.c.b16 %v3607, %v3603
        %v3812 = vpack.c.b16 %v3608, %v3604
        %v3813 = vpack.c.b16 %v3609, %v3605
        %v3814 = vpack.c.b16 %v3610, %v3606
        %v3815 = vpack.c.b16 %v3615, %v3611
        %v3816 = vpack.c.b16 %v3616, %v3612
        %v3817 = vpack.c.b16 %v3617, %v3613
        %v3818 = vpack.c.b16 %v3618, %v3614
        %v3819 = vpack.c.b16 %v3623, %v3619
        %v3820 = vpack.c.b16 %v3624, %v3620
        %v3821 = vpack.c.b16 %v3625, %v3621
        %v3822 = vpack.c.b16 %v3626, %v3622
        %v3823 = vpack.c.b16 %v3631, %v3627
        %v3824 = vpack.c.b16 %v3632, %v3628
        %v3825 = vpack.c.b16 %v3633, %v3629
        %v3826 = vpack.c.b16 %v3634, %v3630
        %v3827 = vpack.c.b16 %v3639, %v3635
        %v3828 = vpack.c.b16 %v3640, %v3636
        %v3829 = vpack.c.b16 %v3641, %v3637
        %v3830 = vpack.c.b16 %v3642, %v3638
        %v3831 = vpack.c.b16 %v3647, %v3643
        %v3832 = vpack.c.b16 %v3648, %v3644
        %v3833 = vpack.c.b16 %v3649, %v3645
        %v3834 = vpack.c.b16 %v3650, %v3646
        %v3835 = vpack.c.b16 %v3655, %v3651
        %v3836 = vpack.c.b16 %v3656, %v3652
        %v3837 = vpack.c.b16 %v3657, %v3653
        %v3838 = vpack.c.b16 %v3658, %v3654
        %v3839 = vpack.c.b16 %v3663, %v3659
        %v3840 = vpack.c.b16 %v3664, %v3660
        %v3841 = vpack.c.b16 %v3665, %v3661
        %v3842 = vpack.c.b16 %v3666, %v3662
        %v3843 = vpack.c.b16 %v3671, %v3667
        %v3844 = vpack.c.b16 %v3672, %v3668
        %v3845 = vpack.c.b16 %v3673, %v3669
        %v3846 = vpack.c.b16 %v3674, %v3670
        %v3847 = vpack.c.b16 %v3679, %v3675
        %v3848 = vpack.c.b16 %v3680, %v3676
        %v3849 = vpack.c.b16 %v3681, %v3677
        %v3850 = vpack.c.b16 %v3682, %v3678
        %v3851 = vpack.c.b16 %v3687, %v3683
        %v3852 = vpack.c.b16 %v3688, %v3684
        %v3853 = vpack.c.b16 %v3689, %v3685
        %v3854 = vpack.c.b16 %v3690, %v3686
        %v3855 = vpack.c.b16 %v3695, %v3691
        %v3856 = vpack.c.b16 %v3696, %v3692
        %v3857 = vpack.c.b16 %v3697, %v3693
        %v3858 = vpack.c.b16 %v3698, %v3694
        %v3859 = vpack.c.b16 %v3703, %v3699
        %v3860 = vpack.c.b16 %v3704, %v3700
        %v3861 = vpack.c.b16 %v3705, %v3701
        %v3862 = vpack.c.b16 %v3706, %v3702
        %v3863 = vpack.c.b16 %v3711, %v3707
        %v3864 = vpack.c.b16 %v3712, %v3708
        %v3865 = vpack.c.b16 %v3713, %v3709
        %v3866 = vpack.c.b16 %v3714, %v3710
        %v3867 = vpack.c.b16 %v3719, %v3715
        %v3868 = vpack.c.b16 %v3720, %v3716
        %v3869 = vpack.c.b16 %v3721, %v3717
        %v3870 = vpack.c.b16 %v3722, %v3718
        %v3871 = vpack.c.b16 %v3727, %v3723
        %v3872 = vpack.c.b16 %v3728, %v3724
        %v3873 = vpack.c.b16 %v3729, %v3725
        %v3874 = vpack.c.b16 %v3730, %v3726
        %v4020 = vsel %vm522, %v3154, 0
        %4022 = vmatprep.subr.bf16.mxu0 %v3732
        %4023 = vmatpush1.bf16.msra.mxu0 %v3731
        %4024 = vmatprep.subr.bf16.mxu0 %v3736
        %4025 = vmatpush1.bf16.msra.mxu0 %v3735
        %4026 = vmatprep.subr.bf16.mxu0 %v3740
        %4027 = vmatpush1.bf16.msra.mxu0 %v3739
        %4028 = vmatprep.subr.bf16.mxu0 %v3744
        %4029 = vmatpush1.bf16.msra.mxu0 %v3743
        %4030 = vmatprep.subr.bf16.mxu0 %v3748
        %4031 = vmatpush1.bf16.msra.mxu0 %v3747
        %4032 = vmatprep.subr.bf16.mxu0 %v3752
        %4033 = vmatpush1.bf16.msra.mxu0 %v3751
        %4034 = vmatprep.subr.bf16.mxu0 %v3756
        %4035 = vmatpush1.bf16.msra.mxu0 %v3755
        %4036 = vmatprep.subr.bf16.mxu0 %v3760
        %4037 = vmatpush1.bf16.msra.mxu0 %v3759
        %4038 = vmatprep.subr.bf16.mxu0 %v3764
        %4039 = vmatpush1.bf16.msra.mxu0 %v3763
        %4040 = vmatprep.subr.bf16.mxu0 %v3768
        %4041 = vmatpush1.bf16.msra.mxu0 %v3767
        %4042 = vmatprep.subr.bf16.mxu0 %v3772
        %4043 = vmatpush1.bf16.msra.mxu0 %v3771
        %4044 = vmatprep.subr.bf16.mxu0 %v3776
        %4045 = vmatpush1.bf16.msra.mxu0 %v3775
        %4046 = vmatprep.subr.bf16.mxu0 %v3780
        %4047 = vmatpush1.bf16.msra.mxu0 %v3779
        %4048 = vmatprep.subr.bf16.mxu0 %v3784
        %4049 = vmatpush1.bf16.msra.mxu0 %v3783
        %4050 = vmatprep.subr.bf16.mxu0 %v3788
        %4051 = vmatpush1.bf16.msra.mxu0 %v3787
        %4052 = vmatprep.subr.bf16.mxu0 %v3792
        %4053 = vmatpush1.bf16.msra.mxu0 %v3791
        %4054 = vmatprep.mubr.bf16.mxu0 %v3151
        %4055 = vmatmul.mubr.bf16.gmra.mrb[0].mxu0 %v3150
        %v4056 = vpop.f32.mrb[0].mxu0
        %v4057 = vadd.f32 0.0, %v4056
        %v4058 = vpop.f32.mrb[0].mxu0
        %v4059 = vadd.f32 0.0, %v4058
        %v4060 = vpop.f32.mrb[0].mxu0
        %v4061 = vadd.f32 0.0, %v4060
        %v4062 = vpop.f32.mrb[0].mxu0
        %v4063 = vadd.f32 0.0, %v4062
        %4064 = vdwg.mxu0
        %4065 = vmatprep.subr.bf16.mxu0 %v3796
        %4066 = vmatpush1.bf16.msra.mxu0 %v3795
        %4067 = vmatprep.subr.bf16.mxu0 %v3800
        %4068 = vmatpush1.bf16.msra.mxu0 %v3799
        %4069 = vmatprep.subr.bf16.mxu0 %v3804
        %4070 = vmatpush1.bf16.msra.mxu0 %v3803
        %4071 = vmatprep.subr.bf16.mxu0 %v3808
        %4072 = vmatpush1.bf16.msra.mxu0 %v3807
        %4073 = vmatprep.subr.bf16.mxu0 %v3812
        %4074 = vmatpush1.bf16.msra.mxu0 %v3811
        %4075 = vmatprep.subr.bf16.mxu0 %v3816
        %4076 = vmatpush1.bf16.msra.mxu0 %v3815
        %4077 = vmatprep.subr.bf16.mxu0 %v3820
        %4078 = vmatpush1.bf16.msra.mxu0 %v3819
        %4079 = vmatprep.subr.bf16.mxu0 %v3824
        %4080 = vmatpush1.bf16.msra.mxu0 %v3823
        %4081 = vmatprep.subr.bf16.mxu0 %v3828
        %4082 = vmatpush1.bf16.msra.mxu0 %v3827
        %4083 = vmatprep.subr.bf16.mxu0 %v3832
        %4084 = vmatpush1.bf16.msra.mxu0 %v3831
        %4085 = vmatprep.subr.bf16.mxu0 %v3836
        %4086 = vmatpush1.bf16.msra.mxu0 %v3835
        %4087 = vmatprep.subr.bf16.mxu0 %v3840
        %4088 = vmatpush1.bf16.msra.mxu0 %v3839
        %4089 = vmatprep.subr.bf16.mxu0 %v3844
        %4090 = vmatpush1.bf16.msra.mxu0 %v3843
        %4091 = vmatprep.subr.bf16.mxu0 %v3848
        %4092 = vmatpush1.bf16.msra.mxu0 %v3847
        %4093 = vmatprep.subr.bf16.mxu0 %v3852
        %4094 = vmatpush1.bf16.msra.mxu0 %v3851
        %4095 = vmatprep.subr.bf16.mxu0 %v3856
        %4096 = vmatpush1.bf16.msra.mxu0 %v3855
        %4097 = vmatprep.mubr.bf16.mxu0 %v3153
        %4098 = vmatmul.mubr.bf16.gmra.mrb[0].mxu0 %v3152
        %v4099 = vpop.f32.mrb[0].mxu0
        %v4100 = vadd.f32 %v4057, %v4099
        %v4101 = vpop.f32.mrb[0].mxu0
        %v4102 = vadd.f32 %v4059, %v4101
        %v4103 = vpop.f32.mrb[0].mxu0
        %v4104 = vadd.f32 %v4061, %v4103
        %v4105 = vpop.f32.mrb[0].mxu0
        %v4106 = vadd.f32 %v4063, %v4105
        %4107 = vdwg.mxu0
        %4108 = vmatprep.subr.bf16.mxu0 %v3860
        %4109 = vmatpush1.bf16.msra.mxu0 %v3859
        %4110 = vmatprep.subr.bf16.mxu0 %v3864
        %4111 = vmatpush1.bf16.msra.mxu0 %v3863
        %4112 = vmatprep.subr.bf16.mxu0 %v3868
        %4113 = vmatpush1.bf16.msra.mxu0 %v3867
        %4114 = vmatprep.subr.bf16.mxu0 %v3872
        %4115 = vmatpush1.bf16.msra.mxu0 %v3871
        %4116 = vmatprep.subr.bf16.mxu0 0
        %4117 = vmatpush1.bf16.msra.mxu0 0
        %4118 = vmatprep.subr.bf16.mxu0 0
        %4119 = vmatpush1.bf16.msra.mxu0 0
        %4120 = vmatprep.subr.bf16.mxu0 0
        %4121 = vmatpush1.bf16.msra.mxu0 0
        %4122 = vmatprep.subr.bf16.mxu0 0
        %4123 = vmatpush1.bf16.msra.mxu0 0
        %4124 = vmatprep.subr.bf16.mxu0 0
        %4125 = vmatpush1.bf16.msra.mxu0 0
        %4126 = vmatprep.subr.bf16.mxu0 0
        %4127 = vmatpush1.bf16.msra.mxu0 0
        %4128 = vmatprep.subr.bf16.mxu0 0
        %4129 = vmatpush1.bf16.msra.mxu0 0
        %4130 = vmatprep.subr.bf16.mxu0 0
        %4131 = vmatpush1.bf16.msra.mxu0 0
        %4132 = vmatprep.subr.bf16.mxu0 0
        %4133 = vmatpush1.bf16.msra.mxu0 0
        %4134 = vmatprep.subr.bf16.mxu0 0
        %4135 = vmatpush1.bf16.msra.mxu0 0
        %4136 = vmatprep.subr.bf16.mxu0 0
        %4137 = vmatpush1.bf16.msra.mxu0 0
        %4138 = vmatprep.subr.bf16.mxu0 0
        %4139 = vmatpush1.bf16.msra.mxu0 0
        %4140 = vmatprep.mubr.bf16.mxu0 0
        %4141 = vmatmul.mubr.bf16.gmra.mrb[0].mxu0 %v4020
        %v4142 = vpop.f32.mrb[0].mxu0
        %v4143 = vadd.f32 %v4100, %v4142
        %v4144 = vpop.f32.mrb[0].mxu0
        %v4145 = vadd.f32 %v4102, %v4144
        %v4146 = vpop.f32.mrb[0].mxu0
        %v4147 = vadd.f32 %v4104, %v4146
        %v4148 = vpop.f32.mrb[0].mxu0
        %v4149 = vadd.f32 %v4106, %v4148
        %4150 = vdwg.mxu0
        %4151 = vmatprep.subr.bf16.mxu0 %v3734
        %4152 = vmatpush1.bf16.msra.mxu0 %v3733
        %4153 = vmatprep.subr.bf16.mxu0 %v3738
        %4154 = vmatpush1.bf16.msra.mxu0 %v3737
        %4155 = vmatprep.subr.bf16.mxu0 %v3742
        %4156 = vmatpush1.bf16.msra.mxu0 %v3741
        %4157 = vmatprep.subr.bf16.mxu0 %v3746
        %4158 = vmatpush1.bf16.msra.mxu0 %v3745
        %4159 = vmatprep.subr.bf16.mxu0 %v3750
        %4160 = vmatpush1.bf16.msra.mxu0 %v3749
        %4161 = vmatprep.subr.bf16.mxu0 %v3754
        %4162 = vmatpush1.bf16.msra.mxu0 %v3753
        %4163 = vmatprep.subr.bf16.mxu0 %v3758
        %4164 = vmatpush1.bf16.msra.mxu0 %v3757
        %4165 = vmatprep.subr.bf16.mxu0 %v3762
        %4166 = vmatpush1.bf16.msra.mxu0 %v3761
        %4167 = vmatprep.subr.bf16.mxu0 %v3766
        %4168 = vmatpush1.bf16.msra.mxu0 %v3765
        %4169 = vmatprep.subr.bf16.mxu0 %v3770
        %4170 = vmatpush1.bf16.msra.mxu0 %v3769
        %4171 = vmatprep.subr.bf16.mxu0 %v3774
        %4172 = vmatpush1.bf16.msra.mxu0 %v3773
        %4173 = vmatprep.subr.bf16.mxu0 %v3778
        %4174 = vmatpush1.bf16.msra.mxu0 %v3777
        %4175 = vmatprep.subr.bf16.mxu0 %v3782
        %4176 = vmatpush1.bf16.msra.mxu0 %v3781
        %4177 = vmatprep.subr.bf16.mxu0 %v3786
        %4178 = vmatpush1.bf16.msra.mxu0 %v3785
        %4179 = vmatprep.subr.bf16.mxu0 %v3790
        %4180 = vmatpush1.bf16.msra.mxu0 %v3789
        %4181 = vmatprep.subr.bf16.mxu0 %v3794
        %4182 = vmatpush1.bf16.msra.mxu0 %v3793
        %4183 = vmatprep.mubr.bf16.mxu0 %v3151
        %4184 = vmatmul.mubr.bf16.gmra.mrb[0].mxu0 %v3150
        %v4185 = vpop.f32.mrb[0].mxu0
        %v4186 = vadd.f32 0.0, %v4185
        %v4187 = vpop.f32.mrb[0].mxu0
        %v4188 = vadd.f32 0.0, %v4187
        %v4189 = vpop.f32.mrb[0].mxu0
        %v4190 = vadd.f32 0.0, %v4189
        %v4191 = vpop.f32.mrb[0].mxu0
        %v4192 = vadd.f32 0.0, %v4191
        %4193 = vdwg.mxu0
        %4194 = vmatprep.subr.bf16.mxu0 %v3798
        %4195 = vmatpush1.bf16.msra.mxu0 %v3797
        %4196 = vmatprep.subr.bf16.mxu0 %v3802
        %4197 = vmatpush1.bf16.msra.mxu0 %v3801
        %4198 = vmatprep.subr.bf16.mxu0 %v3806
        %4199 = vmatpush1.bf16.msra.mxu0 %v3805
        %4200 = vmatprep.subr.bf16.mxu0 %v3810
        %4201 = vmatpush1.bf16.msra.mxu0 %v3809
        %4202 = vmatprep.subr.bf16.mxu0 %v3814
        %4203 = vmatpush1.bf16.msra.mxu0 %v3813
        %4204 = vmatprep.subr.bf16.mxu0 %v3818
        %4205 = vmatpush1.bf16.msra.mxu0 %v3817
        %4206 = vmatprep.subr.bf16.mxu0 %v3822
        %4207 = vmatpush1.bf16.msra.mxu0 %v3821
        %4208 = vmatprep.subr.bf16.mxu0 %v3826
        %4209 = vmatpush1.bf16.msra.mxu0 %v3825
        %4210 = vmatprep.subr.bf16.mxu0 %v3830
        %4211 = vmatpush1.bf16.msra.mxu0 %v3829
        %4212 = vmatprep.subr.bf16.mxu0 %v3834
        %4213 = vmatpush1.bf16.msra.mxu0 %v3833
        %4214 = vmatprep.subr.bf16.mxu0 %v3838
        %4215 = vmatpush1.bf16.msra.mxu0 %v3837
        %4216 = vmatprep.subr.bf16.mxu0 %v3842
        %4217 = vmatpush1.bf16.msra.mxu0 %v3841
        %4218 = vmatprep.subr.bf16.mxu0 %v3846
        %4219 = vmatpush1.bf16.msra.mxu0 %v3845
        %4220 = vmatprep.subr.bf16.mxu0 %v3850
        %4221 = vmatpush1.bf16.msra.mxu0 %v3849
        %4222 = vmatprep.subr.bf16.mxu0 %v3854
        %4223 = vmatpush1.bf16.msra.mxu0 %v3853
        %4224 = vmatprep.subr.bf16.mxu0 %v3858
        %4225 = vmatpush1.bf16.msra.mxu0 %v3857
        %4226 = vmatprep.mubr.bf16.mxu0 %v3153
        %4227 = vmatmul.mubr.bf16.gmra.mrb[0].mxu0 %v3152
        %v4228 = vpop.f32.mrb[0].mxu0
        %v4229 = vadd.f32 %v4186, %v4228
        %v4230 = vpop.f32.mrb[0].mxu0
        %v4231 = vadd.f32 %v4188, %v4230
        %v4232 = vpop.f32.mrb[0].mxu0
        %v4233 = vadd.f32 %v4190, %v4232
        %v4234 = vpop.f32.mrb[0].mxu0
        %v4235 = vadd.f32 %v4192, %v4234
        %4236 = vdwg.mxu0
        %4237 = vmatprep.subr.bf16.mxu0 %v3862
        %4238 = vmatpush1.bf16.msra.mxu0 %v3861
        %4239 = vmatprep.subr.bf16.mxu0 %v3866
        %4240 = vmatpush1.bf16.msra.mxu0 %v3865
        %4241 = vmatprep.subr.bf16.mxu0 %v3870
        %4242 = vmatpush1.bf16.msra.mxu0 %v3869
        %4243 = vmatprep.subr.bf16.mxu0 %v3874
        %4244 = vmatpush1.bf16.msra.mxu0 %v3873
        %4245 = vmatprep.subr.bf16.mxu0 0
        %4246 = vmatpush1.bf16.msra.mxu0 0
        %4247 = vmatprep.subr.bf16.mxu0 0
        %4248 = vmatpush1.bf16.msra.mxu0 0
        %4249 = vmatprep.subr.bf16.mxu0 0
        %4250 = vmatpush1.bf16.msra.mxu0 0
        %4251 = vmatprep.subr.bf16.mxu0 0
        %4252 = vmatpush1.bf16.msra.mxu0 0
        %4253 = vmatprep.subr.bf16.mxu0 0
        %4254 = vmatpush1.bf16.msra.mxu0 0
        %4255 = vmatprep.subr.bf16.mxu0 0
        %4256 = vmatpush1.bf16.msra.mxu0 0
        %4257 = vmatprep.subr.bf16.mxu0 0
        %4258 = vmatpush1.bf16.msra.mxu0 0
        %4259 = vmatprep.subr.bf16.mxu0 0
        %4260 = vmatpush1.bf16.msra.mxu0 0
        %4261 = vmatprep.subr.bf16.mxu0 0
        %4262 = vmatpush1.bf16.msra.mxu0 0
        %4263 = vmatprep.subr.bf16.mxu0 0
        %4264 = vmatpush1.bf16.msra.mxu0 0
        %4265 = vmatprep.subr.bf16.mxu0 0
        %4266 = vmatpush1.bf16.msra.mxu0 0
        %4267 = vmatprep.subr.bf16.mxu0 0
        %4268 = vmatpush1.bf16.msra.mxu0 0
        %4269 = vmatprep.mubr.bf16.mxu0 0
        %4270 = vmatmul.mubr.bf16.gmra.mrb[0].mxu0 %v4020
        %v4271 = vpop.f32.mrb[0].mxu0
        %v4272 = vadd.f32 %v4229, %v4271
        %v4273 = vpop.f32.mrb[0].mxu0
        %v4274 = vadd.f32 %v4231, %v4273
        %v4275 = vpop.f32.mrb[0].mxu0
        %v4276 = vadd.f32 %v4233, %v4275
        %v4277 = vpop.f32.mrb[0].mxu0
        %v4278 = vadd.f32 %v4235, %v4277
        %4279 = vdwg.mxu0
        %v4280 = vld [vmem:[%s11] sm:$0xf]
        %v4282 = vlaneseq
        %v4283 = vshrl.u32 %v4282, 7
        %v4284 = vsub.s32 0, %v4283
        %v4285 = vrot.slane %v4280, %v4284
        %v4286 = vlaneseq
        %v4287 = vshrl.u32 %v4286, 7
        %v4288 = vsub.s32 1, %v4287
        %v4289 = vrot.slane %v4280, %v4288
        %v4290 = vlaneseq
        %v4291 = vshrl.u32 %v4290, 7
        %v4292 = vsub.s32 2, %v4291
        %v4293 = vrot.slane %v4280, %v4292
        %v4294 = vlaneseq
        %v4295 = vshrl.u32 %v4294, 7
        %v4296 = vsub.s32 3, %v4295
        %v4297 = vrot.slane %v4280, %v4296
        %v4302 = vmul.f32 %v4143, %v4285
        %v4303 = vmul.f32 %v4145, %v4289
        %v4304 = vmul.f32 %v4272, %v4293
        %v4305 = vmul.f32 %v4274, %v4297
        %v4306 = vmul.f32 %v4147, %v4285
        %v4307 = vmul.f32 %v4149, %v4289
        %v4308 = vmul.f32 %v4276, %v4293
        %v4309 = vmul.f32 %v4278, %v4297
        %v4310 = vld [vmem:[%s12] sm:$0xf]
        %v4312 = vlaneseq
        %v4313 = vshrl.u32 %v4312, 7
        %v4314 = vsub.s32 0, %v4313
        %v4315 = vrot.slane %v4310, %v4314
        %v4316 = vlaneseq
        %v4317 = vshrl.u32 %v4316, 7
        %v4318 = vsub.s32 1, %v4317
        %v4319 = vrot.slane %v4310, %v4318
        %v4320 = vlaneseq
        %v4321 = vshrl.u32 %v4320, 7
        %v4322 = vsub.s32 2, %v4321
        %v4323 = vrot.slane %v4310, %v4322
        %v4324 = vlaneseq
        %v4325 = vshrl.u32 %v4324, 7
        %v4326 = vsub.s32 3, %v4325
        %v4327 = vrot.slane %v4310, %v4326
        %v4332 = vadd.f32 %v4302, %v4315
        %v4333 = vadd.f32 %v4303, %v4319
        %v4334 = vadd.f32 %v4304, %v4323
        %v4335 = vadd.f32 %v4305, %v4327
        %v4336 = vadd.f32 %v4306, %v4315
        %v4337 = vadd.f32 %v4307, %v4319
        %v4338 = vadd.f32 %v4308, %v4323
        %v4339 = vadd.f32 %v4309, %v4327
        %v4340 = vmax.f32 %v4332, 0.0
        %v4341 = vmax.f32 %v4333, 0.0
        %v4342 = vmax.f32 %v4334, 0.0
        %v4343 = vmax.f32 %v4335, 0.0
        %v4344 = vmax.f32 %v4336, 0.0
        %v4345 = vmax.f32 %v4337, 0.0
        %v4346 = vmax.f32 %v4338, 0.0
        %v4347 = vmax.f32 %v4339, 0.0
        %4348 = vst [vmem:[#allocation11] sm:$0xff] %v4340
        %4349 = vst [vmem:[#allocation11 + $0x8] sm:$0xff] %v4341
        %4350 = vst [vmem:[#allocation11 + $0x10] sm:$0xff] %v4342
        %4351 = vst [vmem:[#allocation11 + $0x18] sm:$0xff] %v4343
        %4352 = vst [vmem:[#allocation11 + $0x20] sm:$0xff] %v4344
        %4353 = vst [vmem:[#allocation11 + $0x28] sm:$0xff] %v4345
        %4354 = vst [vmem:[#allocation11 + $0x30] sm:$0xff] %v4346
        %4355 = vst [vmem:[#allocation11 + $0x38] sm:$0xff] %v4347
        %s4356 = scalar_lea.vmem [#allocation11], 5
        %v4357 = vld [vmem:[%s4356] ss:$8 sm:$0xf]
        %s4358 = scalar_lea.vmem [#allocation11], 6
        %v4359 = vld [vmem:[%s4358] ss:$8 sm:$0xf]
        %v4360 = vmax.f32 %v4357, %v4359
        %s4361 = scalar_lea.vmem [#allocation11], 33
        %v4362 = vld [vmem:[%s4361] ss:$8 sm:$0xf]
        %s4363 = scalar_lea.vmem [#allocation11], 34
        %v4364 = vld [vmem:[%s4363] ss:$8 sm:$0xf]
        %v4365 = vmax.f32 %v4362, %v4364
        %v4366 = vmax.f32 %v4360, %v4365
        %v4368 = vlaneseq
        %v4369 = vshrl.u32 %v4368, 7
        %v4370 = vsub.s32 0, %v4369
        %v4371 = vrot.slane %v4366, %v4370
        %v4372 = vlaneseq
        %v4373 = vshrl.u32 %v4372, 7
        %v4374 = vsub.s32 1, %v4373
        %v4375 = vrot.slane %v4366, %v4374
        %v4376 = vlaneseq
        %v4377 = vshrl.u32 %v4376, 7
        %v4378 = vsub.s32 2, %v4377
        %v4379 = vrot.slane %v4366, %v4378
        %v4380 = vlaneseq
        %v4381 = vshrl.u32 %v4380, 7
        %v4382 = vsub.s32 3, %v4381
        %v4383 = vrot.slane %v4366, %v4382
        %v4388 = vpack.c.bf16 %v4371, %v4371
        %v4389 = vpack.c.bf16 %v4375, %v4375
        %v4390 = vpack.c.bf16 %v4379, %v4379
        %v4391 = vpack.c.bf16 %v4383, %v4383
        %v4392 = vld [vmem:[%s13] sm:$0xf]
        %v4393 = vld [vmem:[%s13 + $0x4] sm:$0xf]
        %v4394 = vld [vmem:[%s13 + $0x8] sm:$0xf]
        %v4395 = vld [vmem:[%s13 + $0xc] sm:$0xf]
        %v4396 = vld [vmem:[%s13 + $0x10] sm:$0xf]
        %v4397 = vld [vmem:[%s13 + $0x14] sm:$0xf]
        %v4398 = vld [vmem:[%s13 + $0x18] sm:$0xf]
        %v4399 = vld [vmem:[%s13 + $0x1c] sm:$0xf]
        %v4400 = vld [vmem:[%s13 + $0x20] sm:$0xf]
        %v4401 = vld [vmem:[%s13 + $0x24] sm:$0xf]
        %v4402 = vld [vmem:[%s13 + $0x28] sm:$0xf]
        %v4403 = vld [vmem:[%s13 + $0x2c] sm:$0xf]
        %v4404 = vld [vmem:[%s13 + $0x30] sm:$0xf]
        %v4405 = vld [vmem:[%s13 + $0x34] sm:$0xf]
        %v4406 = vld [vmem:[%s13 + $0x38] sm:$0xf]
        %v4407 = vld [vmem:[%s13 + $0x3c] sm:$0xf]
        %v4408 = vld [vmem:[%s13 + $0x40] sm:$0xf]
        %v4409 = vld [vmem:[%s13 + $0x44] sm:$0xf]
        %v4410 = vld [vmem:[%s13 + $0x48] sm:$0xf]
        %v4411 = vld [vmem:[%s13 + $0x4c] sm:$0xf]
        %v4412 = vld [vmem:[%s13 + $0x50] sm:$0xf]
        %v4413 = vld [vmem:[%s13 + $0x54] sm:$0xf]
        %v4414 = vld [vmem:[%s13 + $0x58] sm:$0xf]
        %v4415 = vld [vmem:[%s13 + $0x5c] sm:$0xf]
        %v4416 = vld [vmem:[%s13 + $0x60] sm:$0xf]
        %v4417 = vld [vmem:[%s13 + $0x64] sm:$0xf]
        %v4418 = vld [vmem:[%s13 + $0x68] sm:$0xf]
        %v4419 = vld [vmem:[%s13 + $0x6c] sm:$0xf]
        %v4420 = vld [vmem:[%s13 + $0x70] sm:$0xf]
        %v4421 = vld [vmem:[%s13 + $0x74] sm:$0xf]
        %v4422 = vld [vmem:[%s13 + $0x78] sm:$0xf]
        %v4423 = vld [vmem:[%s13 + $0x7c] sm:$0xf]
        %v4424 = vld [vmem:[%s13 + $0x80] sm:$0xf]
        %v4425 = vld [vmem:[%s13 + $0x84] sm:$0xf]
        %v4426 = vld [vmem:[%s13 + $0x88] sm:$0xf]
        %v4427 = vld [vmem:[%s13 + $0x8c] sm:$0xf]
        %v4428 = vld [vmem:[%s13 + $0x90] sm:$0xf]
        %v4429 = vld [vmem:[%s13 + $0x94] sm:$0xf]
        %v4430 = vld [vmem:[%s13 + $0x98] sm:$0xf]
        %v4431 = vld [vmem:[%s13 + $0x9c] sm:$0xf]
        %v4432 = vld [vmem:[%s13 + $0xa0] sm:$0xf]
        %v4433 = vld [vmem:[%s13 + $0xa4] sm:$0xf]
        %v4434 = vld [vmem:[%s13 + $0xa8] sm:$0xf]
        %v4435 = vld [vmem:[%s13 + $0xac] sm:$0xf]
        %v4436 = vld [vmem:[%s13 + $0xb0] sm:$0xf]
        %v4437 = vld [vmem:[%s13 + $0xb4] sm:$0xf]
        %v4438 = vld [vmem:[%s13 + $0xb8] sm:$0xf]
        %v4439 = vld [vmem:[%s13 + $0xbc] sm:$0xf]
        %v4440 = vld [vmem:[%s13 + $0xc0] sm:$0xf]
        %v4441 = vld [vmem:[%s13 + $0xc4] sm:$0xf]
        %v4442 = vld [vmem:[%s13 + $0xc8] sm:$0xf]
        %v4443 = vld [vmem:[%s13 + $0xcc] sm:$0xf]
        %v4444 = vld [vmem:[%s13 + $0xd0] sm:$0xf]
        %v4445 = vld [vmem:[%s13 + $0xd4] sm:$0xf]
        %v4446 = vld [vmem:[%s13 + $0xd8] sm:$0xf]
        %v4447 = vld [vmem:[%s13 + $0xdc] sm:$0xf]
        %v4448 = vld [vmem:[%s13 + $0xe0] sm:$0xf]
        %v4449 = vld [vmem:[%s13 + $0xe4] sm:$0xf]
        %v4450 = vld [vmem:[%s13 + $0xe8] sm:$0xf]
        %v4451 = vld [vmem:[%s13 + $0xec] sm:$0xf]
        %v4452 = vld [vmem:[%s13 + $0xf0] sm:$0xf]
        %v4453 = vld [vmem:[%s13 + $0xf4] sm:$0xf]
        %v4454 = vld [vmem:[%s13 + $0xf8] sm:$0xf]
        %v4455 = vld [vmem:[%s13 + $0xfc] sm:$0xf]
        %v4456 = vld [vmem:[%s14] sm:$0x1]
        %v4521 = vunpack.c.l.b16 %v4392
        %v4522 = vunpack.c.l.b16 %v4393
        %v4523 = vunpack.c.l.b16 %v4394
        %v4524 = vunpack.c.l.b16 %v4395
        %v4525 = vunpack.c.l.b16 %v4396
        %v4526 = vunpack.c.l.b16 %v4397
        %v4527 = vunpack.c.l.b16 %v4398
        %v4528 = vunpack.c.l.b16 %v4399
        %v4529 = vunpack.c.l.b16 %v4400
        %v4530 = vunpack.c.l.b16 %v4401
        %v4531 = vunpack.c.l.b16 %v4402
        %v4532 = vunpack.c.l.b16 %v4403
        %v4533 = vunpack.c.l.b16 %v4404
        %v4534 = vunpack.c.l.b16 %v4405
        %v4535 = vunpack.c.l.b16 %v4406
        %v4536 = vunpack.c.l.b16 %v4407
        %v4537 = vunpack.c.l.b16 %v4408
        %v4538 = vunpack.c.l.b16 %v4409
        %v4539 = vunpack.c.l.b16 %v4410
        %v4540 = vunpack.c.l.b16 %v4411
        %v4541 = vunpack.c.l.b16 %v4412
        %v4542 = vunpack.c.l.b16 %v4413
        %v4543 = vunpack.c.l.b16 %v4414
        %v4544 = vunpack.c.l.b16 %v4415
        %v4545 = vunpack.c.l.b16 %v4416
        %v4546 = vunpack.c.l.b16 %v4417
        %v4547 = vunpack.c.l.b16 %v4418
        %v4548 = vunpack.c.l.b16 %v4419
        %v4549 = vunpack.c.l.b16 %v4420
        %v4550 = vunpack.c.l.b16 %v4421
        %v4551 = vunpack.c.l.b16 %v4422
        %v4552 = vunpack.c.l.b16 %v4423
        %v4553 = vunpack.c.l.b16 %v4424
        %v4554 = vunpack.c.l.b16 %v4425
        %v4555 = vunpack.c.l.b16 %v4426
        %v4556 = vunpack.c.l.b16 %v4427
        %v4557 = vunpack.c.l.b16 %v4428
        %v4558 = vunpack.c.l.b16 %v4429
        %v4559 = vunpack.c.l.b16 %v4430
        %v4560 = vunpack.c.l.b16 %v4431
        %v4561 = vunpack.c.l.b16 %v4432
        %v4562 = vunpack.c.l.b16 %v4433
        %v4563 = vunpack.c.l.b16 %v4434
        %v4564 = vunpack.c.l.b16 %v4435
        %v4565 = vunpack.c.l.b16 %v4436
        %v4566 = vunpack.c.l.b16 %v4437
        %v4567 = vunpack.c.l.b16 %v4438
        %v4568 = vunpack.c.l.b16 %v4439
        %v4569 = vunpack.c.l.b16 %v4440
        %v4570 = vunpack.c.l.b16 %v4441
        %v4571 = vunpack.c.l.b16 %v4442
        %v4572 = vunpack.c.l.b16 %v4443
        %v4573 = vunpack.c.l.b16 %v4444
        %v4574 = vunpack.c.l.b16 %v4445
        %v4575 = vunpack.c.l.b16 %v4446
        %v4576 = vunpack.c.l.b16 %v4447
        %v4577 = vunpack.c.l.b16 %v4448
        %v4578 = vunpack.c.l.b16 %v4449
        %v4579 = vunpack.c.l.b16 %v4450
        %v4580 = vunpack.c.l.b16 %v4451
        %v4581 = vunpack.c.l.b16 %v4452
        %v4582 = vunpack.c.l.b16 %v4453
        %v4583 = vunpack.c.l.b16 %v4454
        %v4584 = vunpack.c.l.b16 %v4455
        %v4585 = vpack.c.b16 %v4522, %v4521
        %v4586 = vpack.c.b16 %v4524, %v4523
        %v4587 = vpack.c.b16 %v4526, %v4525
        %v4588 = vpack.c.b16 %v4528, %v4527
        %v4589 = vpack.c.b16 %v4530, %v4529
        %v4590 = vpack.c.b16 %v4532, %v4531
        %v4591 = vpack.c.b16 %v4534, %v4533
        %v4592 = vpack.c.b16 %v4536, %v4535
        %v4593 = vpack.c.b16 %v4538, %v4537
        %v4594 = vpack.c.b16 %v4540, %v4539
        %v4595 = vpack.c.b16 %v4542, %v4541
        %v4596 = vpack.c.b16 %v4544, %v4543
        %v4597 = vpack.c.b16 %v4546, %v4545
        %v4598 = vpack.c.b16 %v4548, %v4547
        %v4599 = vpack.c.b16 %v4550, %v4549
        %v4600 = vpack.c.b16 %v4552, %v4551
        %v4601 = vpack.c.b16 %v4554, %v4553
        %v4602 = vpack.c.b16 %v4556, %v4555
        %v4603 = vpack.c.b16 %v4558, %v4557
        %v4604 = vpack.c.b16 %v4560, %v4559
        %v4605 = vpack.c.b16 %v4562, %v4561
        %v4606 = vpack.c.b16 %v4564, %v4563
        %v4607 = vpack.c.b16 %v4566, %v4565
        %v4608 = vpack.c.b16 %v4568, %v4567
        %v4609 = vpack.c.b16 %v4570, %v4569
        %v4610 = vpack.c.b16 %v4572, %v4571
        %v4611 = vpack.c.b16 %v4574, %v4573
        %v4612 = vpack.c.b16 %v4576, %v4575
        %v4613 = vpack.c.b16 %v4578, %v4577
        %v4614 = vpack.c.b16 %v4580, %v4579
        %v4615 = vpack.c.b16 %v4582, %v4581
        %v4616 = vpack.c.b16 %v4584, %v4583
        %4649 = vmatprep.subr.bf16.mxu0 0
        %4650 = vmatpush1.bf16.msra.mxu0 %v4585
        %4651 = vmatprep.subr.bf16.mxu0 0
        %4652 = vmatpush1.bf16.msra.mxu0 %v4586
        %4653 = vmatprep.subr.bf16.mxu0 0
        %4654 = vmatpush1.bf16.msra.mxu0 %v4587
        %4655 = vmatprep.subr.bf16.mxu0 0
        %4656 = vmatpush1.bf16.msra.mxu0 %v4588
        %4657 = vmatprep.subr.bf16.mxu0 0
        %4658 = vmatpush1.bf16.msra.mxu0 %v4589
        %4659 = vmatprep.subr.bf16.mxu0 0
        %4660 = vmatpush1.bf16.msra.mxu0 %v4590
        %4661 = vmatprep.subr.bf16.mxu0 0
        %4662 = vmatpush1.bf16.msra.mxu0 %v4591
        %4663 = vmatprep.subr.bf16.mxu0 0
        %4664 = vmatpush1.bf16.msra.mxu0 %v4592
        %4665 = vmatprep.subr.bf16.mxu0 0
        %4666 = vmatpush1.bf16.msra.mxu0 %v4593
        %4667 = vmatprep.subr.bf16.mxu0 0
        %4668 = vmatpush1.bf16.msra.mxu0 %v4594
        %4669 = vmatprep.subr.bf16.mxu0 0
        %4670 = vmatpush1.bf16.msra.mxu0 %v4595
        %4671 = vmatprep.subr.bf16.mxu0 0
        %4672 = vmatpush1.bf16.msra.mxu0 %v4596
        %4673 = vmatprep.subr.bf16.mxu0 0
        %4674 = vmatpush1.bf16.msra.mxu0 %v4597
        %4675 = vmatprep.subr.bf16.mxu0 0
        %4676 = vmatpush1.bf16.msra.mxu0 %v4598
        %4677 = vmatprep.subr.bf16.mxu0 0
        %4678 = vmatpush1.bf16.msra.mxu0 %v4599
        %4679 = vmatprep.subr.bf16.mxu0 0
        %4680 = vmatpush1.bf16.msra.mxu0 %v4600
        %4681 = vmatprep.mubr.bf16.mxu0 %v4389
        %4682 = vmatmul.mubr.bf16.gmra.mrb[0].mxu0 %v4388
        %v4683 = vpop.f32.mrb[0].mxu0
        %v4684 = vadd.f32 %v4456, %v4683
        %v4685 = vpop.f32.mrb[0].mxu0
        %v4686 = vpop.f32.mrb[0].mxu0
        %v4687 = vpop.f32.mrb[0].mxu0
        %4688 = vdwg.mxu0
        %4689 = vmatprep.subr.bf16.mxu0 0
        %4690 = vmatpush1.bf16.msra.mxu0 %v4601
        %4691 = vmatprep.subr.bf16.mxu0 0
        %4692 = vmatpush1.bf16.msra.mxu0 %v4602
        %4693 = vmatprep.subr.bf16.mxu0 0
        %4694 = vmatpush1.bf16.msra.mxu0 %v4603
        %4695 = vmatprep.subr.bf16.mxu0 0
        %4696 = vmatpush1.bf16.msra.mxu0 %v4604
        %4697 = vmatprep.subr.bf16.mxu0 0
        %4698 = vmatpush1.bf16.msra.mxu0 %v4605
        %4699 = vmatprep.subr.bf16.mxu0 0
        %4700 = vmatpush1.bf16.msra.mxu0 %v4606
        %4701 = vmatprep.subr.bf16.mxu0 0
        %4702 = vmatpush1.bf16.msra.mxu0 %v4607
        %4703 = vmatprep.subr.bf16.mxu0 0
        %4704 = vmatpush1.bf16.msra.mxu0 %v4608
        %4705 = vmatprep.subr.bf16.mxu0 0
        %4706 = vmatpush1.bf16.msra.mxu0 %v4609
        %4707 = vmatprep.subr.bf16.mxu0 0
        %4708 = vmatpush1.bf16.msra.mxu0 %v4610
        %4709 = vmatprep.subr.bf16.mxu0 0
        %4710 = vmatpush1.bf16.msra.mxu0 %v4611
        %4711 = vmatprep.subr.bf16.mxu0 0
        %4712 = vmatpush1.bf16.msra.mxu0 %v4612
        %4713 = vmatprep.subr.bf16.mxu0 0
        %4714 = vmatpush1.bf16.msra.mxu0 %v4613
        %4715 = vmatprep.subr.bf16.mxu0 0
        %4716 = vmatpush1.bf16.msra.mxu0 %v4614
        %4717 = vmatprep.subr.bf16.mxu0 0
        %4718 = vmatpush1.bf16.msra.mxu0 %v4615
        %4719 = vmatprep.subr.bf16.mxu0 0
        %4720 = vmatpush1.bf16.msra.mxu0 %v4616
        %4721 = vmatprep.mubr.bf16.mxu0 %v4391
        %4722 = vmatmul.mubr.bf16.gmra.mrb[0].mxu0 %v4390
        %v4723 = vpop.f32.mrb[0].mxu0
        %v4724 = vadd.f32 %v4684, %v4723
        %v4725 = vpop.f32.mrb[0].mxu0
        %v4726 = vpop.f32.mrb[0].mxu0
        %v4727 = vpop.f32.mrb[0].mxu0
        %4728 = vdwg.mxu0
        %4729 = vst [vmem:[%s487] sm:$0x1] %v4724
        %s4730 = sand.u32 %s357, 1
        %s4731 = scalar_lea.sflag [#allocation13], %s4730
        %s4732 = sand.u32 %s357, 1
        %s4733 = scalar_lea.vmem [#allocation12], %s4732
        // Predicated region
        $region81: #{vgg_forward.1} parent=79 // pred_check
          %p4734 = pneg %p367
        $region82: #{vgg_forward.1} parent=79 // pred_check_branch
          %4736 = sbr.rel (%p4734) target = $region84
        $region83: #{vgg_forward.1} parent=79 // pred_region
          %s4738 = ssub.s32 16, 16
          %4739 = vsyncadd %s4731, %s4738
          %s4740 = smul.addr %s29, 16
          %s4741 = scalar_lea.hbm %s15, %s4740
          %s4743 = sshll.u32 %s4733, 4
          %s4744 = int_to_ptr.vmem [resolvable:$true] %s4743
          %4746 = dma.vmem_to_hbm [thread:$0]  %s4744, 16, %s4741, %s4731
        $region84: #{vgg_forward.1} parent=79 // pred_fallthru
          _
      $region80: #{vgg_forward.1} parent=5 // pred_fallthru
        _
      %p4747 = scmp.le.s32.totalorder 2, %s24
      // Predicated region
      $region85: #{vgg_forward.1} parent=5 // pred_check
        %p4748 = pneg %p4747
      $region86: #{vgg_forward.1} parent=5 // pred_check_branch
        %4750 = sbr.rel (%p4748) target = $region88
      $region87: #{vgg_forward.1} parent=5 // pred_region
        %s4751 = ssub.s32 %s24, 2
        // Predicated region
        $region89: #{vgg_forward.1} parent=87 // pred_check
          %p4752 = pneg %p373
        $region90: #{vgg_forward.1} parent=87 // pred_check_branch
          %4754 = sbr.rel (%p4752) target = $region92
        $region91: #{vgg_forward.1} parent=87 // pred_region
          %s4755 = sand.u32 %s358, 1
          %s4756 = scalar_lea.sflag [#allocation13], %s4755
          %s4757 = sand.u32 %s358, 1
          %s4758 = scalar_lea.vmem [#allocation12], %s4757
          %4759 = dma.done %s4756, 16
        $region92: #{vgg_forward.1} parent=87 // pred_fallthru
          _
      $region88: #{vgg_forward.1} parent=5 // pred_fallthru
        _
    $region6: #{vgg_forward.1} parent=1 // loop_footer
      %s28 = sadd.s32 1, %s24
    $region7: #{vgg_forward.1} parent=1 // loop_footer_branch
      %23 = sbr.rel target = $region3
    $region8: #{vgg_forward.1} parent=1 // loop_exit
      _
    %4760 = vsyncpa [#allocation13], 1
    %s4761 = scalar_lea.sflag [#allocation13], 1
    %4762 = vsyncpa %s4761, 1

</llo_original>
